<compile_context>
chip_gen: v6e
topology: v6e:2x2x1
jax: 0.10.0
libtpu: 0.0.40
codegen_flags: <defaults>
</compile_context>

<pallas_src>
import functools
import math

import numpy as np
import jax
import jax.numpy as jnp
from jax.experimental import pallas as pl
from jax.experimental.pallas import tpu as pltpu

F32 = jnp.float32
BF16 = jnp.bfloat16
LN_EPS = 1e-5
BN_EPS = 1e-5
VMEM_LIMIT = 32 * 1024 * 1024   # v7x-safe (64 MiB phys); v5e/v6e have 4x headroom
ROW_TILE = 512                  # target rows per grid step for M-tiled kernels


def _tile_rows(m, target=ROW_TILE):
    # Full array if small; otherwise a multiple-of-8 row tile (cdiv grid).
    return m if m <= target else target


def _ln(x, g, b, eps):
    mu = jnp.mean(x, axis=-1, keepdims=True)
    xc = x - mu
    var = jnp.mean(xc * xc, axis=-1, keepdims=True)
    return xc * jax.lax.rsqrt(var + eps) * g + b


def _cparams(*sem):
    return pltpu.CompilerParams(dimension_semantics=sem,
                                vmem_limit_bytes=VMEM_LIMIT)


# ----------------------------------------------------------------------------
# Fused input layer: Linear -> LayerNorm -> ReLU -> x*sqrt(adim) + PE
# ----------------------------------------------------------------------------
def _input_kernel(x_ref, w_ref, b_ref, g_ref, be_ref, pe_ref, o_ref, *, xscale, eps):
    x = x_ref[0]                                            # (tt, idim)
    y = jnp.dot(x.astype(BF16), w_ref[...],
                preferred_element_type=jnp.float32) + b_ref[...]
    y = _ln(y, g_ref[...], be_ref[...], eps)
    y = jnp.maximum(y, 0.0)
    o_ref[0] = (y * xscale + pe_ref[...]).astype(o_ref.dtype)


def input_layer_pallas(x, w, b, g, be, pe, adim):
    B, T, idim = x.shape
    tt = _tile_rows(T)
    full = lambda s: pl.BlockSpec(s, lambda bi, ti: (0, 0))
    return pl.pallas_call(
        functools.partial(_input_kernel, xscale=math.sqrt(adim), eps=LN_EPS),
        out_shape=jax.ShapeDtypeStruct((B, T, adim), F32),
        grid=(B, pl.cdiv(T, tt)),
        in_specs=[pl.BlockSpec((1, tt, idim), lambda bi, ti: (bi, ti, 0)),
                  full((idim, adim)), full((1, adim)), full((1, adim)), full((1, adim)),
                  # full PE table; time tile selected via index_map (no wrapper slice)
                  pl.BlockSpec((tt, adim), lambda bi, ti: (ti, 0))],
        out_specs=pl.BlockSpec((1, tt, adim), lambda bi, ti: (bi, ti, 0)),
        compiler_params=_cparams("parallel", "parallel"),
    )(x, w, b.reshape(1, adim), g.reshape(1, adim), be.reshape(1, adim), pe)


# ----------------------------------------------------------------------------
# Fused macaron feed-forward module: LN -> W1 -> Swish -> W2 -> x + 0.5*h (+LN)
# ----------------------------------------------------------------------------
def _ff_kernel(x_ref, g_ref, be_ref, w1_ref, b1_ref, w2_ref, b2_ref, *rest,
               eps, post_ln):
    if post_ln:
        g2_ref, be2_ref, o_ref = rest
    else:
        (o_ref,) = rest
    x = x_ref[...]                                          # (tm, D) f32
    h = _ln(x, g_ref[...], be_ref[...], eps)
    h = jnp.dot(h.astype(BF16), w1_ref[...],
                preferred_element_type=jnp.float32) + b1_ref[...]
    h = h * jax.nn.sigmoid(h)                               # swish
    h = jnp.dot(h.astype(BF16), w2_ref[...],
                preferred_element_type=jnp.float32) + b2_ref[...]
    y = x + 0.5 * h                                         # macaron half-step residual
    if post_ln:
        y = _ln(y, g2_ref[...], be2_ref[...], eps)
    o_ref[...] = y.astype(o_ref.dtype)


def ff_module_pallas(x2, g, be, w1, b1, w2, b2, post_ln=None):
    # TODO(synk): for very large eunits on v7x (64 MiB VMEM) split E with a third
    #   "arbitrary" reduction axis or shrink the row tile.
    M, D = x2.shape
    E = w1.shape[1]
    tm = _tile_rows(M)
    row = lambda: pl.BlockSpec((tm, D), lambda i: (i, 0))
    full = lambda s: pl.BlockSpec(s, lambda i: (0, 0))
    inputs = [x2, g.reshape(1, D), be.reshape(1, D), w1, b1.reshape(1, E),
              w2, b2.reshape(1, D)]
    in_specs = [row(), full((1, D)), full((1, D)), full((D, E)), full((1, E)),
                full((E, D)), full((1, D))]
    if post_ln is not None:
        g2, be2 = post_ln
        inputs += [g2.reshape(1, D), be2.reshape(1, D)]
        in_specs += [full((1, D)), full((1, D))]
    return pl.pallas_call(
        functools.partial(_ff_kernel, eps=LN_EPS, post_ln=post_ln is not None),
        out_shape=jax.ShapeDtypeStruct((M, D), F32),
        grid=(pl.cdiv(M, tm),),
        in_specs=in_specs,
        out_specs=row(),
        input_output_aliases={0: 0},
        compiler_params=_cparams("parallel"),
    )(*inputs)


# ----------------------------------------------------------------------------
# Fused LN + QKV projection, written out head-major:  (B, H, T, 3*dh) in bf16
# (per-head [q | k | v] column groups; 1/sqrt(dh) already folded into Q weights)
# ----------------------------------------------------------------------------
def _ln_qkv_kernel(x_ref, g_ref, be_ref, w_ref, b_ref, o_ref, *, H, eps):
    x = x_ref[0]                                            # (tt, D)
    h = _ln(x, g_ref[...], be_ref[...], eps)
    y = jnp.dot(h.astype(BF16), w_ref[...],
                preferred_element_type=jnp.float32) + b_ref[...]   # (tt, 3D) head-grouped
    n = y.shape[1] // H                                     # 3*dh
    for hh in range(H):                                     # head-major store (bf16)
        o_ref[0, hh] = y[:, hh * n:(hh + 1) * n].astype(o_ref.dtype)


def ln_qkv_headmajor_pallas(x3, g, be, w_hm, b_hm, H):
    B, T, D = x3.shape
    dh3 = 3 * D // H
    tt = _tile_rows(T)
    full = lambda s: pl.BlockSpec(s, lambda b, t: (0, 0))
    return pl.pallas_call(
        functools.partial(_ln_qkv_kernel, H=H, eps=LN_EPS),
        out_shape=jax.ShapeDtypeStruct((B, H, T, dh3), BF16),   # bf16 HBM hop
        grid=(B, pl.cdiv(T, tt)),
        in_specs=[pl.BlockSpec((1, tt, D), lambda b, t: (b, t, 0)),
                  full((1, D)), full((1, D)),
                  full((D, 3 * D)), full((1, 3 * D))],
        out_specs=pl.BlockSpec((1, H, tt, dh3), lambda b, t: (b, 0, t, 0)),
        compiler_params=_cparams("parallel", "parallel"),
    )(x3, g.reshape(1, D), be.reshape(1, D), w_hm, b_hm.reshape(1, 3 * D))


# ----------------------------------------------------------------------------
# Fused MHSA: head-batched attention + output projection + residual add
# ----------------------------------------------------------------------------
def _mhsa_kernel(qkv_ref, x_ref, wo_ref, bo_ref, o_ref, *, H):
    qkv = qkv_ref[0]                                        # (H, T, 3*dh) bf16
    dh = qkv.shape[-1] // 3
    q = qkv[:, :, :dh]                                      # (H, T, dh)
    k = qkv[:, :, dh:2 * dh]
    v = qkv[:, :, 2 * dh:]
    # Head-batched QK^T (scale already folded into Q weights at init).
    s = jax.lax.dot_general(q, k, (((2,), (2,)), ((0,), (0,))),
                            preferred_element_type=jnp.float32)     # (H, T, T)
    m = jnp.max(s, axis=-1, keepdims=True)
    p = jnp.exp(s - m)
    l = jnp.sum(p, axis=-1, keepdims=True)
    ctx = jax.lax.dot_general(p.astype(BF16), v, (((2,), (1,)), ((0,), (0,))),
                              preferred_element_type=jnp.float32)   # (H, T, dh)
    ctx = ctx * pl.reciprocal(l, approx=True)               # normalize AFTER PV
    # Output projection folds heads back: sum_h ctx[h] @ wo[h] (+ bias + residual).
    y = x_ref[0] + bo_ref[...]
    for hh in range(H):
        y = y + jnp.dot(ctx[hh].astype(BF16), wo_ref[hh],
                        preferred_element_type=jnp.float32)
    o_ref[0] = y.astype(o_ref.dtype)


def mhsa_pallas(qkv_hm, x3, wo3, bo):
    # TODO(synk): flash-style q-tiling (online softmax over a kv grid axis) would
    #   bound VMEM to O(tq*T) for long sequences on v7x; whole-sequence-per-batch
    #   residency is kept here.
    # TODO(synk): attention padding mask is not applied (mask only passed through).
    B, H, T, dh3 = qkv_hm.shape
    D = x3.shape[-1]
    dh = dh3 // 3
    return pl.pallas_call(
        functools.partial(_mhsa_kernel, H=H),
        out_shape=jax.ShapeDtypeStruct((B, T, D), F32),
        grid=(B,),
        in_specs=[pl.BlockSpec((1, H, T, dh3), lambda b: (b, 0, 0, 0)),
                  pl.BlockSpec((1, T, D), lambda b: (b, 0, 0)),
                  pl.BlockSpec((H, dh, D), lambda b: (0, 0, 0)),
                  pl.BlockSpec((1, D), lambda b: (0, 0))],
        out_specs=pl.BlockSpec((1, T, D), lambda b: (b, 0, 0)),
        input_output_aliases={1: 0},
        compiler_params=_cparams("parallel"),
    )(qkv_hm, x3, wo3, bo.reshape(1, D))


# ----------------------------------------------------------------------------
# Fused convolution module: LN -> pw1+GLU -> dwconv -> BN(eval) -> Swish -> pw2 -> +x
# ----------------------------------------------------------------------------
def _conv_module_kernel(x_ref, g_ref, be_ref, w1_ref, b1_ref, dw_ref, db_ref,
                        bng_ref, bnb_ref, bnm_ref, bnv_ref, w2_ref, b2_ref,
                        o_ref, pad_ref, *, K, eps, bn_eps):
    x = x_ref[0]                                            # (T, D)
    T, D = x.shape
    h = _ln(x, g_ref[...], be_ref[...], eps)
    # pointwise conv 1 (width 2D) + GLU
    h = jnp.dot(h.astype(BF16), w1_ref[...],
                preferred_element_type=jnp.float32) + b1_ref[...]
    h = h[:, :D] * jax.nn.sigmoid(h[:, D:])
    # depthwise conv along time: zero-padded sequence lives in a VMEM scratch ref,
    # so the K taps are plain static-offset loads (no concatenate / value copies).
    pad = (K - 1) // 2
    if pad > 0:
        pad_ref[0:pad, :] = jnp.zeros((pad, D), jnp.float32)
        pad_ref[pad + T:pad + T + pad, :] = jnp.zeros((pad, D), jnp.float32)
    pad_ref[pad:pad + T, :] = h
    acc = pad_ref[0:T, :] * dw_ref[0:1, :]
    for k in range(1, K):
        acc = acc + pad_ref[k:k + T, :] * dw_ref[k:k + 1, :]
    h = acc + db_ref[...]
    # BatchNorm (eval mode, running stats) + swish
    h = (h - bnm_ref[...]) * jax.lax.rsqrt(bnv_ref[...] + bn_eps) * bng_ref[...] + bnb_ref[...]
    h = h * jax.nn.sigmoid(h)
    # pointwise conv 2 + residual
    h = jnp.dot(h.astype(BF16), w2_ref[...],
                preferred_element_type=jnp.float32) + b2_ref[...]
    o_ref[0] = (x + h).astype(o_ref.dtype)


def conv_module_pallas(x3, p, ksize):
    B, T, D = x3.shape
    pad = (ksize - 1) // 2
    full = lambda s: pl.BlockSpec(s, lambda b: (0, 0))
    blk = pl.BlockSpec((1, T, D), lambda b: (b, 0, 0))
    # TODO(synk): for very long T on v7x, time-tile (grid=(B, T//tt)) with a
    #   (K-1)/2 halo instead of whole-sequence-per-batch residency.
    return pl.pallas_call(
        functools.partial(_conv_module_kernel, K=ksize, eps=LN_EPS, bn_eps=BN_EPS),
        out_shape=jax.ShapeDtypeStruct((B, T, D), F32),
        grid=(B,),
        in_specs=[blk,
                  full((1, D)), full((1, D)),
                  full((D, 2 * D)), full((1, 2 * D)),
                  full((ksize, D)), full((1, D)),
                  full((1, D)), full((1, D)), full((1, D)), full((1, D)),
                  full((D, D)), full((1, D))],
        out_specs=blk,
        scratch_shapes=[pltpu.VMEM((T + 2 * pad, D), jnp.float32)],
        input_output_aliases={0: 0},
        compiler_params=_cparams("parallel"),
    )(x3,
      p["ln3_g"].reshape(1, D), p["ln3_b"].reshape(1, D),
      p["pw1_w"], p["pw1_b"].reshape(1, 2 * D),
      p["dw_w"], p["dw_b"].reshape(1, D),
      p["bn_g"].reshape(1, D), p["bn_b"].reshape(1, D),
      p["bn_m"].reshape(1, D), p["bn_v"].reshape(1, D),
      p["pw2_w"], p["pw2_b"].reshape(1, D))


# ----------------------------------------------------------------------------
# Fused output conv (k=2,p=1): in-kernel halo (two adim-wide dots) + LN + ReLU
# out[t] = h[t-1] @ w0 + h[t] @ w1 + b  for t in [0, T],  h[-1]=h[T]=0
# ----------------------------------------------------------------------------
def _outconv_kernel(x_ref, w0_ref, w1_ref, b_ref, g_ref, be_ref, o_ref, *, eps):
    x = x_ref[0].astype(BF16)                               # (T, D)
    a = jnp.dot(x, w0_ref[...], preferred_element_type=jnp.float32)  # h[t-1] tap
    c = jnp.dot(x, w1_ref[...], preferred_element_type=jnp.float32)  # h[t]   tap
    n = a.shape[1]
    zrow = jnp.zeros((1, n), jnp.float32)
    y = (jnp.concatenate([c, zrow], axis=0)
         + jnp.concatenate([zrow, a], axis=0) + b_ref[...])           # (T+1, Cout)
    y = _ln(y, g_ref[...], be_ref[...], eps)
    o_ref[0] = jnp.maximum(y, 0.0).astype(o_ref.dtype)


def outconv_pallas(h3, w0, w1, b, g, be):
    B, T, D = h3.shape
    N = w0.shape[1]
    full = lambda s: pl.BlockSpec(s, lambda bi: (0, 0))
    return pl.pallas_call(
        functools.partial(_outconv_kernel, eps=LN_EPS),
        out_shape=jax.ShapeDtypeStruct((B, T + 1, N), F32),
        grid=(B,),
        in_specs=[pl.BlockSpec((1, T, D), lambda bi: (bi, 0, 0)),
                  full((D, N)), full((D, N)),
                  full((1, N)), full((1, N)), full((1, N))],
        out_specs=pl.BlockSpec((1, T + 1, N), lambda bi: (bi, 0, 0)),
        compiler_params=_cparams("parallel"),
    )(h3, w0, w1, b.reshape(1, N), g.reshape(1, N), be.reshape(1, N))


# ----------------------------------------------------------------------------
# Parameters
# ----------------------------------------------------------------------------
def sinusoidal_pe(max_len, d):
    pos = np.arange(max_len, dtype=np.float32)[:, None]
    div = np.exp(np.arange(0, d, 2, dtype=np.float32) * -(math.log(10000.0) / d))
    pe = np.zeros((max_len, d), np.float32)
    pe[:, 0::2] = np.sin(pos * div)
    pe[:, 1::2] = np.cos(pos * div)
    return jnp.asarray(pe)


def init_params(key, *, idim, adim, eunits, aheads, ksize, n_class, elayers,
                max_len=512):
    # NOTE: for best MXU/store efficiency on v6e/v7x, production adim, eunits,
    # 3*adim and adim*n_class should be multiples of 128 and dh >= 128.
    cnt = [0]

    def nxt():
        cnt[0] += 1
        return jax.random.fold_in(key, cnt[0])

    def W(shape, scale=0.05):
        return jax.random.normal(nxt(), shape, F32) * scale

    Wb = lambda shape: W(shape).astype(BF16)    # matmul weights stored in bf16
    zeros = lambda s: jnp.zeros(s, F32)
    ones = lambda s: jnp.ones(s, F32)

    dh = adim // aheads
    qscale = 1.0 / math.sqrt(dh)

    p = {
        "in_w": Wb((idim, adim)), "in_b": zeros((adim,)),
        "in_ln_g": ones((adim,)), "in_ln_b": zeros((adim,)),
        "pe": sinusoidal_pe(max_len, adim),
        "blocks": [],
    }
    for _ in range(elayers):
        wq, wk, wv = W((adim, adim)), W((adim, adim)), W((adim, adim))
        bq, bk, bv = zeros((adim,)), zeros((adim,)), zeros((adim,))
        # head-major [q|k|v] column grouping, 1/sqrt(dh) folded into Q weights/bias
        wparts, bparts = [], []
        for h in range(aheads):
            sl = slice(h * dh, (h + 1) * dh)
            wparts += [wq[:, sl] * qscale, wk[:, sl], wv[:, sl]]
            bparts += [bq[sl] * qscale, bk[sl], bv[sl]]
        wqkv_hm = jnp.concatenate(wparts, axis=1).astype(BF16)     # (adim, 3*adim)
        bqkv_hm = jnp.concatenate(bparts)                           # (3*adim,)
        wo = W((adim, adim))
        blk = {
            "ln1_g": ones((adim,)), "ln1_b": zeros((adim,)),
            "ff1_w1": Wb((adim, eunits)), "ff1_b1": zeros((eunits,)),
            "ff1_w2": Wb((eunits, adim)), "ff1_b2": zeros((adim,)),
            "ln2_g": ones((adim,)), "ln2_b": zeros((adim,)),
            "wqkv_hm": wqkv_hm, "bqkv_hm": bqkv_hm,
            "wo3": wo.reshape(aheads, dh, adim).astype(BF16),       # (H, dh, adim)
            "bo": zeros((adim,)),
            "ln3_g": ones((adim,)), "ln3_b": zeros((adim,)),
            "pw1_w": Wb((adim, 2 * adim)), "pw1_b": zeros((2 * adim,)),
            "dw_w": W((ksize, adim)), "dw_b": zeros((adim,)),
            "bn_g": ones((adim,)), "bn_b": zeros((adim,)),
            "bn_m": zeros((adim,)), "bn_v": ones((adim,)),
            "pw2_w": Wb((adim, adim)), "pw2_b": zeros((adim,)),
            "ln4_g": ones((adim,)), "ln4_b": zeros((adim,)),
            "ff2_w1": Wb((adim, eunits)), "ff2_b1": zeros((eunits,)),
            "ff2_w2": Wb((eunits, adim)), "ff2_b2": zeros((adim,)),
            "ln5_g": ones((adim,)), "ln5_b": zeros((adim,)),
        }
        p["blocks"].append(blk)

    # Conv2d(adim, adim*n_class, kernel_size=2, padding=1): weight (Cout, Cin, 2, 2).
    # Output width slice 0 only sees kernel column kw=1 (the real input column).
    conv_w_full = W((adim * n_class, adim, 2, 2))
    p["conv_w0"] = jnp.transpose(conv_w_full[:, :, 0, 1]).astype(BF16)   # h[t-1] tap
    p["conv_w1"] = jnp.transpose(conv_w_full[:, :, 1, 1]).astype(BF16)   # h[t]   tap
    p["conv_b"] = zeros((adim * n_class,))
    p["out_ln_g"] = ones((adim * n_class,))
    p["out_ln_b"] = zeros((adim * n_class,))
    return p


# ----------------------------------------------------------------------------
# Forward
# ----------------------------------------------------------------------------
def conformer_block(x2, p, *, B, T, aheads, ksize):
    M, D = x2.shape

    # Feed-forward module 1 (macaron half-step): one fused kernel on (M, D).
    x2 = ff_module_pallas(x2, p["ln1_g"], p["ln1_b"],
                          p["ff1_w1"], p["ff1_b1"], p["ff1_w2"], p["ff1_b2"])

    # MHSA: fused LN+QKV projection (head-major bf16), then head-batched
    # attention + output projection + residual.
    x3 = x2.reshape(B, T, D)
    qkv_hm = ln_qkv_headmajor_pallas(x3, p["ln2_g"], p["ln2_b"],
                                     p["wqkv_hm"], p["bqkv_hm"], aheads)
    x3 = mhsa_pallas(qkv_hm, x3, p["wo3"], p["bo"])

    # Convolution module: one fused kernel per batch.
    x2 = conv_module_pallas(x3, p, ksize).reshape(M, D)

    # Feed-forward module 2 + final block LayerNorm fused in its epilogue.
    x2 = ff_module_pallas(x2, p["ln4_g"], p["ln4_b"],
                          p["ff2_w1"], p["ff2_b1"], p["ff2_w2"], p["ff2_b2"],
                          post_ln=(p["ln5_g"], p["ln5_b"]))
    return x2


def conformer_separator_forward(x, params, *, adim, aheads, ksize, n_class,
                                mask=None):
    B, T, idim = x.shape
    assert T <= params["pe"].shape[0], "T exceeds positional-encoding table length"

    # input_layer: Linear -> LayerNorm -> Dropout(id) -> ReLU -> PositionalEncoding
    h = input_layer_pallas(x, params["in_w"], params["in_b"],
                           params["in_ln_g"], params["in_ln_b"],
                           params["pe"], adim)

    # conformer blocks
    h2 = h.reshape(B * T, adim)
    for blk in params["blocks"]:
        h2 = conformer_block(h2, blk, B=B, T=T, aheads=aheads, ksize=ksize)
    h3 = h2.reshape(B, T, adim)

    # Output Conv2d(k=2,p=1) + LayerNorm + ReLU, halo built in-kernel
    # (no wrapper-side pad/concat HBM round trip).
    y = outconv_pallas(h3, params["conv_w0"], params["conv_w1"], params["conv_b"],
                       params["out_ln_g"], params["out_ln_b"])  # (B, T+1, adim*n_class)

    out = y.reshape(B, T + 1, adim, n_class)
    out = jnp.transpose(out, (0, 3, 1, 2))                    # (B, n_class, T+1, adim)
    return out, mask


# ----------------------------------------------------------------------------
# Main
# ----------------------------------------------------------------------------
if __name__ == "__main__":
    # small config consistent with the module (adim % aheads == 0)
    idim, adim, eunits, aheads, ksize, n_class, elayers = 16, 32, 64, 4, 7, 3, 2
    B, T = 2, 8

    key = jax.random.PRNGKey(0)
    k_in, k_par = jax.random.split(key)
    x = jax.random.normal(k_in, (B, T, idim), F32)
    params = init_params(k_par, idim=idim, adim=adim, eunits=eunits,
                         aheads=aheads, ksize=ksize, n_class=n_class,
                         elayers=elayers)

    fwd = jax.jit(functools.partial(conformer_separator_forward,
                                    adim=adim, aheads=aheads, ksize=ksize,
                                    n_class=n_class))
    out, mask = fwd(x, params)
    out = jax.block_until_ready(out)

    assert out.shape == (B, n_class, T + 1, adim), out.shape
    assert out.dtype == F32
    assert mask is None
    assert bool(jnp.all(jnp.isfinite(out)))
    print("KERNEL_OK")
</pallas_src>

<mosaic_0001>
module attributes {stable_mosaic.version = 11 : i64} {
  func.func @_ff_kernel(%arg0: i32, %arg1: memref<16x32xf32, #tpu.memory_space<vmem>>, %arg2: memref<1x32xf32, #tpu.memory_space<vmem>>, %arg3: memref<1x32xf32, #tpu.memory_space<vmem>>, %arg4: memref<32x64xbf16, #tpu.memory_space<vmem>>, %arg5: memref<1x64xf32, #tpu.memory_space<vmem>>, %arg6: memref<64x32xbf16, #tpu.memory_space<vmem>>, %arg7: memref<1x32xf32, #tpu.memory_space<vmem>>, %arg8: memref<16x32xf32, #tpu.memory_space<vmem>>) attributes {dimension_semantics = [#tpu.dimension_semantics<parallel>], iteration_bounds = array<i64: 1>, scalar_prefetch = 0 : i64, scratch_operands = 0 : i64, tpu.core_type = #tpu.core_type<tc>, window_params = [{transform_indices = @transform_0, window_bounds = array<i64: 16, 32>}, {pipeline_mode = #tpu.pipeline_mode<synchronous>, transform_indices = @transform_1, window_bounds = array<i64: 1, 32>}, {pipeline_mode = #tpu.pipeline_mode<synchronous>, transform_indices = @transform_2, window_bounds = array<i64: 1, 32>}, {pipeline_mode = #tpu.pipeline_mode<synchronous>, transform_indices = @transform_3, window_bounds = array<i64: 32, 64>}, {pipeline_mode = #tpu.pipeline_mode<synchronous>, transform_indices = @transform_4, window_bounds = array<i64: 1, 64>}, {pipeline_mode = #tpu.pipeline_mode<synchronous>, transform_indices = @transform_5, window_bounds = array<i64: 64, 32>}, {pipeline_mode = #tpu.pipeline_mode<synchronous>, transform_indices = @transform_6, window_bounds = array<i64: 1, 32>}, {transform_indices = @transform_7, window_bounds = array<i64: 16, 32>}]} {
    %c0 = arith.constant 0 : index
    %c0_0 = arith.constant 0 : index
    %0 = vector.load %arg1[%c0, %c0_0] : memref<16x32xf32, #tpu.memory_space<vmem>>, vector<16x32xf32>
    %c0_1 = arith.constant 0 : index
    %c0_2 = arith.constant 0 : index
    %1 = vector.load %arg2[%c0_1, %c0_2] : memref<1x32xf32, #tpu.memory_space<vmem>>, vector<1x32xf32>
    %c0_3 = arith.constant 0 : index
    %c0_4 = arith.constant 0 : index
    %2 = vector.load %arg3[%c0_3, %c0_4] : memref<1x32xf32, #tpu.memory_space<vmem>>, vector<1x32xf32>
    %cst = arith.constant dense<0.000000e+00> : vector<16xf32>
    %3 = vector.multi_reduction <add>, %0, %cst [1] : vector<16x32xf32> to vector<16xf32>
    %4 = vector.shape_cast %3 : vector<16xf32> to vector<16x1xf32>
    %cst_5 = arith.constant 3.200000e+01 : f32
    %5 = vector.broadcast %cst_5 : f32 to vector<16x1xf32>
    %6 = arith.divf %4, %5 : vector<16x1xf32>
    %7 = vector.broadcast %6 : vector<16x1xf32> to vector<16x32xf32>
    %8 = arith.subf %0, %7 : vector<16x32xf32>
    %9 = arith.mulf %8, %8 : vector<16x32xf32>
    %cst_6 = arith.constant dense<0.000000e+00> : vector<16xf32>
    %10 = vector.multi_reduction <add>, %9, %cst_6 [1] : vector<16x32xf32> to vector<16xf32>
    %11 = vector.shape_cast %10 : vector<16xf32> to vector<16x1xf32>
    %cst_7 = arith.constant 3.200000e+01 : f32
    %12 = vector.broadcast %cst_7 : f32 to vector<16x1xf32>
    %13 = arith.divf %11, %12 : vector<16x1xf32>
    %cst_8 = arith.constant 9.99999974E-6 : f32
    %14 = vector.broadcast %cst_8 : f32 to vector<16x1xf32>
    %15 = arith.addf %13, %14 : vector<16x1xf32>
    %16 = math.rsqrt %15 : vector<16x1xf32>
    %17 = vector.broadcast %16 : vector<16x1xf32> to vector<16x32xf32>
    %18 = arith.mulf %8, %17 : vector<16x32xf32>
    %19 = vector.broadcast %1 : vector<1x32xf32> to vector<16x32xf32>
    %20 = arith.mulf %18, %19 : vector<16x32xf32>
    %21 = vector.broadcast %2 : vector<1x32xf32> to vector<16x32xf32>
    %22 = arith.addf %20, %21 : vector<16x32xf32>
    %23 = arith.truncf %22 : vector<16x32xf32> to vector<16x32xbf16>
    %c0_9 = arith.constant 0 : index
    %c0_10 = arith.constant 0 : index
    %24 = vector.load %arg4[%c0_9, %c0_10] : memref<32x64xbf16, #tpu.memory_space<vmem>>, vector<32x64xbf16>
    %cst_11 = arith.constant dense<0.000000e+00> : vector<16x64xf32>
    %25 = tpu.matmul %23, %24, %cst_11 {dimension_numbers = #tpu.dot_dimension_numbers<[1], [0], [0], [1], [0, 0, 1, 1], [], []>} : vector<16x32xbf16>, vector<32x64xbf16>, vector<16x64xf32> -> vector<16x64xf32>
    %c0_12 = arith.constant 0 : index
    %c0_13 = arith.constant 0 : index
    %26 = vector.load %arg5[%c0_12, %c0_13] : memref<1x64xf32, #tpu.memory_space<vmem>>, vector<1x64xf32>
    %27 = vector.broadcast %26 : vector<1x64xf32> to vector<16x64xf32>
    %28 = arith.addf %25, %27 : vector<16x64xf32>
    %29 = arith.negf %28 : vector<16x64xf32>
    %30 = math.exp %29 : vector<16x64xf32>
    %cst_14 = arith.constant 1.000000e+00 : f32
    %31 = vector.broadcast %cst_14 : f32 to vector<16x64xf32>
    %32 = arith.addf %31, %30 : vector<16x64xf32>
    %33 = arith.divf %31, %32 : vector<16x64xf32>
    %34 = arith.mulf %28, %33 : vector<16x64xf32>
    %35 = arith.truncf %34 : vector<16x64xf32> to vector<16x64xbf16>
    %c0_15 = arith.constant 0 : index
    %c0_16 = arith.constant 0 : index
    %36 = vector.load %arg6[%c0_15, %c0_16] : memref<64x32xbf16, #tpu.memory_space<vmem>>, vector<64x32xbf16>
    %cst_17 = arith.constant dense<0.000000e+00> : vector<16x32xf32>
    %37 = tpu.matmul %35, %36, %cst_17 {dimension_numbers = #tpu.dot_dimension_numbers<[1], [0], [0], [1], [0, 0, 1, 1], [], []>} : vector<16x64xbf16>, vector<64x32xbf16>, vector<16x32xf32> -> vector<16x32xf32>
    %c0_18 = arith.constant 0 : index
    %c0_19 = arith.constant 0 : index
    %38 = vector.load %arg7[%c0_18, %c0_19] : memref<1x32xf32, #tpu.memory_space<vmem>>, vector<1x32xf32>
    %39 = vector.broadcast %38 : vector<1x32xf32> to vector<16x32xf32>
    %40 = arith.addf %37, %39 : vector<16x32xf32>
    %cst_20 = arith.constant 5.000000e-01 : f32
    %41 = vector.broadcast %cst_20 : f32 to vector<16x32xf32>
    %42 = arith.mulf %41, %40 : vector<16x32xf32>
    %43 = arith.addf %0, %42 : vector<16x32xf32>
    %c0_21 = arith.constant 0 : index
    %c0_22 = arith.constant 0 : index
    %44 = vector.load %arg8[%c0_21, %c0_22] : memref<16x32xf32, #tpu.memory_space<vmem>>, vector<16x32xf32>
    tpu.vector_store %arg8[%c0_21, %c0_22], %43 {strides = array<i32>} : memref<16x32xf32, #tpu.memory_space<vmem>>, vector<16x32xf32>,
    return
  }
  func.func @transform_0(%arg0: i32) -> (i32, i32) {
    %c0_i32 = arith.constant 0 : i32
    %c0_i32_0 = arith.constant 0 : i32
    return %arg0, %c0_i32 : i32, i32
  }
  func.func @transform_1(%arg0: i32) -> (i32, i32) {
    %c0_i32 = arith.constant 0 : i32
    %c0_i32_0 = arith.constant 0 : i32
    %c0_i32_1 = arith.constant 0 : i32
    return %c0_i32, %c0_i32_0 : i32, i32
  }
  func.func @transform_2(%arg0: i32) -> (i32, i32) {
    %c0_i32 = arith.constant 0 : i32
    %c0_i32_0 = arith.constant 0 : i32
    %c0_i32_1 = arith.constant 0 : i32
    return %c0_i32, %c0_i32_0 : i32, i32
  }
  func.func @transform_3(%arg0: i32) -> (i32, i32) {
    %c0_i32 = arith.constant 0 : i32
    %c0_i32_0 = arith.constant 0 : i32
    %c0_i32_1 = arith.constant 0 : i32
    return %c0_i32, %c0_i32_0 : i32, i32
  }
  func.func @transform_4(%arg0: i32) -> (i32, i32) {
    %c0_i32 = arith.constant 0 : i32
    %c0_i32_0 = arith.constant 0 : i32
    %c0_i32_1 = arith.constant 0 : i32
    return %c0_i32, %c0_i32_0 : i32, i32
  }
  func.func @transform_5(%arg0: i32) -> (i32, i32) {
    %c0_i32 = arith.constant 0 : i32
    %c0_i32_0 = arith.constant 0 : i32
    %c0_i32_1 = arith.constant 0 : i32
    return %c0_i32, %c0_i32_0 : i32, i32
  }
  func.func @transform_6(%arg0: i32) -> (i32, i32) {
    %c0_i32 = arith.constant 0 : i32
    %c0_i32_0 = arith.constant 0 : i32
    %c0_i32_1 = arith.constant 0 : i32
    return %c0_i32, %c0_i32_0 : i32, i32
  }
  func.func @transform_7(%arg0: i32) -> (i32, i32) {
    %c0_i32 = arith.constant 0 : i32
    %c0_i32_0 = arith.constant 0 : i32
    return %arg0, %c0_i32 : i32, i32
  }
}

module attributes {stable_mosaic.version = 11 : i64} {
  func.func @_input_kernel(%arg0: i32, %arg1: i32, %arg2: memref<1x8x16xf32, #tpu.memory_space<vmem>>, %arg3: memref<16x32xbf16, #tpu.memory_space<vmem>>, %arg4: memref<1x32xf32, #tpu.memory_space<vmem>>, %arg5: memref<1x32xf32, #tpu.memory_space<vmem>>, %arg6: memref<1x32xf32, #tpu.memory_space<vmem>>, %arg7: memref<8x32xf32, #tpu.memory_space<vmem>>, %arg8: memref<1x8x32xf32, #tpu.memory_space<vmem>>) attributes {dimension_semantics = [#tpu.dimension_semantics<parallel>, #tpu.dimension_semantics<parallel>], iteration_bounds = array<i64: 2, 1>, scalar_prefetch = 0 : i64, scratch_operands = 0 : i64, tpu.core_type = #tpu.core_type<tc>, window_params = [{transform_indices = @transform_0, window_bounds = array<i64: 1, 8, 16>}, {pipeline_mode = #tpu.pipeline_mode<synchronous>, transform_indices = @transform_1, window_bounds = array<i64: 16, 32>}, {pipeline_mode = #tpu.pipeline_mode<synchronous>, transform_indices = @transform_2, window_bounds = array<i64: 1, 32>}, {pipeline_mode = #tpu.pipeline_mode<synchronous>, transform_indices = @transform_3, window_bounds = array<i64: 1, 32>}, {pipeline_mode = #tpu.pipeline_mode<synchronous>, transform_indices = @transform_4, window_bounds = array<i64: 1, 32>}, {transform_indices = @transform_5, window_bounds = array<i64: 8, 32>}, {transform_indices = @transform_6, window_bounds = array<i64: 1, 8, 32>}]} {
    %c0 = arith.constant 0 : index
    %c0_0 = arith.constant 0 : index
    %c0_1 = arith.constant 0 : index
    %0 = vector.load %arg2[%c0, %c0_0, %c0_1] : memref<1x8x16xf32, #tpu.memory_space<vmem>>, vector<1x8x16xf32>
    %1 = vector.shape_cast %0 : vector<1x8x16xf32> to vector<8x16xf32>
    %2 = arith.truncf %1 : vector<8x16xf32> to vector<8x16xbf16>
    %c0_2 = arith.constant 0 : index
    %c0_3 = arith.constant 0 : index
    %3 = vector.load %arg3[%c0_2, %c0_3] : memref<16x32xbf16, #tpu.memory_space<vmem>>, vector<16x32xbf16>
    %cst = arith.constant dense<0.000000e+00> : vector<8x32xf32>
    %4 = tpu.matmul %2, %3, %cst {dimension_numbers = #tpu.dot_dimension_numbers<[1], [0], [0], [1], [0, 0, 1, 1], [], []>} : vector<8x16xbf16>, vector<16x32xbf16>, vector<8x32xf32> -> vector<8x32xf32>
    %c0_4 = arith.constant 0 : index
    %c0_5 = arith.constant 0 : index
    %5 = vector.load %arg4[%c0_4, %c0_5] : memref<1x32xf32, #tpu.memory_space<vmem>>, vector<1x32xf32>
    %6 = vector.broadcast %5 : vector<1x32xf32> to vector<8x32xf32>
    %7 = arith.addf %4, %6 : vector<8x32xf32>
    %c0_6 = arith.constant 0 : index
    %c0_7 = arith.constant 0 : index
    %8 = vector.load %arg5[%c0_6, %c0_7] : memref<1x32xf32, #tpu.memory_space<vmem>>, vector<1x32xf32>
    %c0_8 = arith.constant 0 : index
    %c0_9 = arith.constant 0 : index
    %9 = vector.load %arg6[%c0_8, %c0_9] : memref<1x32xf32, #tpu.memory_space<vmem>>, vector<1x32xf32>
    %cst_10 = arith.constant dense<0.000000e+00> : vector<8xf32>
    %10 = vector.multi_reduction <add>, %7, %cst_10 [1] : vector<8x32xf32> to vector<8xf32>
    %11 = vector.shape_cast %10 : vector<8xf32> to vector<8x1xf32>
    %cst_11 = arith.constant 3.200000e+01 : f32
    %12 = vector.broadcast %cst_11 : f32 to vector<8x1xf32>
    %13 = arith.divf %11, %12 : vector<8x1xf32>
    %14 = vector.broadcast %13 : vector<8x1xf32> to vector<8x32xf32>
    %15 = arith.subf %7, %14 : vector<8x32xf32>
    %16 = arith.mulf %15, %15 : vector<8x32xf32>
    %cst_12 = arith.constant dense<0.000000e+00> : vector<8xf32>
    %17 = vector.multi_reduction <add>, %16, %cst_12 [1] : vector<8x32xf32> to vector<8xf32>
    %18 = vector.shape_cast %17 : vector<8xf32> to vector<8x1xf32>
    %cst_13 = arith.constant 3.200000e+01 : f32
    %19 = vector.broadcast %cst_13 : f32 to vector<8x1xf32>
    %20 = arith.divf %18, %19 : vector<8x1xf32>
    %cst_14 = arith.constant 9.99999974E-6 : f32
    %21 = vector.broadcast %cst_14 : f32 to vector<8x1xf32>
    %22 = arith.addf %20, %21 : vector<8x1xf32>
    %23 = math.rsqrt %22 : vector<8x1xf32>
    %24 = vector.broadcast %23 : vector<8x1xf32> to vector<8x32xf32>
    %25 = arith.mulf %15, %24 : vector<8x32xf32>
    %26 = vector.broadcast %8 : vector<1x32xf32> to vector<8x32xf32>
    %27 = arith.mulf %25, %26 : vector<8x32xf32>
    %28 = vector.broadcast %9 : vector<1x32xf32> to vector<8x32xf32>
    %29 = arith.addf %27, %28 : vector<8x32xf32>
    %cst_15 = arith.constant 0.000000e+00 : f32
    %30 = vector.broadcast %cst_15 : f32 to vector<8x32xf32>
    %31 = arith.maximumf %29, %30 : vector<8x32xf32>
    %cst_16 = arith.constant 5.65685415 : f32
    %32 = vector.broadcast %cst_16 : f32 to vector<8x32xf32>
    %33 = arith.mulf %31, %32 : vector<8x32xf32>
    %c0_17 = arith.constant 0 : index
    %c0_18 = arith.constant 0 : index
    %34 = vector.load %arg7[%c0_17, %c0_18] : memref<8x32xf32, #tpu.memory_space<vmem>>, vector<8x32xf32>
    %35 = arith.addf %33, %34 : vector<8x32xf32>
    %c0_19 = arith.constant 0 : index
    %c0_20 = arith.constant 0 : index
    %c0_21 = arith.constant 0 : index
    %36 = vector.load %arg8[%c0_19, %c0_20, %c0_21] : memref<1x8x32xf32, #tpu.memory_space<vmem>>, vector<1x8x32xf32>
    %37 = vector.shape_cast %36 : vector<1x8x32xf32> to vector<8x32xf32>
    %38 = vector.shape_cast %35 : vector<8x32xf32> to vector<1x8x32xf32>
    tpu.vector_store %arg8[%c0_19, %c0_20, %c0_21], %38 {strides = array<i32>} : memref<1x8x32xf32, #tpu.memory_space<vmem>>, vector<1x8x32xf32>,
    return
  }
  func.func @transform_0(%arg0: i32, %arg1: i32) -> (i32, i32, i32) {
    %c0_i32 = arith.constant 0 : i32
    %c0_i32_0 = arith.constant 0 : i32
    return %arg0, %arg1, %c0_i32 : i32, i32, i32
  }
  func.func @transform_1(%arg0: i32, %arg1: i32) -> (i32, i32) {
    %c0_i32 = arith.constant 0 : i32
    %c0_i32_0 = arith.constant 0 : i32
    %c0_i32_1 = arith.constant 0 : i32
    return %c0_i32, %c0_i32_0 : i32, i32
  }
  func.func @transform_2(%arg0: i32, %arg1: i32) -> (i32, i32) {
    %c0_i32 = arith.constant 0 : i32
    %c0_i32_0 = arith.constant 0 : i32
    %c0_i32_1 = arith.constant 0 : i32
    return %c0_i32, %c0_i32_0 : i32, i32
  }
  func.func @transform_3(%arg0: i32, %arg1: i32) -> (i32, i32) {
    %c0_i32 = arith.constant 0 : i32
    %c0_i32_0 = arith.constant 0 : i32
    %c0_i32_1 = arith.constant 0 : i32
    return %c0_i32, %c0_i32_0 : i32, i32
  }
  func.func @transform_4(%arg0: i32, %arg1: i32) -> (i32, i32) {
    %c0_i32 = arith.constant 0 : i32
    %c0_i32_0 = arith.constant 0 : i32
    %c0_i32_1 = arith.constant 0 : i32
    return %c0_i32, %c0_i32_0 : i32, i32
  }
  func.func @transform_5(%arg0: i32, %arg1: i32) -> (i32, i32) {
    %c0_i32 = arith.constant 0 : i32
    %c0_i32_0 = arith.constant 0 : i32
    return %arg1, %c0_i32 : i32, i32
  }
  func.func @transform_6(%arg0: i32, %arg1: i32) -> (i32, i32, i32) {
    %c0_i32 = arith.constant 0 : i32
    %c0_i32_0 = arith.constant 0 : i32
    return %arg0, %arg1, %c0_i32 : i32, i32, i32
  }
}

module attributes {stable_mosaic.version = 11 : i64} {
  func.func @_ln_qkv_kernel(%arg0: i32, %arg1: i32, %arg2: memref<1x8x32xf32, #tpu.memory_space<vmem>>, %arg3: memref<1x32xf32, #tpu.memory_space<vmem>>, %arg4: memref<1x32xf32, #tpu.memory_space<vmem>>, %arg5: memref<32x96xbf16, #tpu.memory_space<vmem>>, %arg6: memref<1x96xf32, #tpu.memory_space<vmem>>, %arg7: memref<1x4x8x24xbf16, #tpu.memory_space<vmem>>) attributes {dimension_semantics = [#tpu.dimension_semantics<parallel>, #tpu.dimension_semantics<parallel>], iteration_bounds = array<i64: 2, 1>, scalar_prefetch = 0 : i64, scratch_operands = 0 : i64, tpu.core_type = #tpu.core_type<tc>, window_params = [{transform_indices = @transform_0, window_bounds = array<i64: 1, 8, 32>}, {pipeline_mode = #tpu.pipeline_mode<synchronous>, transform_indices = @transform_1, window_bounds = array<i64: 1, 32>}, {pipeline_mode = #tpu.pipeline_mode<synchronous>, transform_indices = @transform_2, window_bounds = array<i64: 1, 32>}, {pipeline_mode = #tpu.pipeline_mode<synchronous>, transform_indices = @transform_3, window_bounds = array<i64: 32, 96>}, {pipeline_mode = #tpu.pipeline_mode<synchronous>, transform_indices = @transform_4, window_bounds = array<i64: 1, 96>}, {transform_indices = @transform_5, window_bounds = array<i64: 1, 4, 8, 24>}]} {
    %c0 = arith.constant 0 : index
    %c0_0 = arith.constant 0 : index
    %c0_1 = arith.constant 0 : index
    %0 = vector.load %arg2[%c0, %c0_0, %c0_1] : memref<1x8x32xf32, #tpu.memory_space<vmem>>, vector<1x8x32xf32>
    %1 = vector.shape_cast %0 : vector<1x8x32xf32> to vector<8x32xf32>
    %c0_2 = arith.constant 0 : index
    %c0_3 = arith.constant 0 : index
    %2 = vector.load %arg3[%c0_2, %c0_3] : memref<1x32xf32, #tpu.memory_space<vmem>>, vector<1x32xf32>
    %c0_4 = arith.constant 0 : index
    %c0_5 = arith.constant 0 : index
    %3 = vector.load %arg4[%c0_4, %c0_5] : memref<1x32xf32, #tpu.memory_space<vmem>>, vector<1x32xf32>
    %cst = arith.constant dense<0.000000e+00> : vector<8xf32>
    %4 = vector.multi_reduction <add>, %1, %cst [1] : vector<8x32xf32> to vector<8xf32>
    %5 = vector.shape_cast %4 : vector<8xf32> to vector<8x1xf32>
    %cst_6 = arith.constant 3.200000e+01 : f32
    %6 = vector.broadcast %cst_6 : f32 to vector<8x1xf32>
    %7 = arith.divf %5, %6 : vector<8x1xf32>
    %8 = vector.broadcast %7 : vector<8x1xf32> to vector<8x32xf32>
    %9 = arith.subf %1, %8 : vector<8x32xf32>
    %10 = arith.mulf %9, %9 : vector<8x32xf32>
    %cst_7 = arith.constant dense<0.000000e+00> : vector<8xf32>
    %11 = vector.multi_reduction <add>, %10, %cst_7 [1] : vector<8x32xf32> to vector<8xf32>
    %12 = vector.shape_cast %11 : vector<8xf32> to vector<8x1xf32>
    %cst_8 = arith.constant 3.200000e+01 : f32
    %13 = vector.broadcast %cst_8 : f32 to vector<8x1xf32>
    %14 = arith.divf %12, %13 : vector<8x1xf32>
    %cst_9 = arith.constant 9.99999974E-6 : f32
    %15 = vector.broadcast %cst_9 : f32 to vector<8x1xf32>
    %16 = arith.addf %14, %15 : vector<8x1xf32>
    %17 = math.rsqrt %16 : vector<8x1xf32>
    %18 = vector.broadcast %17 : vector<8x1xf32> to vector<8x32xf32>
    %19 = arith.mulf %9, %18 : vector<8x32xf32>
    %20 = vector.broadcast %2 : vector<1x32xf32> to vector<8x32xf32>
    %21 = arith.mulf %19, %20 : vector<8x32xf32>
    %22 = vector.broadcast %3 : vector<1x32xf32> to vector<8x32xf32>
    %23 = arith.addf %21, %22 : vector<8x32xf32>
    %24 = arith.truncf %23 : vector<8x32xf32> to vector<8x32xbf16>
    %c0_10 = arith.constant 0 : index
    %c0_11 = arith.constant 0 : index
    %25 = vector.load %arg5[%c0_10, %c0_11] : memref<32x96xbf16, #tpu.memory_space<vmem>>, vector<32x96xbf16>
    %cst_12 = arith.constant dense<0.000000e+00> : vector<8x96xf32>
    %26 = tpu.matmul %24, %25, %cst_12 {dimension_numbers = #tpu.dot_dimension_numbers<[1], [0], [0], [1], [0, 0, 1, 1], [], []>} : vector<8x32xbf16>, vector<32x96xbf16>, vector<8x96xf32> -> vector<8x96xf32>
    %c0_13 = arith.constant 0 : index
    %c0_14 = arith.constant 0 : index
    %27 = vector.load %arg6[%c0_13, %c0_14] : memref<1x96xf32, #tpu.memory_space<vmem>>, vector<1x96xf32>
    %28 = vector.broadcast %27 : vector<1x96xf32> to vector<8x96xf32>
    %29 = arith.addf %26, %28 : vector<8x96xf32>
    %30 = vector.extract_strided_slice %29 {offsets = [0, 0], sizes = [8, 24], strides = [1, 1]} : vector<8x96xf32> to vector<8x24xf32>
    %31 = arith.truncf %30 : vector<8x24xf32> to vector<8x24xbf16>
    %c0_15 = arith.constant 0 : index
    %c0_16 = arith.constant 0 : index
    %c0_17 = arith.constant 0 : index
    %c0_18 = arith.constant 0 : index
    %32 = vector.load %arg7[%c0_15, %c0_16, %c0_17, %c0_18] : memref<1x4x8x24xbf16, #tpu.memory_space<vmem>>, vector<1x1x8x24xbf16>
    %33 = vector.shape_cast %32 : vector<1x1x8x24xbf16> to vector<8x24xbf16>
    %34 = vector.shape_cast %31 : vector<8x24xbf16> to vector<1x1x8x24xbf16>
    tpu.vector_store %arg7[%c0_15, %c0_16, %c0_17, %c0_18], %34 {strides = array<i32>} : memref<1x4x8x24xbf16, #tpu.memory_space<vmem>>, vector<1x1x8x24xbf16>,
    %35 = vector.extract_strided_slice %29 {offsets = [0, 24], sizes = [8, 24], strides = [1, 1]} : vector<8x96xf32> to vector<8x24xf32>
    %36 = arith.truncf %35 : vector<8x24xf32> to vector<8x24xbf16>
    %c0_19 = arith.constant 0 : index
    %c1 = arith.constant 1 : index
    %c0_20 = arith.constant 0 : index
    %c0_21 = arith.constant 0 : index
    %37 = vector.load %arg7[%c0_19, %c1, %c0_20, %c0_21] : memref<1x4x8x24xbf16, #tpu.memory_space<vmem>>, vector<1x1x8x24xbf16>
    %38 = vector.shape_cast %37 : vector<1x1x8x24xbf16> to vector<8x24xbf16>
    %39 = vector.shape_cast %36 : vector<8x24xbf16> to vector<1x1x8x24xbf16>
    tpu.vector_store %arg7[%c0_19, %c1, %c0_20, %c0_21], %39 {strides = array<i32>} : memref<1x4x8x24xbf16, #tpu.memory_space<vmem>>, vector<1x1x8x24xbf16>,
    %40 = vector.extract_strided_slice %29 {offsets = [0, 48], sizes = [8, 24], strides = [1, 1]} : vector<8x96xf32> to vector<8x24xf32>
    %41 = arith.truncf %40 : vector<8x24xf32> to vector<8x24xbf16>
    %c0_22 = arith.constant 0 : index
    %c2 = arith.constant 2 : index
    %c0_23 = arith.constant 0 : index
    %c0_24 = arith.constant 0 : index
    %42 = vector.load %arg7[%c0_22, %c2, %c0_23, %c0_24] : memref<1x4x8x24xbf16, #tpu.memory_space<vmem>>, vector<1x1x8x24xbf16>
    %43 = vector.shape_cast %42 : vector<1x1x8x24xbf16> to vector<8x24xbf16>
    %44 = vector.shape_cast %41 : vector<8x24xbf16> to vector<1x1x8x24xbf16>
    tpu.vector_store %arg7[%c0_22, %c2, %c0_23, %c0_24], %44 {strides = array<i32>} : memref<1x4x8x24xbf16, #tpu.memory_space<vmem>>, vector<1x1x8x24xbf16>,
    %45 = vector.extract_strided_slice %29 {offsets = [0, 72], sizes = [8, 24], strides = [1, 1]} : vector<8x96xf32> to vector<8x24xf32>
    %46 = arith.truncf %45 : vector<8x24xf32> to vector<8x24xbf16>
    %c0_25 = arith.constant 0 : index
    %c3 = arith.constant 3 : index
    %c0_26 = arith.constant 0 : index
    %c0_27 = arith.constant 0 : index
    %47 = vector.load %arg7[%c0_25, %c3, %c0_26, %c0_27] : memref<1x4x8x24xbf16, #tpu.memory_space<vmem>>, vector<1x1x8x24xbf16>
    %48 = vector.shape_cast %47 : vector<1x1x8x24xbf16> to vector<8x24xbf16>
    %49 = vector.shape_cast %46 : vector<8x24xbf16> to vector<1x1x8x24xbf16>
    tpu.vector_store %arg7[%c0_25, %c3, %c0_26, %c0_27], %49 {strides = array<i32>} : memref<1x4x8x24xbf16, #tpu.memory_space<vmem>>, vector<1x1x8x24xbf16>,
    return
  }
  func.func @transform_0(%arg0: i32, %arg1: i32) -> (i32, i32, i32) {
    %c0_i32 = arith.constant 0 : i32
    %c0_i32_0 = arith.constant 0 : i32
    return %arg0, %arg1, %c0_i32 : i32, i32, i32
  }
  func.func @transform_1(%arg0: i32, %arg1: i32) -> (i32, i32) {
    %c0_i32 = arith.constant 0 : i32
    %c0_i32_0 = arith.constant 0 : i32
    %c0_i32_1 = arith.constant 0 : i32
    return %c0_i32, %c0_i32_0 : i32, i32
  }
  func.func @transform_2(%arg0: i32, %arg1: i32) -> (i32, i32) {
    %c0_i32 = arith.constant 0 : i32
    %c0_i32_0 = arith.constant 0 : i32
    %c0_i32_1 = arith.constant 0 : i32
    return %c0_i32, %c0_i32_0 : i32, i32
  }
  func.func @transform_3(%arg0: i32, %arg1: i32) -> (i32, i32) {
    %c0_i32 = arith.constant 0 : i32
    %c0_i32_0 = arith.constant 0 : i32
    %c0_i32_1 = arith.constant 0 : i32
    return %c0_i32, %c0_i32_0 : i32, i32
  }
  func.func @transform_4(%arg0: i32, %arg1: i32) -> (i32, i32) {
    %c0_i32 = arith.constant 0 : i32
    %c0_i32_0 = arith.constant 0 : i32
    %c0_i32_1 = arith.constant 0 : i32
    return %c0_i32, %c0_i32_0 : i32, i32
  }
  func.func @transform_5(%arg0: i32, %arg1: i32) -> (i32, i32, i32, i32) {
    %c0_i32 = arith.constant 0 : i32
    %c0_i32_0 = arith.constant 0 : i32
    %c0_i32_1 = arith.constant 0 : i32
    return %arg0, %c0_i32, %arg1, %c0_i32_0 : i32, i32, i32, i32
  }
}

module attributes {stable_mosaic.version = 11 : i64} {
  func.func @_mhsa_kernel(%arg0: i32, %arg1: memref<1x4x8x24xbf16, #tpu.memory_space<vmem>>, %arg2: memref<1x8x32xf32, #tpu.memory_space<vmem>>, %arg3: memref<4x8x32xbf16, #tpu.memory_space<vmem>>, %arg4: memref<1x32xf32, #tpu.memory_space<vmem>>, %arg5: memref<1x8x32xf32, #tpu.memory_space<vmem>>) attributes {dimension_semantics = [#tpu.dimension_semantics<parallel>], iteration_bounds = array<i64: 2>, scalar_prefetch = 0 : i64, scratch_operands = 0 : i64, tpu.core_type = #tpu.core_type<tc>, window_params = [{transform_indices = @transform_0, window_bounds = array<i64: 1, 4, 8, 24>}, {transform_indices = @transform_1, window_bounds = array<i64: 1, 8, 32>}, {pipeline_mode = #tpu.pipeline_mode<synchronous>, transform_indices = @transform_2, window_bounds = array<i64: 4, 8, 32>}, {pipeline_mode = #tpu.pipeline_mode<synchronous>, transform_indices = @transform_3, window_bounds = array<i64: 1, 32>}, {transform_indices = @transform_4, window_bounds = array<i64: 1, 8, 32>}]} {
    %c0 = arith.constant 0 : index
    %c0_0 = arith.constant 0 : index
    %c0_1 = arith.constant 0 : index
    %c0_2 = arith.constant 0 : index
    %0 = vector.load %arg1[%c0, %c0_0, %c0_1, %c0_2] : memref<1x4x8x24xbf16, #tpu.memory_space<vmem>>, vector<1x4x8x24xbf16>
    %1 = vector.shape_cast %0 : vector<1x4x8x24xbf16> to vector<4x8x24xbf16>
    %2 = vector.extract_strided_slice %1 {offsets = [0, 0, 0], sizes = [4, 8, 8], strides = [1, 1, 1]} : vector<4x8x24xbf16> to vector<4x8x8xbf16>
    %3 = vector.extract_strided_slice %1 {offsets = [0, 0, 8], sizes = [4, 8, 8], strides = [1, 1, 1]} : vector<4x8x24xbf16> to vector<4x8x8xbf16>
    %4 = vector.extract_strided_slice %1 {offsets = [0, 0, 16], sizes = [4, 8, 8], strides = [1, 1, 1]} : vector<4x8x24xbf16> to vector<4x8x8xbf16>
    %cst = arith.constant dense<0.000000e+00> : vector<4x8x8xf32>
    %5 = tpu.matmul %2, %3, %cst {dimension_numbers = #tpu.dot_dimension_numbers<[2], [2], [1], [1], [0, 0, 0, 1, 1, 1], [0], [0]>} : vector<4x8x8xbf16>, vector<4x8x8xbf16>, vector<4x8x8xf32> -> vector<4x8x8xf32>
    %cst_3 = arith.constant dense<0xFF800000> : vector<4x8xf32>
    %6 = vector.multi_reduction <maximumf>, %5, %cst_3 [2] : vector<4x8x8xf32> to vector<4x8xf32>
    %7 = vector.shape_cast %6 : vector<4x8xf32> to vector<4x8x1xf32>
    %8 = vector.broadcast %7 : vector<4x8x1xf32> to vector<4x8x8xf32>
    %9 = arith.subf %5, %8 : vector<4x8x8xf32>
    %10 = math.exp %9 : vector<4x8x8xf32>
    %cst_4 = arith.constant dense<0.000000e+00> : vector<4x8xf32>
    %11 = vector.multi_reduction <add>, %10, %cst_4 [2] : vector<4x8x8xf32> to vector<4x8xf32>
    %12 = vector.shape_cast %11 : vector<4x8xf32> to vector<4x8x1xf32>
    %13 = arith.truncf %10 : vector<4x8x8xf32> to vector<4x8x8xbf16>
    %cst_5 = arith.constant dense<0.000000e+00> : vector<4x8x8xf32>
    %14 = tpu.matmul %13, %4, %cst_5 {dimension_numbers = #tpu.dot_dimension_numbers<[2], [1], [1], [2], [0, 0, 0, 1, 1, 2], [0], [0]>} : vector<4x8x8xbf16>, vector<4x8x8xbf16>, vector<4x8x8xf32> -> vector<4x8x8xf32>
    %15 = tpu.reciprocal %12 {approx = true} : vector<4x8x1xf32> -> vector<4x8x1xf32>
    %16 = vector.broadcast %15 : vector<4x8x1xf32> to vector<4x8x8xf32>
    %17 = arith.mulf %14, %16 : vector<4x8x8xf32>
    %c0_6 = arith.constant 0 : index
    %c0_7 = arith.constant 0 : index
    %c0_8 = arith.constant 0 : index
    %18 = vector.load %arg2[%c0_6, %c0_7, %c0_8] : memref<1x8x32xf32, #tpu.memory_space<vmem>>, vector<1x8x32xf32>
    %19 = vector.shape_cast %18 : vector<1x8x32xf32> to vector<8x32xf32>
    %c0_9 = arith.constant 0 : index
    %c0_10 = arith.constant 0 : index
    %20 = vector.load %arg4[%c0_9, %c0_10] : memref<1x32xf32, #tpu.memory_space<vmem>>, vector<1x32xf32>
    %21 = vector.broadcast %20 : vector<1x32xf32> to vector<8x32xf32>
    %22 = arith.addf %19, %21 : vector<8x32xf32>
    %23 = vector.extract_strided_slice %17 {offsets = [0, 0, 0], sizes = [1, 8, 8], strides = [1, 1, 1]} : vector<4x8x8xf32> to vector<1x8x8xf32>
    %24 = vector.shape_cast %23 : vector<1x8x8xf32> to vector<8x8xf32>
    %25 = arith.truncf %24 : vector<8x8xf32> to vector<8x8xbf16>
    %c0_11 = arith.constant 0 : index
    %c0_12 = arith.constant 0 : index
    %c0_13 = arith.constant 0 : index
    %26 = vector.load %arg3[%c0_11, %c0_12, %c0_13] : memref<4x8x32xbf16, #tpu.memory_space<vmem>>, vector<1x8x32xbf16>
    %27 = vector.shape_cast %26 : vector<1x8x32xbf16> to vector<8x32xbf16>
    %cst_14 = arith.constant dense<0.000000e+00> : vector<8x32xf32>
    %28 = tpu.matmul %25, %27, %cst_14 {dimension_numbers = #tpu.dot_dimension_numbers<[1], [0], [0], [1], [0, 0, 1, 1], [], []>} : vector<8x8xbf16>, vector<8x32xbf16>, vector<8x32xf32> -> vector<8x32xf32>
    %29 = arith.addf %22, %28 : vector<8x32xf32>
    %30 = vector.extract_strided_slice %17 {offsets = [1, 0, 0], sizes = [1, 8, 8], strides = [1, 1, 1]} : vector<4x8x8xf32> to vector<1x8x8xf32>
    %31 = vector.shape_cast %30 : vector<1x8x8xf32> to vector<8x8xf32>
    %32 = arith.truncf %31 : vector<8x8xf32> to vector<8x8xbf16>
    %c1 = arith.constant 1 : index
    %c0_15 = arith.constant 0 : index
    %c0_16 = arith.constant 0 : index
    %33 = vector.load %arg3[%c1, %c0_15, %c0_16] : memref<4x8x32xbf16, #tpu.memory_space<vmem>>, vector<1x8x32xbf16>
    %34 = vector.shape_cast %33 : vector<1x8x32xbf16> to vector<8x32xbf16>
    %cst_17 = arith.constant dense<0.000000e+00> : vector<8x32xf32>
    %35 = tpu.matmul %32, %34, %cst_17 {dimension_numbers = #tpu.dot_dimension_numbers<[1], [0], [0], [1], [0, 0, 1, 1], [], []>} : vector<8x8xbf16>, vector<8x32xbf16>, vector<8x32xf32> -> vector<8x32xf32>
    %36 = arith.addf %29, %35 : vector<8x32xf32>
    %37 = vector.extract_strided_slice %17 {offsets = [2, 0, 0], sizes = [1, 8, 8], strides = [1, 1, 1]} : vector<4x8x8xf32> to vector<1x8x8xf32>
    %38 = vector.shape_cast %37 : vector<1x8x8xf32> to vector<8x8xf32>
    %39 = arith.truncf %38 : vector<8x8xf32> to vector<8x8xbf16>
    %c2 = arith.constant 2 : index
    %c0_18 = arith.constant 0 : index
    %c0_19 = arith.constant 0 : index
    %40 = vector.load %arg3[%c2, %c0_18, %c0_19] : memref<4x8x32xbf16, #tpu.memory_space<vmem>>, vector<1x8x32xbf16>
    %41 = vector.shape_cast %40 : vector<1x8x32xbf16> to vector<8x32xbf16>
    %cst_20 = arith.constant dense<0.000000e+00> : vector<8x32xf32>
    %42 = tpu.matmul %39, %41, %cst_20 {dimension_numbers = #tpu.dot_dimension_numbers<[1], [0], [0], [1], [0, 0, 1, 1], [], []>} : vector<8x8xbf16>, vector<8x32xbf16>, vector<8x32xf32> -> vector<8x32xf32>
    %43 = arith.addf %36, %42 : vector<8x32xf32>
    %44 = vector.extract_strided_slice %17 {offsets = [3, 0, 0], sizes = [1, 8, 8], strides = [1, 1, 1]} : vector<4x8x8xf32> to vector<1x8x8xf32>
    %45 = vector.shape_cast %44 : vector<1x8x8xf32> to vector<8x8xf32>
    %46 = arith.truncf %45 : vector<8x8xf32> to vector<8x8xbf16>
    %c3 = arith.constant 3 : index
    %c0_21 = arith.constant 0 : index
    %c0_22 = arith.constant 0 : index
    %47 = vector.load %arg3[%c3, %c0_21, %c0_22] : memref<4x8x32xbf16, #tpu.memory_space<vmem>>, vector<1x8x32xbf16>
    %48 = vector.shape_cast %47 : vector<1x8x32xbf16> to vector<8x32xbf16>
    %cst_23 = arith.constant dense<0.000000e+00> : vector<8x32xf32>
    %49 = tpu.matmul %46, %48, %cst_23 {dimension_numbers = #tpu.dot_dimension_numbers<[1], [0], [0], [1], [0, 0, 1, 1], [], []>} : vector<8x8xbf16>, vector<8x32xbf16>, vector<8x32xf32> -> vector<8x32xf32>
    %50 = arith.addf %43, %49 : vector<8x32xf32>
    %c0_24 = arith.constant 0 : index
    %c0_25 = arith.constant 0 : index
    %c0_26 = arith.constant 0 : index
    %51 = vector.load %arg5[%c0_24, %c0_25, %c0_26] : memref<1x8x32xf32, #tpu.memory_space<vmem>>, vector<1x8x32xf32>
    %52 = vector.shape_cast %51 : vector<1x8x32xf32> to vector<8x32xf32>
    %53 = vector.shape_cast %50 : vector<8x32xf32> to vector<1x8x32xf32>
    tpu.vector_store %arg5[%c0_24, %c0_25, %c0_26], %53 {strides = array<i32>} : memref<1x8x32xf32, #tpu.memory_space<vmem>>, vector<1x8x32xf32>,
    return
  }
  func.func @transform_0(%arg0: i32) -> (i32, i32, i32, i32) {
    %c0_i32 = arith.constant 0 : i32
    %c0_i32_0 = arith.constant 0 : i32
    %c0_i32_1 = arith.constant 0 : i32
    %c0_i32_2 = arith.constant 0 : i32
    return %arg0, %c0_i32, %c0_i32_0, %c0_i32_1 : i32, i32, i32, i32
  }
  func.func @transform_1(%arg0: i32) -> (i32, i32, i32) {
    %c0_i32 = arith.constant 0 : i32
    %c0_i32_0 = arith.constant 0 : i32
    %c0_i32_1 = arith.constant 0 : i32
    return %arg0, %c0_i32, %c0_i32_0 : i32, i32, i32
  }
  func.func @transform_2(%arg0: i32) -> (i32, i32, i32) {
    %c0_i32 = arith.constant 0 : i32
    %c0_i32_0 = arith.constant 0 : i32
    %c0_i32_1 = arith.constant 0 : i32
    %c0_i32_2 = arith.constant 0 : i32
    return %c0_i32, %c0_i32_0, %c0_i32_1 : i32, i32, i32
  }
  func.func @transform_3(%arg0: i32) -> (i32, i32) {
    %c0_i32 = arith.constant 0 : i32
    %c0_i32_0 = arith.constant 0 : i32
    %c0_i32_1 = arith.constant 0 : i32
    return %c0_i32, %c0_i32_0 : i32, i32
  }
  func.func @transform_4(%arg0: i32) -> (i32, i32, i32) {
    %c0_i32 = arith.constant 0 : i32
    %c0_i32_0 = arith.constant 0 : i32
    %c0_i32_1 = arith.constant 0 : i32
    return %arg0, %c0_i32, %c0_i32_0 : i32, i32, i32
  }
}

module attributes {stable_mosaic.version = 11 : i64} {
  func.func @_ff_kernel(%arg0: i32, %arg1: memref<16x32xf32, #tpu.memory_space<vmem>>, %arg2: memref<1x32xf32, #tpu.memory_space<vmem>>, %arg3: memref<1x32xf32, #tpu.memory_space<vmem>>, %arg4: memref<32x64xbf16, #tpu.memory_space<vmem>>, %arg5: memref<1x64xf32, #tpu.memory_space<vmem>>, %arg6: memref<64x32xbf16, #tpu.memory_space<vmem>>, %arg7: memref<1x32xf32, #tpu.memory_space<vmem>>, %arg8: memref<1x32xf32, #tpu.memory_space<vmem>>, %arg9: memref<1x32xf32, #tpu.memory_space<vmem>>, %arg10: memref<16x32xf32, #tpu.memory_space<vmem>>) attributes {dimension_semantics = [#tpu.dimension_semantics<parallel>], iteration_bounds = array<i64: 1>, scalar_prefetch = 0 : i64, scratch_operands = 0 : i64, tpu.core_type = #tpu.core_type<tc>, window_params = [{transform_indices = @transform_0, window_bounds = array<i64: 16, 32>}, {pipeline_mode = #tpu.pipeline_mode<synchronous>, transform_indices = @transform_1, window_bounds = array<i64: 1, 32>}, {pipeline_mode = #tpu.pipeline_mode<synchronous>, transform_indices = @transform_2, window_bounds = array<i64: 1, 32>}, {pipeline_mode = #tpu.pipeline_mode<synchronous>, transform_indices = @transform_3, window_bounds = array<i64: 32, 64>}, {pipeline_mode = #tpu.pipeline_mode<synchronous>, transform_indices = @transform_4, window_bounds = array<i64: 1, 64>}, {pipeline_mode = #tpu.pipeline_mode<synchronous>, transform_indices = @transform_5, window_bounds = array<i64: 64, 32>}, {pipeline_mode = #tpu.pipeline_mode<synchronous>, transform_indices = @transform_6, window_bounds = array<i64: 1, 32>}, {pipeline_mode = #tpu.pipeline_mode<synchronous>, transform_indices = @transform_7, window_bounds = array<i64: 1, 32>}, {pipeline_mode = #tpu.pipeline_mode<synchronous>, transform_indices = @transform_8, window_bounds = array<i64: 1, 32>}, {transform_indices = @transform_9, window_bounds = array<i64: 16, 32>}]} {
    %c0 = arith.constant 0 : index
    %c0_0 = arith.constant 0 : index
    %0 = vector.load %arg1[%c0, %c0_0] : memref<16x32xf32, #tpu.memory_space<vmem>>, vector<16x32xf32>
    %c0_1 = arith.constant 0 : index
    %c0_2 = arith.constant 0 : index
    %1 = vector.load %arg2[%c0_1, %c0_2] : memref<1x32xf32, #tpu.memory_space<vmem>>, vector<1x32xf32>
    %c0_3 = arith.constant 0 : index
    %c0_4 = arith.constant 0 : index
    %2 = vector.load %arg3[%c0_3, %c0_4] : memref<1x32xf32, #tpu.memory_space<vmem>>, vector<1x32xf32>
    %cst = arith.constant dense<0.000000e+00> : vector<16xf32>
    %3 = vector.multi_reduction <add>, %0, %cst [1] : vector<16x32xf32> to vector<16xf32>
    %4 = vector.shape_cast %3 : vector<16xf32> to vector<16x1xf32>
    %cst_5 = arith.constant 3.200000e+01 : f32
    %5 = vector.broadcast %cst_5 : f32 to vector<16x1xf32>
    %6 = arith.divf %4, %5 : vector<16x1xf32>
    %7 = vector.broadcast %6 : vector<16x1xf32> to vector<16x32xf32>
    %8 = arith.subf %0, %7 : vector<16x32xf32>
    %9 = arith.mulf %8, %8 : vector<16x32xf32>
    %cst_6 = arith.constant dense<0.000000e+00> : vector<16xf32>
    %10 = vector.multi_reduction <add>, %9, %cst_6 [1] : vector<16x32xf32> to vector<16xf32>
    %11 = vector.shape_cast %10 : vector<16xf32> to vector<16x1xf32>
    %cst_7 = arith.constant 3.200000e+01 : f32
    %12 = vector.broadcast %cst_7 : f32 to vector<16x1xf32>
    %13 = arith.divf %11, %12 : vector<16x1xf32>
    %cst_8 = arith.constant 9.99999974E-6 : f32
    %14 = vector.broadcast %cst_8 : f32 to vector<16x1xf32>
    %15 = arith.addf %13, %14 : vector<16x1xf32>
    %16 = math.rsqrt %15 : vector<16x1xf32>
    %17 = vector.broadcast %16 : vector<16x1xf32> to vector<16x32xf32>
    %18 = arith.mulf %8, %17 : vector<16x32xf32>
    %19 = vector.broadcast %1 : vector<1x32xf32> to vector<16x32xf32>
    %20 = arith.mulf %18, %19 : vector<16x32xf32>
    %21 = vector.broadcast %2 : vector<1x32xf32> to vector<16x32xf32>
    %22 = arith.addf %20, %21 : vector<16x32xf32>
    %23 = arith.truncf %22 : vector<16x32xf32> to vector<16x32xbf16>
    %c0_9 = arith.constant 0 : index
    %c0_10 = arith.constant 0 : index
    %24 = vector.load %arg4[%c0_9, %c0_10] : memref<32x64xbf16, #tpu.memory_space<vmem>>, vector<32x64xbf16>
    %cst_11 = arith.constant dense<0.000000e+00> : vector<16x64xf32>
    %25 = tpu.matmul %23, %24, %cst_11 {dimension_numbers = #tpu.dot_dimension_numbers<[1], [0], [0], [1], [0, 0, 1, 1], [], []>} : vector<16x32xbf16>, vector<32x64xbf16>, vector<16x64xf32> -> vector<16x64xf32>
    %c0_12 = arith.constant 0 : index
    %c0_13 = arith.constant 0 : index
    %26 = vector.load %arg5[%c0_12, %c0_13] : memref<1x64xf32, #tpu.memory_space<vmem>>, vector<1x64xf32>
    %27 = vector.broadcast %26 : vector<1x64xf32> to vector<16x64xf32>
    %28 = arith.addf %25, %27 : vector<16x64xf32>
    %29 = arith.negf %28 : vector<16x64xf32>
    %30 = math.exp %29 : vector<16x64xf32>
    %cst_14 = arith.constant 1.000000e+00 : f32
    %31 = vector.broadcast %cst_14 : f32 to vector<16x64xf32>
    %32 = arith.addf %31, %30 : vector<16x64xf32>
    %33 = arith.divf %31, %32 : vector<16x64xf32>
    %34 = arith.mulf %28, %33 : vector<16x64xf32>
    %35 = arith.truncf %34 : vector<16x64xf32> to vector<16x64xbf16>
    %c0_15 = arith.constant 0 : index
    %c0_16 = arith.constant 0 : index
    %36 = vector.load %arg6[%c0_15, %c0_16] : memref<64x32xbf16, #tpu.memory_space<vmem>>, vector<64x32xbf16>
    %cst_17 = arith.constant dense<0.000000e+00> : vector<16x32xf32>
    %37 = tpu.matmul %35, %36, %cst_17 {dimension_numbers = #tpu.dot_dimension_numbers<[1], [0], [0], [1], [0, 0, 1, 1], [], []>} : vector<16x64xbf16>, vector<64x32xbf16>, vector<16x32xf32> -> vector<16x32xf32>
    %c0_18 = arith.constant 0 : index
    %c0_19 = arith.constant 0 : index
    %38 = vector.load %arg7[%c0_18, %c0_19] : memref<1x32xf32, #tpu.memory_space<vmem>>, vector<1x32xf32>
    %39 = vector.broadcast %38 : vector<1x32xf32> to vector<16x32xf32>
    %40 = arith.addf %37, %39 : vector<16x32xf32>
    %cst_20 = arith.constant 5.000000e-01 : f32
    %41 = vector.broadcast %cst_20 : f32 to vector<16x32xf32>
    %42 = arith.mulf %41, %40 : vector<16x32xf32>
    %43 = arith.addf %0, %42 : vector<16x32xf32>
    %c0_21 = arith.constant 0 : index
    %c0_22 = arith.constant 0 : index
    %44 = vector.load %arg8[%c0_21, %c0_22] : memref<1x32xf32, #tpu.memory_space<vmem>>, vector<1x32xf32>
    %c0_23 = arith.constant 0 : index
    %c0_24 = arith.constant 0 : index
    %45 = vector.load %arg9[%c0_23, %c0_24] : memref<1x32xf32, #tpu.memory_space<vmem>>, vector<1x32xf32>
    %cst_25 = arith.constant dense<0.000000e+00> : vector<16xf32>
    %46 = vector.multi_reduction <add>, %43, %cst_25 [1] : vector<16x32xf32> to vector<16xf32>
    %47 = vector.shape_cast %46 : vector<16xf32> to vector<16x1xf32>
    %cst_26 = arith.constant 3.200000e+01 : f32
    %48 = vector.broadcast %cst_26 : f32 to vector<16x1xf32>
    %49 = arith.divf %47, %48 : vector<16x1xf32>
    %50 = vector.broadcast %49 : vector<16x1xf32> to vector<16x32xf32>
    %51 = arith.subf %43, %50 : vector<16x32xf32>
    %52 = arith.mulf %51, %51 : vector<16x32xf32>
    %cst_27 = arith.constant dense<0.000000e+00> : vector<16xf32>
    %53 = vector.multi_reduction <add>, %52, %cst_27 [1] : vector<16x32xf32> to vector<16xf32>
    %54 = vector.shape_cast %53 : vector<16xf32> to vector<16x1xf32>
    %cst_28 = arith.constant 3.200000e+01 : f32
    %55 = vector.broadcast %cst_28 : f32 to vector<16x1xf32>
    %56 = arith.divf %54, %55 : vector<16x1xf32>
    %cst_29 = arith.constant 9.99999974E-6 : f32
    %57 = vector.broadcast %cst_29 : f32 to vector<16x1xf32>
    %58 = arith.addf %56, %57 : vector<16x1xf32>
    %59 = math.rsqrt %58 : vector<16x1xf32>
    %60 = vector.broadcast %59 : vector<16x1xf32> to vector<16x32xf32>
    %61 = arith.mulf %51, %60 : vector<16x32xf32>
    %62 = vector.broadcast %44 : vector<1x32xf32> to vector<16x32xf32>
    %63 = arith.mulf %61, %62 : vector<16x32xf32>
    %64 = vector.broadcast %45 : vector<1x32xf32> to vector<16x32xf32>
    %65 = arith.addf %63, %64 : vector<16x32xf32>
    %c0_30 = arith.constant 0 : index
    %c0_31 = arith.constant 0 : index
    %66 = vector.load %arg10[%c0_30, %c0_31] : memref<16x32xf32, #tpu.memory_space<vmem>>, vector<16x32xf32>
    tpu.vector_store %arg10[%c0_30, %c0_31], %65 {strides = array<i32>} : memref<16x32xf32, #tpu.memory_space<vmem>>, vector<16x32xf32>,
    return
  }
  func.func @transform_0(%arg0: i32) -> (i32, i32) {
    %c0_i32 = arith.constant 0 : i32
    %c0_i32_0 = arith.constant 0 : i32
    return %arg0, %c0_i32 : i32, i32
  }
  func.func @transform_1(%arg0: i32) -> (i32, i32) {
    %c0_i32 = arith.constant 0 : i32
    %c0_i32_0 = arith.constant 0 : i32
    %c0_i32_1 = arith.constant 0 : i32
    return %c0_i32, %c0_i32_0 : i32, i32
  }
  func.func @transform_2(%arg0: i32) -> (i32, i32) {
    %c0_i32 = arith.constant 0 : i32
    %c0_i32_0 = arith.constant 0 : i32
    %c0_i32_1 = arith.constant 0 : i32
    return %c0_i32, %c0_i32_0 : i32, i32
  }
  func.func @transform_3(%arg0: i32) -> (i32, i32) {
    %c0_i32 = arith.constant 0 : i32
    %c0_i32_0 = arith.constant 0 : i32
    %c0_i32_1 = arith.constant 0 : i32
    return %c0_i32, %c0_i32_0 : i32, i32
  }
  func.func @transform_4(%arg0: i32) -> (i32, i32) {
    %c0_i32 = arith.constant 0 : i32
    %c0_i32_0 = arith.constant 0 : i32
    %c0_i32_1 = arith.constant 0 : i32
    return %c0_i32, %c0_i32_0 : i32, i32
  }
  func.func @transform_5(%arg0: i32) -> (i32, i32) {
    %c0_i32 = arith.constant 0 : i32
    %c0_i32_0 = arith.constant 0 : i32
    %c0_i32_1 = arith.constant 0 : i32
    return %c0_i32, %c0_i32_0 : i32, i32
  }
  func.func @transform_6(%arg0: i32) -> (i32, i32) {
    %c0_i32 = arith.constant 0 : i32
    %c0_i32_0 = arith.constant 0 : i32
    %c0_i32_1 = arith.constant 0 : i32
    return %c0_i32, %c0_i32_0 : i32, i32
  }
  func.func @transform_7(%arg0: i32) -> (i32, i32) {
    %c0_i32 = arith.constant 0 : i32
    %c0_i32_0 = arith.constant 0 : i32
    %c0_i32_1 = arith.constant 0 : i32
    return %c0_i32, %c0_i32_0 : i32, i32
  }
  func.func @transform_8(%arg0: i32) -> (i32, i32) {
    %c0_i32 = arith.constant 0 : i32
    %c0_i32_0 = arith.constant 0 : i32
    %c0_i32_1 = arith.constant 0 : i32
    return %c0_i32, %c0_i32_0 : i32, i32
  }
  func.func @transform_9(%arg0: i32) -> (i32, i32) {
    %c0_i32 = arith.constant 0 : i32
    %c0_i32_0 = arith.constant 0 : i32
    return %arg0, %c0_i32 : i32, i32
  }
}

module attributes {stable_mosaic.version = 11 : i64} {
  func.func @_conv_module_kernel(%arg0: i32, %arg1: memref<1x8x32xf32, #tpu.memory_space<vmem>>, %arg2: memref<1x32xf32, #tpu.memory_space<vmem>>, %arg3: memref<1x32xf32, #tpu.memory_space<vmem>>, %arg4: memref<32x64xbf16, #tpu.memory_space<vmem>>, %arg5: memref<1x64xf32, #tpu.memory_space<vmem>>, %arg6: memref<7x32xf32, #tpu.memory_space<vmem>>, %arg7: memref<1x32xf32, #tpu.memory_space<vmem>>, %arg8: memref<1x32xf32, #tpu.memory_space<vmem>>, %arg9: memref<1x32xf32, #tpu.memory_space<vmem>>, %arg10: memref<1x32xf32, #tpu.memory_space<vmem>>, %arg11: memref<1x32xf32, #tpu.memory_space<vmem>>, %arg12: memref<32x32xbf16, #tpu.memory_space<vmem>>, %arg13: memref<1x32xf32, #tpu.memory_space<vmem>>, %arg14: memref<1x8x32xf32, #tpu.memory_space<vmem>>, %arg15: memref<14x32xf32, #tpu.memory_space<vmem>>) attributes {dimension_semantics = [#tpu.dimension_semantics<parallel>], iteration_bounds = array<i64: 2>, scalar_prefetch = 0 : i64, scratch_operands = 1 : i64, tpu.core_type = #tpu.core_type<tc>, window_params = [{transform_indices = @transform_0, window_bounds = array<i64: 1, 8, 32>}, {pipeline_mode = #tpu.pipeline_mode<synchronous>, transform_indices = @transform_1, window_bounds = array<i64: 1, 32>}, {pipeline_mode = #tpu.pipeline_mode<synchronous>, transform_indices = @transform_2, window_bounds = array<i64: 1, 32>}, {pipeline_mode = #tpu.pipeline_mode<synchronous>, transform_indices = @transform_3, window_bounds = array<i64: 32, 64>}, {pipeline_mode = #tpu.pipeline_mode<synchronous>, transform_indices = @transform_4, window_bounds = array<i64: 1, 64>}, {pipeline_mode = #tpu.pipeline_mode<synchronous>, transform_indices = @transform_5, window_bounds = array<i64: 7, 32>}, {pipeline_mode = #tpu.pipeline_mode<synchronous>, transform_indices = @transform_6, window_bounds = array<i64: 1, 32>}, {pipeline_mode = #tpu.pipeline_mode<synchronous>, transform_indices = @transform_7, window_bounds = array<i64: 1, 32>}, {pipeline_mode = #tpu.pipeline_mode<synchronous>, transform_indices = @transform_8, window_bounds = array<i64: 1, 32>}, {pipeline_mode = #tpu.pipeline_mode<synchronous>, transform_indices = @transform_9, window_bounds = array<i64: 1, 32>}, {pipeline_mode = #tpu.pipeline_mode<synchronous>, transform_indices = @transform_10, window_bounds = array<i64: 1, 32>}, {pipeline_mode = #tpu.pipeline_mode<synchronous>, transform_indices = @transform_11, window_bounds = array<i64: 32, 32>}, {pipeline_mode = #tpu.pipeline_mode<synchronous>, transform_indices = @transform_12, window_bounds = array<i64: 1, 32>}, {transform_indices = @transform_13, window_bounds = array<i64: 1, 8, 32>}]} {
    %c0 = arith.constant 0 : index
    %c0_0 = arith.constant 0 : index
    %c0_1 = arith.constant 0 : index
    %0 = vector.load %arg1[%c0, %c0_0, %c0_1] : memref<1x8x32xf32, #tpu.memory_space<vmem>>, vector<1x8x32xf32>
    %1 = vector.shape_cast %0 : vector<1x8x32xf32> to vector<8x32xf32>
    %c0_2 = arith.constant 0 : index
    %c0_3 = arith.constant 0 : index
    %2 = vector.load %arg2[%c0_2, %c0_3] : memref<1x32xf32, #tpu.memory_space<vmem>>, vector<1x32xf32>
    %c0_4 = arith.constant 0 : index
    %c0_5 = arith.constant 0 : index
    %3 = vector.load %arg3[%c0_4, %c0_5] : memref<1x32xf32, #tpu.memory_space<vmem>>, vector<1x32xf32>
    %cst = arith.constant dense<0.000000e+00> : vector<8xf32>
    %4 = vector.multi_reduction <add>, %1, %cst [1] : vector<8x32xf32> to vector<8xf32>
    %5 = vector.shape_cast %4 : vector<8xf32> to vector<8x1xf32>
    %cst_6 = arith.constant 3.200000e+01 : f32
    %6 = vector.broadcast %cst_6 : f32 to vector<8x1xf32>
    %7 = arith.divf %5, %6 : vector<8x1xf32>
    %8 = vector.broadcast %7 : vector<8x1xf32> to vector<8x32xf32>
    %9 = arith.subf %1, %8 : vector<8x32xf32>
    %10 = arith.mulf %9, %9 : vector<8x32xf32>
    %cst_7 = arith.constant dense<0.000000e+00> : vector<8xf32>
    %11 = vector.multi_reduction <add>, %10, %cst_7 [1] : vector<8x32xf32> to vector<8xf32>
    %12 = vector.shape_cast %11 : vector<8xf32> to vector<8x1xf32>
    %cst_8 = arith.constant 3.200000e+01 : f32
    %13 = vector.broadcast %cst_8 : f32 to vector<8x1xf32>
    %14 = arith.divf %12, %13 : vector<8x1xf32>
    %cst_9 = arith.constant 9.99999974E-6 : f32
    %15 = vector.broadcast %cst_9 : f32 to vector<8x1xf32>
    %16 = arith.addf %14, %15 : vector<8x1xf32>
    %17 = math.rsqrt %16 : vector<8x1xf32>
    %18 = vector.broadcast %17 : vector<8x1xf32> to vector<8x32xf32>
    %19 = arith.mulf %9, %18 : vector<8x32xf32>
    %20 = vector.broadcast %2 : vector<1x32xf32> to vector<8x32xf32>
    %21 = arith.mulf %19, %20 : vector<8x32xf32>
    %22 = vector.broadcast %3 : vector<1x32xf32> to vector<8x32xf32>
    %23 = arith.addf %21, %22 : vector<8x32xf32>
    %24 = arith.truncf %23 : vector<8x32xf32> to vector<8x32xbf16>
    %c0_10 = arith.constant 0 : index
    %c0_11 = arith.constant 0 : index
    %25 = vector.load %arg4[%c0_10, %c0_11] : memref<32x64xbf16, #tpu.memory_space<vmem>>, vector<32x64xbf16>
    %cst_12 = arith.constant dense<0.000000e+00> : vector<8x64xf32>
    %26 = tpu.matmul %24, %25, %cst_12 {dimension_numbers = #tpu.dot_dimension_numbers<[1], [0], [0], [1], [0, 0, 1, 1], [], []>} : vector<8x32xbf16>, vector<32x64xbf16>, vector<8x64xf32> -> vector<8x64xf32>
    %c0_13 = arith.constant 0 : index
    %c0_14 = arith.constant 0 : index
    %27 = vector.load %arg5[%c0_13, %c0_14] : memref<1x64xf32, #tpu.memory_space<vmem>>, vector<1x64xf32>
    %28 = vector.broadcast %27 : vector<1x64xf32> to vector<8x64xf32>
    %29 = arith.addf %26, %28 : vector<8x64xf32>
    %30 = vector.extract_strided_slice %29 {offsets = [0, 0], sizes = [8, 32], strides = [1, 1]} : vector<8x64xf32> to vector<8x32xf32>
    %31 = vector.extract_strided_slice %29 {offsets = [0, 32], sizes = [8, 32], strides = [1, 1]} : vector<8x64xf32> to vector<8x32xf32>
    %32 = arith.negf %31 : vector<8x32xf32>
    %33 = math.exp %32 : vector<8x32xf32>
    %cst_15 = arith.constant 1.000000e+00 : f32
    %34 = vector.broadcast %cst_15 : f32 to vector<8x32xf32>
    %35 = arith.addf %34, %33 : vector<8x32xf32>
    %36 = arith.divf %34, %35 : vector<8x32xf32>
    %37 = arith.mulf %30, %36 : vector<8x32xf32>
    %cst_16 = arith.constant 0.000000e+00 : f32
    %38 = vector.broadcast %cst_16 : f32 to vector<3x32xf32>
    %c0_17 = arith.constant 0 : index
    %c0_18 = arith.constant 0 : index
    %39 = vector.load %arg15[%c0_17, %c0_18] : memref<14x32xf32, #tpu.memory_space<vmem>>, vector<3x32xf32>
    tpu.vector_store %arg15[%c0_17, %c0_18], %38 {strides = array<i32>} : memref<14x32xf32, #tpu.memory_space<vmem>>, vector<3x32xf32>,
    %cst_19 = arith.constant 0.000000e+00 : f32
    %40 = vector.broadcast %cst_19 : f32 to vector<3x32xf32>
    %c11 = arith.constant 11 : index
    %c0_20 = arith.constant 0 : index
    %41 = vector.load %arg15[%c11, %c0_20] : memref<14x32xf32, #tpu.memory_space<vmem>>, vector<3x32xf32>
    tpu.vector_store %arg15[%c11, %c0_20], %40 {strides = array<i32>} : memref<14x32xf32, #tpu.memory_space<vmem>>, vector<3x32xf32>,
    %c3 = arith.constant 3 : index
    %c0_21 = arith.constant 0 : index
    %42 = vector.load %arg15[%c3, %c0_21] : memref<14x32xf32, #tpu.memory_space<vmem>>, vector<8x32xf32>
    tpu.vector_store %arg15[%c3, %c0_21], %37 {strides = array<i32>} : memref<14x32xf32, #tpu.memory_space<vmem>>, vector<8x32xf32>,
    %c0_22 = arith.constant 0 : index
    %c0_23 = arith.constant 0 : index
    %43 = vector.load %arg15[%c0_22, %c0_23] : memref<14x32xf32, #tpu.memory_space<vmem>>, vector<8x32xf32>
    %c0_24 = arith.constant 0 : index
    %c0_25 = arith.constant 0 : index
    %44 = vector.load %arg6[%c0_24, %c0_25] : memref<7x32xf32, #tpu.memory_space<vmem>>, vector<1x32xf32>
    %45 = vector.broadcast %44 : vector<1x32xf32> to vector<8x32xf32>
    %46 = arith.mulf %43, %45 : vector<8x32xf32>
    %c1 = arith.constant 1 : index
    %c0_26 = arith.constant 0 : index
    %47 = vector.load %arg15[%c1, %c0_26] : memref<14x32xf32, #tpu.memory_space<vmem>>, vector<8x32xf32>
    %c1_27 = arith.constant 1 : index
    %c0_28 = arith.constant 0 : index
    %48 = vector.load %arg6[%c1_27, %c0_28] : memref<7x32xf32, #tpu.memory_space<vmem>>, vector<1x32xf32>
    %49 = vector.broadcast %48 : vector<1x32xf32> to vector<8x32xf32>
    %50 = arith.mulf %47, %49 : vector<8x32xf32>
    %51 = arith.addf %46, %50 : vector<8x32xf32>
    %c2 = arith.constant 2 : index
    %c0_29 = arith.constant 0 : index
    %52 = vector.load %arg15[%c2, %c0_29] : memref<14x32xf32, #tpu.memory_space<vmem>>, vector<8x32xf32>
    %c2_30 = arith.constant 2 : index
    %c0_31 = arith.constant 0 : index
    %53 = vector.load %arg6[%c2_30, %c0_31] : memref<7x32xf32, #tpu.memory_space<vmem>>, vector<1x32xf32>
    %54 = vector.broadcast %53 : vector<1x32xf32> to vector<8x32xf32>
    %55 = arith.mulf %52, %54 : vector<8x32xf32>
    %56 = arith.addf %51, %55 : vector<8x32xf32>
    %c3_32 = arith.constant 3 : index
    %c0_33 = arith.constant 0 : index
    %57 = vector.load %arg15[%c3_32, %c0_33] : memref<14x32xf32, #tpu.memory_space<vmem>>, vector<8x32xf32>
    %c3_34 = arith.constant 3 : index
    %c0_35 = arith.constant 0 : index
    %58 = vector.load %arg6[%c3_34, %c0_35] : memref<7x32xf32, #tpu.memory_space<vmem>>, vector<1x32xf32>
    %59 = vector.broadcast %58 : vector<1x32xf32> to vector<8x32xf32>
    %60 = arith.mulf %57, %59 : vector<8x32xf32>
    %61 = arith.addf %56, %60 : vector<8x32xf32>
    %c4 = arith.constant 4 : index
    %c0_36 = arith.constant 0 : index
    %62 = vector.load %arg15[%c4, %c0_36] : memref<14x32xf32, #tpu.memory_space<vmem>>, vector<8x32xf32>
    %c4_37 = arith.constant 4 : index
    %c0_38 = arith.constant 0 : index
    %63 = vector.load %arg6[%c4_37, %c0_38] : memref<7x32xf32, #tpu.memory_space<vmem>>, vector<1x32xf32>
    %64 = vector.broadcast %63 : vector<1x32xf32> to vector<8x32xf32>
    %65 = arith.mulf %62, %64 : vector<8x32xf32>
    %66 = arith.addf %61, %65 : vector<8x32xf32>
    %c5 = arith.constant 5 : index
    %c0_39 = arith.constant 0 : index
    %67 = vector.load %arg15[%c5, %c0_39] : memref<14x32xf32, #tpu.memory_space<vmem>>, vector<8x32xf32>
    %c5_40 = arith.constant 5 : index
    %c0_41 = arith.constant 0 : index
    %68 = vector.load %arg6[%c5_40, %c0_41] : memref<7x32xf32, #tpu.memory_space<vmem>>, vector<1x32xf32>
    %69 = vector.broadcast %68 : vector<1x32xf32> to vector<8x32xf32>
    %70 = arith.mulf %67, %69 : vector<8x32xf32>
    %71 = arith.addf %66, %70 : vector<8x32xf32>
    %c6 = arith.constant 6 : index
    %c0_42 = arith.constant 0 : index
    %72 = vector.load %arg15[%c6, %c0_42] : memref<14x32xf32, #tpu.memory_space<vmem>>, vector<8x32xf32>
    %c6_43 = arith.constant 6 : index
    %c0_44 = arith.constant 0 : index
    %73 = vector.load %arg6[%c6_43, %c0_44] : memref<7x32xf32, #tpu.memory_space<vmem>>, vector<1x32xf32>
    %74 = vector.broadcast %73 : vector<1x32xf32> to vector<8x32xf32>
    %75 = arith.mulf %72, %74 : vector<8x32xf32>
    %76 = arith.addf %71, %75 : vector<8x32xf32>
    %c0_45 = arith.constant 0 : index
    %c0_46 = arith.constant 0 : index
    %77 = vector.load %arg7[%c0_45, %c0_46] : memref<1x32xf32, #tpu.memory_space<vmem>>, vector<1x32xf32>
    %78 = vector.broadcast %77 : vector<1x32xf32> to vector<8x32xf32>
    %79 = arith.addf %76, %78 : vector<8x32xf32>
    %c0_47 = arith.constant 0 : index
    %c0_48 = arith.constant 0 : index
    %80 = vector.load %arg10[%c0_47, %c0_48] : memref<1x32xf32, #tpu.memory_space<vmem>>, vector<1x32xf32>
    %81 = vector.broadcast %80 : vector<1x32xf32> to vector<8x32xf32>
    %82 = arith.subf %79, %81 : vector<8x32xf32>
    %c0_49 = arith.constant 0 : index
    %c0_50 = arith.constant 0 : index
    %83 = vector.load %arg11[%c0_49, %c0_50] : memref<1x32xf32, #tpu.memory_space<vmem>>, vector<1x32xf32>
    %cst_51 = arith.constant 9.99999974E-6 : f32
    %84 = vector.broadcast %cst_51 : f32 to vector<1x32xf32>
    %85 = arith.addf %83, %84 : vector<1x32xf32>
    %86 = math.rsqrt %85 : vector<1x32xf32>
    %87 = vector.broadcast %86 : vector<1x32xf32> to vector<8x32xf32>
    %88 = arith.mulf %82, %87 : vector<8x32xf32>
    %c0_52 = arith.constant 0 : index
    %c0_53 = arith.constant 0 : index
    %89 = vector.load %arg8[%c0_52, %c0_53] : memref<1x32xf32, #tpu.memory_space<vmem>>, vector<1x32xf32>
    %90 = vector.broadcast %89 : vector<1x32xf32> to vector<8x32xf32>
    %91 = arith.mulf %88, %90 : vector<8x32xf32>
    %c0_54 = arith.constant 0 : index
    %c0_55 = arith.constant 0 : index
    %92 = vector.load %arg9[%c0_54, %c0_55] : memref<1x32xf32, #tpu.memory_space<vmem>>, vector<1x32xf32>
    %93 = vector.broadcast %92 : vector<1x32xf32> to vector<8x32xf32>
    %94 = arith.addf %91, %93 : vector<8x32xf32>
    %95 = arith.negf %94 : vector<8x32xf32>
    %96 = math.exp %95 : vector<8x32xf32>
    %cst_56 = arith.constant 1.000000e+00 : f32
    %97 = vector.broadcast %cst_56 : f32 to vector<8x32xf32>
    %98 = arith.addf %97, %96 : vector<8x32xf32>
    %99 = arith.divf %97, %98 : vector<8x32xf32>
    %100 = arith.mulf %94, %99 : vector<8x32xf32>
    %101 = arith.truncf %100 : vector<8x32xf32> to vector<8x32xbf16>
    %c0_57 = arith.constant 0 : index
    %c0_58 = arith.constant 0 : index
    %102 = vector.load %arg12[%c0_57, %c0_58] : memref<32x32xbf16, #tpu.memory_space<vmem>>, vector<32x32xbf16>
    %cst_59 = arith.constant dense<0.000000e+00> : vector<8x32xf32>
    %103 = tpu.matmul %101, %102, %cst_59 {dimension_numbers = #tpu.dot_dimension_numbers<[1], [0], [0], [1], [0, 0, 1, 1], [], []>} : vector<8x32xbf16>, vector<32x32xbf16>, vector<8x32xf32> -> vector<8x32xf32>
    %c0_60 = arith.constant 0 : index
    %c0_61 = arith.constant 0 : index
    %104 = vector.load %arg13[%c0_60, %c0_61] : memref<1x32xf32, #tpu.memory_space<vmem>>, vector<1x32xf32>
    %105 = vector.broadcast %104 : vector<1x32xf32> to vector<8x32xf32>
    %106 = arith.addf %103, %105 : vector<8x32xf32>
    %107 = arith.addf %1, %106 : vector<8x32xf32>
    %c0_62 = arith.constant 0 : index
    %c0_63 = arith.constant 0 : index
    %c0_64 = arith.constant 0 : index
    %108 = vector.load %arg14[%c0_62, %c0_63, %c0_64] : memref<1x8x32xf32, #tpu.memory_space<vmem>>, vector<1x8x32xf32>
    %109 = vector.shape_cast %108 : vector<1x8x32xf32> to vector<8x32xf32>
    %110 = vector.shape_cast %107 : vector<8x32xf32> to vector<1x8x32xf32>
    tpu.vector_store %arg14[%c0_62, %c0_63, %c0_64], %110 {strides = array<i32>} : memref<1x8x32xf32, #tpu.memory_space<vmem>>, vector<1x8x32xf32>,
    return
  }
  func.func @transform_0(%arg0: i32) -> (i32, i32, i32) {
    %c0_i32 = arith.constant 0 : i32
    %c0_i32_0 = arith.constant 0 : i32
    %c0_i32_1 = arith.constant 0 : i32
    return %arg0, %c0_i32, %c0_i32_0 : i32, i32, i32
  }
  func.func @transform_1(%arg0: i32) -> (i32, i32) {
    %c0_i32 = arith.constant 0 : i32
    %c0_i32_0 = arith.constant 0 : i32
    %c0_i32_1 = arith.constant 0 : i32
    return %c0_i32, %c0_i32_0 : i32, i32
  }
  func.func @transform_2(%arg0: i32) -> (i32, i32) {
    %c0_i32 = arith.constant 0 : i32
    %c0_i32_0 = arith.constant 0 : i32
    %c0_i32_1 = arith.constant 0 : i32
    return %c0_i32, %c0_i32_0 : i32, i32
  }
  func.func @transform_3(%arg0: i32) -> (i32, i32) {
    %c0_i32 = arith.constant 0 : i32
    %c0_i32_0 = arith.constant 0 : i32
    %c0_i32_1 = arith.constant 0 : i32
    return %c0_i32, %c0_i32_0 : i32, i32
  }
  func.func @transform_4(%arg0: i32) -> (i32, i32) {
    %c0_i32 = arith.constant 0 : i32
    %c0_i32_0 = arith.constant 0 : i32
    %c0_i32_1 = arith.constant 0 : i32
    return %c0_i32, %c0_i32_0 : i32, i32
  }
  func.func @transform_5(%arg0: i32) -> (i32, i32) {
    %c0_i32 = arith.constant 0 : i32
    %c0_i32_0 = arith.constant 0 : i32
    %c0_i32_1 = arith.constant 0 : i32
    return %c0_i32, %c0_i32_0 : i32, i32
  }
  func.func @transform_6(%arg0: i32) -> (i32, i32) {
    %c0_i32 = arith.constant 0 : i32
    %c0_i32_0 = arith.constant 0 : i32
    %c0_i32_1 = arith.constant 0 : i32
    return %c0_i32, %c0_i32_0 : i32, i32
  }
  func.func @transform_7(%arg0: i32) -> (i32, i32) {
    %c0_i32 = arith.constant 0 : i32
    %c0_i32_0 = arith.constant 0 : i32
    %c0_i32_1 = arith.constant 0 : i32
    return %c0_i32, %c0_i32_0 : i32, i32
  }
  func.func @transform_8(%arg0: i32) -> (i32, i32) {
    %c0_i32 = arith.constant 0 : i32
    %c0_i32_0 = arith.constant 0 : i32
    %c0_i32_1 = arith.constant 0 : i32
    return %c0_i32, %c0_i32_0 : i32, i32
  }
  func.func @transform_9(%arg0: i32) -> (i32, i32) {
    %c0_i32 = arith.constant 0 : i32
    %c0_i32_0 = arith.constant 0 : i32
    %c0_i32_1 = arith.constant 0 : i32
    return %c0_i32, %c0_i32_0 : i32, i32
  }
  func.func @transform_10(%arg0: i32) -> (i32, i32) {
    %c0_i32 = arith.constant 0 : i32
    %c0_i32_0 = arith.constant 0 : i32
    %c0_i32_1 = arith.constant 0 : i32
    return %c0_i32, %c0_i32_0 : i32, i32
  }
  func.func @transform_11(%arg0: i32) -> (i32, i32) {
    %c0_i32 = arith.constant 0 : i32
    %c0_i32_0 = arith.constant 0 : i32
    %c0_i32_1 = arith.constant 0 : i32
    return %c0_i32, %c0_i32_0 : i32, i32
  }
  func.func @transform_12(%arg0: i32) -> (i32, i32) {
    %c0_i32 = arith.constant 0 : i32
    %c0_i32_0 = arith.constant 0 : i32
    %c0_i32_1 = arith.constant 0 : i32
    return %c0_i32, %c0_i32_0 : i32, i32
  }
  func.func @transform_13(%arg0: i32) -> (i32, i32, i32) {
    %c0_i32 = arith.constant 0 : i32
    %c0_i32_0 = arith.constant 0 : i32
    %c0_i32_1 = arith.constant 0 : i32
    return %arg0, %c0_i32, %c0_i32_0 : i32, i32, i32
  }
}

module attributes {stable_mosaic.version = 11 : i64} {
  func.func @_outconv_kernel(%arg0: i32, %arg1: memref<1x8x32xf32, #tpu.memory_space<vmem>>, %arg2: memref<32x96xbf16, #tpu.memory_space<vmem>>, %arg3: memref<32x96xbf16, #tpu.memory_space<vmem>>, %arg4: memref<1x96xf32, #tpu.memory_space<vmem>>, %arg5: memref<1x96xf32, #tpu.memory_space<vmem>>, %arg6: memref<1x96xf32, #tpu.memory_space<vmem>>, %arg7: memref<1x9x96xf32, #tpu.memory_space<vmem>>) attributes {dimension_semantics = [#tpu.dimension_semantics<parallel>], iteration_bounds = array<i64: 2>, scalar_prefetch = 0 : i64, scratch_operands = 0 : i64, tpu.core_type = #tpu.core_type<tc>, window_params = [{transform_indices = @transform_0, window_bounds = array<i64: 1, 8, 32>}, {pipeline_mode = #tpu.pipeline_mode<synchronous>, transform_indices = @transform_1, window_bounds = array<i64: 32, 96>}, {pipeline_mode = #tpu.pipeline_mode<synchronous>, transform_indices = @transform_2, window_bounds = array<i64: 32, 96>}, {pipeline_mode = #tpu.pipeline_mode<synchronous>, transform_indices = @transform_3, window_bounds = array<i64: 1, 96>}, {pipeline_mode = #tpu.pipeline_mode<synchronous>, transform_indices = @transform_4, window_bounds = array<i64: 1, 96>}, {pipeline_mode = #tpu.pipeline_mode<synchronous>, transform_indices = @transform_5, window_bounds = array<i64: 1, 96>}, {transform_indices = @transform_6, window_bounds = array<i64: 1, 9, 96>}]} {
    %c0 = arith.constant 0 : index
    %c0_0 = arith.constant 0 : index
    %c0_1 = arith.constant 0 : index
    %0 = vector.load %arg1[%c0, %c0_0, %c0_1] : memref<1x8x32xf32, #tpu.memory_space<vmem>>, vector<1x8x32xf32>
    %1 = vector.shape_cast %0 : vector<1x8x32xf32> to vector<8x32xf32>
    %2 = arith.truncf %1 : vector<8x32xf32> to vector<8x32xbf16>
    %c0_2 = arith.constant 0 : index
    %c0_3 = arith.constant 0 : index
    %3 = vector.load %arg2[%c0_2, %c0_3] : memref<32x96xbf16, #tpu.memory_space<vmem>>, vector<32x96xbf16>
    %cst = arith.constant dense<0.000000e+00> : vector<8x96xf32>
    %4 = tpu.matmul %2, %3, %cst {dimension_numbers = #tpu.dot_dimension_numbers<[1], [0], [0], [1], [0, 0, 1, 1], [], []>} : vector<8x32xbf16>, vector<32x96xbf16>, vector<8x96xf32> -> vector<8x96xf32>
    %c0_4 = arith.constant 0 : index
    %c0_5 = arith.constant 0 : index
    %5 = vector.load %arg3[%c0_4, %c0_5] : memref<32x96xbf16, #tpu.memory_space<vmem>>, vector<32x96xbf16>
    %cst_6 = arith.constant dense<0.000000e+00> : vector<8x96xf32>
    %6 = tpu.matmul %2, %5, %cst_6 {dimension_numbers = #tpu.dot_dimension_numbers<[1], [0], [0], [1], [0, 0, 1, 1], [], []>} : vector<8x32xbf16>, vector<32x96xbf16>, vector<8x96xf32> -> vector<8x96xf32>
    %cst_7 = arith.constant 0.000000e+00 : f32
    %7 = vector.broadcast %cst_7 : f32 to vector<1x96xf32>
    %8 = tpu.concatenate %6, %7 in 0 : vector<8x96xf32>, vector<1x96xf32> -> vector<9x96xf32>
    %9 = tpu.concatenate %7, %4 in 0 : vector<1x96xf32>, vector<8x96xf32> -> vector<9x96xf32>
    %10 = arith.addf %8, %9 : vector<9x96xf32>
    %c0_8 = arith.constant 0 : index
    %c0_9 = arith.constant 0 : index
    %11 = vector.load %arg4[%c0_8, %c0_9] : memref<1x96xf32, #tpu.memory_space<vmem>>, vector<1x96xf32>
    %12 = vector.broadcast %11 : vector<1x96xf32> to vector<9x96xf32>
    %13 = arith.addf %10, %12 : vector<9x96xf32>
    %c0_10 = arith.constant 0 : index
    %c0_11 = arith.constant 0 : index
    %14 = vector.load %arg5[%c0_10, %c0_11] : memref<1x96xf32, #tpu.memory_space<vmem>>, vector<1x96xf32>
    %c0_12 = arith.constant 0 : index
    %c0_13 = arith.constant 0 : index
    %15 = vector.load %arg6[%c0_12, %c0_13] : memref<1x96xf32, #tpu.memory_space<vmem>>, vector<1x96xf32>
    %cst_14 = arith.constant dense<0.000000e+00> : vector<9xf32>
    %16 = vector.multi_reduction <add>, %13, %cst_14 [1] : vector<9x96xf32> to vector<9xf32>
    %17 = vector.shape_cast %16 : vector<9xf32> to vector<9x1xf32>
    %cst_15 = arith.constant 9.600000e+01 : f32
    %18 = vector.broadcast %cst_15 : f32 to vector<9x1xf32>
    %19 = arith.divf %17, %18 : vector<9x1xf32>
    %20 = vector.broadcast %19 : vector<9x1xf32> to vector<9x96xf32>
    %21 = arith.subf %13, %20 : vector<9x96xf32>
    %22 = arith.mulf %21, %21 : vector<9x96xf32>
    %cst_16 = arith.constant dense<0.000000e+00> : vector<9xf32>
    %23 = vector.multi_reduction <add>, %22, %cst_16 [1] : vector<9x96xf32> to vector<9xf32>
    %24 = vector.shape_cast %23 : vector<9xf32> to vector<9x1xf32>
    %cst_17 = arith.constant 9.600000e+01 : f32
    %25 = vector.broadcast %cst_17 : f32 to vector<9x1xf32>
    %26 = arith.divf %24, %25 : vector<9x1xf32>
    %cst_18 = arith.constant 9.99999974E-6 : f32
    %27 = vector.broadcast %cst_18 : f32 to vector<9x1xf32>
    %28 = arith.addf %26, %27 : vector<9x1xf32>
    %29 = math.rsqrt %28 : vector<9x1xf32>
    %30 = vector.broadcast %29 : vector<9x1xf32> to vector<9x96xf32>
    %31 = arith.mulf %21, %30 : vector<9x96xf32>
    %32 = vector.broadcast %14 : vector<1x96xf32> to vector<9x96xf32>
    %33 = arith.mulf %31, %32 : vector<9x96xf32>
    %34 = vector.broadcast %15 : vector<1x96xf32> to vector<9x96xf32>
    %35 = arith.addf %33, %34 : vector<9x96xf32>
    %cst_19 = arith.constant 0.000000e+00 : f32
    %36 = vector.broadcast %cst_19 : f32 to vector<9x96xf32>
    %37 = arith.maximumf %35, %36 : vector<9x96xf32>
    %c0_20 = arith.constant 0 : index
    %c0_21 = arith.constant 0 : index
    %c0_22 = arith.constant 0 : index
    %38 = vector.load %arg7[%c0_20, %c0_21, %c0_22] : memref<1x9x96xf32, #tpu.memory_space<vmem>>, vector<1x9x96xf32>
    %39 = vector.shape_cast %38 : vector<1x9x96xf32> to vector<9x96xf32>
    %40 = vector.shape_cast %37 : vector<9x96xf32> to vector<1x9x96xf32>
    tpu.vector_store %arg7[%c0_20, %c0_21, %c0_22], %40 {strides = array<i32>} : memref<1x9x96xf32, #tpu.memory_space<vmem>>, vector<1x9x96xf32>,
    return
  }
  func.func @transform_0(%arg0: i32) -> (i32, i32, i32) {
    %c0_i32 = arith.constant 0 : i32
    %c0_i32_0 = arith.constant 0 : i32
    %c0_i32_1 = arith.constant 0 : i32
    return %arg0, %c0_i32, %c0_i32_0 : i32, i32, i32
  }
  func.func @transform_1(%arg0: i32) -> (i32, i32) {
    %c0_i32 = arith.constant 0 : i32
    %c0_i32_0 = arith.constant 0 : i32
    %c0_i32_1 = arith.constant 0 : i32
    return %c0_i32, %c0_i32_0 : i32, i32
  }
  func.func @transform_2(%arg0: i32) -> (i32, i32) {
    %c0_i32 = arith.constant 0 : i32
    %c0_i32_0 = arith.constant 0 : i32
    %c0_i32_1 = arith.constant 0 : i32
    return %c0_i32, %c0_i32_0 : i32, i32
  }
  func.func @transform_3(%arg0: i32) -> (i32, i32) {
    %c0_i32 = arith.constant 0 : i32
    %c0_i32_0 = arith.constant 0 : i32
    %c0_i32_1 = arith.constant 0 : i32
    return %c0_i32, %c0_i32_0 : i32, i32
  }
  func.func @transform_4(%arg0: i32) -> (i32, i32) {
    %c0_i32 = arith.constant 0 : i32
    %c0_i32_0 = arith.constant 0 : i32
    %c0_i32_1 = arith.constant 0 : i32
    return %c0_i32, %c0_i32_0 : i32, i32
  }
  func.func @transform_5(%arg0: i32) -> (i32, i32) {
    %c0_i32 = arith.constant 0 : i32
    %c0_i32_0 = arith.constant 0 : i32
    %c0_i32_1 = arith.constant 0 : i32
    return %c0_i32, %c0_i32_0 : i32, i32
  }
  func.func @transform_6(%arg0: i32) -> (i32, i32, i32) {
    %c0_i32 = arith.constant 0 : i32
    %c0_i32_0 = arith.constant 0 : i32
    %c0_i32_1 = arith.constant 0 : i32
    return %arg0, %c0_i32, %c0_i32_0 : i32, i32, i32
  }
}

</mosaic_0001>

<llo_original>
// kernel: conformer_separator_forward.13
$region0: #{conformer_separator_forward.13}
  #allocation0 [shape = 'u32[]', space=smem, size = 0x4, offset = 0x4, fixed_abs, tag = 'smem constant byte address 0x4 - core index']
  #allocation1 [shape = 'u32[144,128]{1,0:T(1,128)}', space=vmem, size = 0x12000, scoped, tag = 'internal scratch']
  %s0 = inlined_call_operand.vmem [shape: f32[16,32], index: 0, kind: input, shape index: {}, may-alias: {0,7}]
  %s1 = inlined_call_operand.vmem [shape: f32[1,32], index: 1, kind: input, shape index: {}]
  %s2 = inlined_call_operand.vmem [shape: f32[1,32], index: 2, kind: input, shape index: {}]
  %s3 = inlined_call_operand.vmem [shape: bf16[32,64], index: 3, kind: input, shape index: {}]
  %s4 = inlined_call_operand.vmem [shape: f32[1,64], index: 4, kind: input, shape index: {}]
  %s5 = inlined_call_operand.vmem [shape: bf16[64,32], index: 5, kind: input, shape index: {}]
  %s6 = inlined_call_operand.vmem [shape: f32[1,32], index: 6, kind: input, shape index: {}]
  %s7 = inlined_call_operand.vmem [shape: f32[16,32], index: 7, kind: output, shape index: {}, may-alias: {0,7}]
  %s8 = sld [smem:[#allocation0]]
  $region38: #{conformer_separator_forward.13} parent=0
    _
  %s10 = ssub.s32 1, %s8
  %s11 = scalar_select 0, %s10, %s8
  // Predicated region
  $region2: #{conformer_separator_forward.13} parent=0 // pred_check
    _
  $region3: #{conformer_separator_forward.13} parent=0 // pred_check_branch
    %13 = sbr.rel (0) target = $region5
  $region4: #{conformer_separator_forward.13} parent=0 // pred_region
    _
  $region5: #{conformer_separator_forward.13} parent=0 // pred_fallthru
    _
  // Predicated region
  $region6: #{conformer_separator_forward.13} parent=0 // pred_check
    _
  $region7: #{conformer_separator_forward.13} parent=0 // pred_check_branch
    %15 = sbr.rel (0) target = $region9
  $region8: #{conformer_separator_forward.13} parent=0 // pred_region
    _
  $region9: #{conformer_separator_forward.13} parent=0 // pred_fallthru
    _
  // Predicated region
  $region10: #{conformer_separator_forward.13} parent=0 // pred_check
    _
  $region11: #{conformer_separator_forward.13} parent=0 // pred_check_branch
    %17 = sbr.rel (0) target = $region13
  $region12: #{conformer_separator_forward.13} parent=0 // pred_region
    _
  $region13: #{conformer_separator_forward.13} parent=0 // pred_fallthru
    _
  // Predicated region
  $region14: #{conformer_separator_forward.13} parent=0 // pred_check
    _
  $region15: #{conformer_separator_forward.13} parent=0 // pred_check_branch
    %19 = sbr.rel (0) target = $region17
  $region16: #{conformer_separator_forward.13} parent=0 // pred_region
    _
  $region17: #{conformer_separator_forward.13} parent=0 // pred_fallthru
    _
  // Predicated region
  $region18: #{conformer_separator_forward.13} parent=0 // pred_check
    _
  $region19: #{conformer_separator_forward.13} parent=0 // pred_check_branch
    %21 = sbr.rel (0) target = $region21
  $region20: #{conformer_separator_forward.13} parent=0 // pred_region
    _
  $region21: #{conformer_separator_forward.13} parent=0 // pred_fallthru
    _
  // Predicated region
  $region22: #{conformer_separator_forward.13} parent=0 // pred_check
    _
  $region23: #{conformer_separator_forward.13} parent=0 // pred_check_branch
    %23 = sbr.rel (0) target = $region25
  $region24: #{conformer_separator_forward.13} parent=0 // pred_region
    _
  $region25: #{conformer_separator_forward.13} parent=0 // pred_fallthru
    _
  // Predicated region
  $region26: #{conformer_separator_forward.13} parent=0 // pred_check
    _
  $region27: #{conformer_separator_forward.13} parent=0 // pred_check_branch
    %25 = sbr.rel (0) target = $region29
  $region28: #{conformer_separator_forward.13} parent=0 // pred_region
    _
  $region29: #{conformer_separator_forward.13} parent=0 // pred_fallthru
    _
  %v27 = vld [vmem:[%s0] sm:$0xff]
  %v28 = vld [vmem:[%s0 + $0x8] sm:$0xff]
  %v29 = vld [vmem:[%s1] sm:$0x1]
  %v30 = vld [vmem:[%s2] sm:$0x1]
  %vm31 = vcmask 261120
  %v32 = vsel %vm31, %v27, 0.0
  %33 = vadd.xlane.f32.xlu0 %v32
  %v34 = vpop.xlane.xlu0 %33
  %v35 = vsel %vm31, %v28, 0.0
  %36 = vadd.xlane.f32.xlu0 %v35
  %v37 = vpop.xlane.xlu0 %36
  %v38 = vrcp.pop 32.0
  %v39 = vmul.f32 %v34, %v38
  %v40 = vmul.f32 %v37, %v38
  %v41 = vsub.f32 %v27, %v39
  %v42 = vsub.f32 %v28, %v40
  %v43 = vmul.f32 %v41, %v41
  %v44 = vmul.f32 %v42, %v42
  %v45 = vsel %vm31, %v43, 0.0
  %46 = vadd.xlane.f32.xlu0 %v45
  %v47 = vpop.xlane.xlu0 %46
  %v48 = vsel %vm31, %v44, 0.0
  %49 = vadd.xlane.f32.xlu0 %v48
  %v50 = vpop.xlane.xlu0 %49
  %v51 = vmul.f32 %v47, %v38
  %v52 = vmul.f32 %v50, %v38
  %v53 = vadd.f32 %v51, 1e-05
  %v54 = vadd.f32 %v52, 1e-05
  %v55 = vrsqrt.pop %v53
  %v56 = vrsqrt.pop %v54
  %v57 = vmul.f32 %v41, %v55
  %v58 = vmul.f32 %v42, %v56
  %v60 = vlaneseq
  %v61 = vshrl.u32 %v60, 7
  %v62 = vsub.s32 0, %v61
  %v63 = vrot.slane %v29, %v62
  %v65 = vmul.f32 %v57, %v63
  %v66 = vmul.f32 %v58, %v63
  %v68 = vlaneseq
  %v69 = vshrl.u32 %v68, 7
  %v70 = vsub.s32 0, %v69
  %v71 = vrot.slane %v30, %v70
  %v73 = vadd.f32 %v65, %v71
  %v74 = vadd.f32 %v66, %v71
  %v75 = vpack.c.bf16 %v74, %v73
  %v76 = vld [vmem:[%s3] sm:$0xf]
  %v77 = vld [vmem:[%s3 + $0x4] sm:$0xf]
  %v78 = vld [vmem:[%s3 + $0x8] sm:$0xf]
  %v79 = vld [vmem:[%s3 + $0xc] sm:$0xf]
  %v80 = vld [vmem:[%s4] sm:$0x1]
  %v82 = vlaneseq
  %v83 = vshrl.u32 %v82, 7
  %v84 = vsub.s32 0, %v83
  %v85 = vrot.slane %v80, %v84
  %v91 = vunpack.c.l.b16 %v76
  %v92 = vunpack.c.l.b16 %v77
  %v93 = vunpack.c.l.b16 %v78
  %v94 = vunpack.c.l.b16 %v79
  %v95 = vpack.c.b16 %v92, %v91
  %v96 = vpack.c.b16 %v94, %v93
  %v100 = vsel %vm31, %v75, 0
  %102 = vmatprep.subr.bf16.mxu0 0
  %103 = vmatpush1.bf16.msra.mxu0 0
  %104 = vmatprep.subr.bf16.mxu0 0
  %105 = vmatpush1.bf16.msra.mxu0 0
  %106 = vmatprep.subr.bf16.mxu0 0
  %107 = vmatpush1.bf16.msra.mxu0 0
  %108 = vmatprep.subr.bf16.mxu0 0
  %109 = vmatpush1.bf16.msra.mxu0 0
  %110 = vmatprep.subr.bf16.mxu0 0
  %111 = vmatpush1.bf16.msra.mxu0 0
  %112 = vmatprep.subr.bf16.mxu0 0
  %113 = vmatpush1.bf16.msra.mxu0 0
  %114 = vmatprep.subr.bf16.mxu0 0
  %115 = vmatpush1.bf16.msra.mxu0 %v96
  %116 = vmatprep.subr.bf16.mxu0 0
  %117 = vmatpush1.bf16.msra.mxu0 %v95
  %118 = vmatprep.subr.bf16.mxu0 0
  %119 = vmatpush2.bf16.msra.mxu0 0
  %120 = vmatprep.subr.bf16.mxu0 0
  %121 = vmatpush2.bf16.msra.mxu0 0
  %122 = vmatprep.subr.bf16.mxu0 0
  %123 = vmatpush2.bf16.msra.mxu0 0
  %124 = vmatprep.subr.bf16.mxu0 0
  %125 = vmatpush2.bf16.msra.mxu0 0
  %126 = vmatprep.subr.bf16.mxu0 0
  %127 = vmatpush2.bf16.msra.mxu0 0
  %128 = vmatprep.subr.bf16.mxu0 0
  %129 = vmatpush2.bf16.msra.mxu0 0
  %130 = vmatprep.subr.bf16.mxu0 0
  %131 = vmatpush2.bf16.msra.mxu0 0
  %132 = vmatprep.subr.bf16.mxu0 0
  %133 = vmatpush2.bf16.msra.mxu0 0
  %134 = vmatprep.mubr.bf16.mxu0 0
  %135 = vmatmul.mubr.bf16.gmra.mxu0 %v100
  %v136 = vpop.f32.mrf.mxu0
  %v137 = vadd.f32 %v85, %v136
  %v138 = vpop.f32.mrf.mxu0
  %v139 = vpop.f32.mrf.mxu0
  %v140 = vadd.f32 %v85, %v139
  %v141 = vpop.f32.mrf.mxu0
  %142 = vdwg.mxu0
  %v143 = vxor.u32 %v137, 2147483648
  %v144 = vxor.u32 %v140, 2147483648
  %v145 = vmul.f32 %v143, 1.442695
  %v146 = vpow.pop %v145
  %v147 = vmul.f32 %v144, 1.442695
  %v148 = vpow.pop %v147
  %v149 = vadd.f32 %v146, 1.0
  %v150 = vadd.f32 %v148, 1.0
  %v151 = vrcp.pop %v149
  %v152 = vmul.f32 1.0, %v151
  %v153 = vrcp.pop %v150
  %v154 = vmul.f32 1.0, %v153
  %v155 = vmul.f32 %v137, %v152
  %v156 = vmul.f32 %v140, %v154
  %v157 = vpack.c.bf16 %v156, %v155
  %v158 = vld [vmem:[%s5] sm:$0xf]
  %v159 = vld [vmem:[%s5 + $0x4] sm:$0xf]
  %v160 = vld [vmem:[%s5 + $0x8] sm:$0xf]
  %v161 = vld [vmem:[%s5 + $0xc] sm:$0xf]
  %v162 = vld [vmem:[%s5 + $0x10] sm:$0xf]
  %v163 = vld [vmem:[%s5 + $0x14] sm:$0xf]
  %v164 = vld [vmem:[%s5 + $0x18] sm:$0xf]
  %v165 = vld [vmem:[%s5 + $0x1c] sm:$0xf]
  %v166 = vld [vmem:[%s6] sm:$0x1]
  %v168 = vlaneseq
  %v169 = vshrl.u32 %v168, 7
  %v170 = vsub.s32 0, %v169
  %v171 = vrot.slane %v166, %v170
  %v181 = vunpack.c.l.b16 %v158
  %v182 = vunpack.c.l.b16 %v159
  %v183 = vunpack.c.l.b16 %v160
  %v184 = vunpack.c.l.b16 %v161
  %v185 = vunpack.c.l.b16 %v162
  %v186 = vunpack.c.l.b16 %v163
  %v187 = vunpack.c.l.b16 %v164
  %v188 = vunpack.c.l.b16 %v165
  %v189 = vpack.c.b16 %v182, %v181
  %v190 = vpack.c.b16 %v184, %v183
  %v191 = vpack.c.b16 %v186, %v185
  %v192 = vpack.c.b16 %v188, %v187
  %vm197 = vcmask 523264
  %v199 = vsel %vm197, %v157, 0
  %201 = vmatprep.subr.bf16.mxu0 0
  %202 = vmatpush1.bf16.msra.mxu0 0
  %203 = vmatprep.subr.bf16.mxu0 0
  %204 = vmatpush1.bf16.msra.mxu0 0
  %205 = vmatprep.subr.bf16.mxu0 0
  %206 = vmatpush1.bf16.msra.mxu0 0
  %207 = vmatprep.subr.bf16.mxu0 0
  %208 = vmatpush1.bf16.msra.mxu0 0
  %209 = vmatprep.subr.bf16.mxu0 0
  %210 = vmatpush1.bf16.msra.mxu0 %v192
  %211 = vmatprep.subr.bf16.mxu0 0
  %212 = vmatpush1.bf16.msra.mxu0 %v191
  %213 = vmatprep.subr.bf16.mxu0 0
  %214 = vmatpush1.bf16.msra.mxu0 %v190
  %215 = vmatprep.subr.bf16.mxu0 0
  %216 = vmatpush1.bf16.msra.mxu0 %v189
  %217 = vmatprep.subr.bf16.mxu0 0
  %218 = vmatpush2.bf16.msra.mxu0 0
  %219 = vmatprep.subr.bf16.mxu0 0
  %220 = vmatpush2.bf16.msra.mxu0 0
  %221 = vmatprep.subr.bf16.mxu0 0
  %222 = vmatpush2.bf16.msra.mxu0 0
  %223 = vmatprep.subr.bf16.mxu0 0
  %224 = vmatpush2.bf16.msra.mxu0 0
  %225 = vmatprep.subr.bf16.mxu0 0
  %226 = vmatpush2.bf16.msra.mxu0 0
  %227 = vmatprep.subr.bf16.mxu0 0
  %228 = vmatpush2.bf16.msra.mxu0 0
  %229 = vmatprep.subr.bf16.mxu0 0
  %230 = vmatpush2.bf16.msra.mxu0 0
  %231 = vmatprep.subr.bf16.mxu0 0
  %232 = vmatpush2.bf16.msra.mxu0 0
  %233 = vmatprep.mubr.bf16.mxu0 0
  %234 = vmatmul.mubr.bf16.gmra.mxu0 %v199
  %v235 = vpop.f32.mrf.mxu0
  %v236 = vadd.f32 %v171, %v235
  %v237 = vpop.f32.mrf.mxu0
  %v238 = vpop.f32.mrf.mxu0
  %v239 = vadd.f32 %v171, %v238
  %v240 = vpop.f32.mrf.mxu0
  %241 = vdwg.mxu0
  %v242 = vmul.f32 %v236, 0.5
  %v243 = vmul.f32 %v239, 0.5
  %v244 = vadd.f32 %v27, %v242
  %v245 = vadd.f32 %v28, %v243
  %246 = vst.msk [vmem:[%s7] sm:$0xff] %vm31, %v244
  %247 = vst.msk [vmem:[%s7 + $0x8] sm:$0xff] %vm31, %v245
  // Predicated region
  $region30: #{conformer_separator_forward.13} parent=0 // pred_check
    _
  $region31: #{conformer_separator_forward.13} parent=0 // pred_check_branch
    %249 = sbr.rel (0) target = $region33
  $region32: #{conformer_separator_forward.13} parent=0 // pred_region
    _
  $region33: #{conformer_separator_forward.13} parent=0 // pred_fallthru
    _
  // Predicated region
  $region34: #{conformer_separator_forward.13} parent=0 // pred_check
    _
  $region35: #{conformer_separator_forward.13} parent=0 // pred_check_branch
    %251 = sbr.rel (0) target = $region37
  $region36: #{conformer_separator_forward.13} parent=0 // pred_region
    _
  $region37: #{conformer_separator_forward.13} parent=0 // pred_fallthru
    _

// kernel: conformer_separator_forward.12
$region0: #{conformer_separator_forward.12}
  #allocation0 [shape = 'u32[]', space=smem, size = 0x4, offset = 0x4, fixed_abs, tag = 'smem constant byte address 0x4 - core index']
  #allocation1 [shape = 'u32[144,128]{1,0:T(1,128)}', space=vmem, size = 0x12000, scoped, tag = 'internal scratch']
  %s0 = inlined_call_operand.vmem [shape: f32[2,8,16], index: 0, kind: input, shape index: {}]
  %s1 = inlined_call_operand.vmem [shape: bf16[16,32], index: 1, kind: input, shape index: {}]
  %s2 = inlined_call_operand.vmem [shape: f32[1,32], index: 2, kind: input, shape index: {}]
  %s3 = inlined_call_operand.vmem [shape: f32[1,32], index: 3, kind: input, shape index: {}]
  %s4 = inlined_call_operand.vmem [shape: f32[1,32], index: 4, kind: input, shape index: {}]
  %s5 = inlined_call_operand.vmem [shape: f32[512,32], index: 5, kind: input, shape index: {}]
  %s6 = inlined_call_operand.vmem [shape: f32[2,8,32], index: 6, kind: output, shape index: {}]
  %s7 = sld [smem:[#allocation0]]
  $region57: #{conformer_separator_forward.12} parent=0
    _
  %s9 = ssub.s32 1, %s7
  %s10 = scalar_select 0, %s9, %s7
  loop: start=0, step=1, limit=4
  $region2: #{conformer_separator_forward.12} parent=0 // loop_pre_header
    _
  $region3: #{conformer_separator_forward.12} parent=0 // loop_header
    %s12 = sphi 0, %s16
    %p13 = scmp.ge.s32.totalorder %s12, 4
    %s19 = sphi 0, %s31
    %s20 = sphi 0, %s27
    %s21 = sphi 0, %s19
    %s22 = sphi 0, %s20
    %s23 = sphi 0, %s21
    %s24 = sphi 0, %s22
    %s36 = sphi 0, %s38
    %s39 = sphi 0, %s36
    %s40 = sphi 0, %s39
    %s56 = sphi 0, %s40
    %s60 = sphi 0, %s60
    %s62 = sphi 0, %s60
    %s63 = sphi 0, %s62
    %s77 = sphi 0, %s63
    %s81 = sphi 0, %s81
    %s83 = sphi 0, %s81
    %s84 = sphi 0, %s83
    %s98 = sphi 0, %s84
    %s102 = sphi 0, %s102
    %s104 = sphi 0, %s102
    %s105 = sphi 0, %s104
    %s119 = sphi 0, %s105
    %s123 = sphi 0, %s123
    %s125 = sphi 0, %s123
    %s126 = sphi 0, %s125
    %s140 = sphi 0, %s126
    %s146 = sphi 0, %s148
    %s149 = sphi 0, %s146
    %s150 = sphi 0, %s149
    %s166 = sphi 0, %s150
    %s174 = sphi 0, %s176
    %s177 = sphi 0, %s174
    %s178 = sphi 0, %s177
    %s194 = sphi 0, %s178
  $region4: #{conformer_separator_forward.12} parent=0 // loop_header_branch
    %15 = sbr.rel (%p13) target = $region8
  $region5: #{conformer_separator_forward.12} parent=0 // loop_body
    %s17 = ssub.s32 %s12, 1
    %s18 = ssub.s32 %s12, 2
    %s25 = sadd.s32 1, %s20
    %p26 = scmp.ge.s32.totalorder %s25, 1
    %s27 = scalar_select %p26, 0, %s25
    %s28 = sadd.s32 1, %s19
    %s29 = scalar_select %p26, %s28, %s19
    %p30 = scmp.ge.s32.totalorder %s29, 2
    %s31 = scalar_select %p30, 0, %s29
    %s32 = ssub.s32 %s19, %s31
    %s33 = ssub.s32 %s20, %s27
    %s34 = sor.u32 %s32, %s33
    %p35 = scmp.eq.s32.totalorder %s34, 0
    %s37 = sadd.s32 %s36, 1
    %s38 = scalar_select %p35, %s36, %s37
    %p41 = pneg %p35
    %p42 = scmp.eq.s32.totalorder %s12, 1
    %p43 = por %p41, %p42
    %p44 = scmp.ne.s32.totalorder %s36, %s39
    %p45 = scmp.eq.s32.totalorder %s12, 0
    %p46 = por %p44, %p45
    %p47 = scmp.ne.s32.totalorder %s36, %s39
    %p48 = scmp.eq.s32.totalorder %s17, 1
    %p49 = por %p47, %p48
    %p50 = scmp.ne.s32.totalorder %s39, %s40
    %p51 = scmp.eq.s32.totalorder %s17, 0
    %p52 = por %p50, %p51
    %p53 = scmp.ne.s32.totalorder %s39, %s40
    %p54 = scmp.eq.s32.totalorder %s18, 1
    %p55 = por %p53, %p54
    %p57 = scmp.ne.s32.totalorder %s40, %s56
    %p58 = scmp.eq.s32.totalorder %s18, 0
    %p59 = por %p57, %p58
    %s61 = sadd.s32 %s60, 1
    %p64 = scmp.eq.s32.totalorder %s12, 1
    %p65 = scmp.ne.s32.totalorder %s60, %s62
    %p66 = scmp.eq.s32.totalorder %s12, 0
    %p67 = por %p65, %p66
    %p68 = scmp.ne.s32.totalorder %s60, %s62
    %p69 = scmp.eq.s32.totalorder %s17, 1
    %p70 = por %p68, %p69
    %p71 = scmp.ne.s32.totalorder %s62, %s63
    %p72 = scmp.eq.s32.totalorder %s17, 0
    %p73 = por %p71, %p72
    %p74 = scmp.ne.s32.totalorder %s62, %s63
    %p75 = scmp.eq.s32.totalorder %s18, 1
    %p76 = por %p74, %p75
    %p78 = scmp.ne.s32.totalorder %s63, %s77
    %p79 = scmp.eq.s32.totalorder %s18, 0
    %p80 = por %p78, %p79
    %s82 = sadd.s32 %s81, 1
    %p85 = scmp.eq.s32.totalorder %s12, 1
    %p86 = scmp.ne.s32.totalorder %s81, %s83
    %p87 = scmp.eq.s32.totalorder %s12, 0
    %p88 = por %p86, %p87
    %p89 = scmp.ne.s32.totalorder %s81, %s83
    %p90 = scmp.eq.s32.totalorder %s17, 1
    %p91 = por %p89, %p90
    %p92 = scmp.ne.s32.totalorder %s83, %s84
    %p93 = scmp.eq.s32.totalorder %s17, 0
    %p94 = por %p92, %p93
    %p95 = scmp.ne.s32.totalorder %s83, %s84
    %p96 = scmp.eq.s32.totalorder %s18, 1
    %p97 = por %p95, %p96
    %p99 = scmp.ne.s32.totalorder %s84, %s98
    %p100 = scmp.eq.s32.totalorder %s18, 0
    %p101 = por %p99, %p100
    %s103 = sadd.s32 %s102, 1
    %p106 = scmp.eq.s32.totalorder %s12, 1
    %p107 = scmp.ne.s32.totalorder %s102, %s104
    %p108 = scmp.eq.s32.totalorder %s12, 0
    %p109 = por %p107, %p108
    %p110 = scmp.ne.s32.totalorder %s102, %s104
    %p111 = scmp.eq.s32.totalorder %s17, 1
    %p112 = por %p110, %p111
    %p113 = scmp.ne.s32.totalorder %s104, %s105
    %p114 = scmp.eq.s32.totalorder %s17, 0
    %p115 = por %p113, %p114
    %p116 = scmp.ne.s32.totalorder %s104, %s105
    %p117 = scmp.eq.s32.totalorder %s18, 1
    %p118 = por %p116, %p117
    %p120 = scmp.ne.s32.totalorder %s105, %s119
    %p121 = scmp.eq.s32.totalorder %s18, 0
    %p122 = por %p120, %p121
    %s124 = sadd.s32 %s123, 1
    %p127 = scmp.eq.s32.totalorder %s12, 1
    %p128 = scmp.ne.s32.totalorder %s123, %s125
    %p129 = scmp.eq.s32.totalorder %s12, 0
    %p130 = por %p128, %p129
    %p131 = scmp.ne.s32.totalorder %s123, %s125
    %p132 = scmp.eq.s32.totalorder %s17, 1
    %p133 = por %p131, %p132
    %p134 = scmp.ne.s32.totalorder %s125, %s126
    %p135 = scmp.eq.s32.totalorder %s17, 0
    %p136 = por %p134, %p135
    %p137 = scmp.ne.s32.totalorder %s125, %s126
    %p138 = scmp.eq.s32.totalorder %s18, 1
    %p139 = por %p137, %p138
    %p141 = scmp.ne.s32.totalorder %s126, %s140
    %p142 = scmp.eq.s32.totalorder %s18, 0
    %p143 = por %p141, %p142
    %s144 = ssub.s32 %s20, %s27
    %p145 = scmp.eq.s32.totalorder %s144, 0
    %s147 = sadd.s32 %s146, 1
    %s148 = scalar_select %p145, %s146, %s147
    %p151 = pneg %p145
    %p152 = scmp.eq.s32.totalorder %s12, 1
    %p153 = por %p151, %p152
    %p154 = scmp.ne.s32.totalorder %s146, %s149
    %p155 = scmp.eq.s32.totalorder %s12, 0
    %p156 = por %p154, %p155
    %p157 = scmp.ne.s32.totalorder %s146, %s149
    %p158 = scmp.eq.s32.totalorder %s17, 1
    %p159 = por %p157, %p158
    %p160 = scmp.ne.s32.totalorder %s149, %s150
    %p161 = scmp.eq.s32.totalorder %s17, 0
    %p162 = por %p160, %p161
    %p163 = scmp.ne.s32.totalorder %s149, %s150
    %p164 = scmp.eq.s32.totalorder %s18, 1
    %p165 = por %p163, %p164
    %p167 = scmp.ne.s32.totalorder %s150, %s166
    %p168 = scmp.eq.s32.totalorder %s18, 0
    %p169 = por %p167, %p168
    %s170 = ssub.s32 %s19, %s31
    %s171 = ssub.s32 %s20, %s27
    %s172 = sor.u32 %s170, %s171
    %p173 = scmp.eq.s32.totalorder %s172, 0
    %s175 = sadd.s32 %s174, 1
    %s176 = scalar_select %p173, %s174, %s175
    %p179 = pneg %p173
    %p180 = scmp.eq.s32.totalorder %s12, 1
    %p181 = por %p179, %p180
    %p182 = scmp.ne.s32.totalorder %s174, %s177
    %p183 = scmp.eq.s32.totalorder %s12, 0
    %p184 = por %p182, %p183
    %p185 = scmp.ne.s32.totalorder %s174, %s177
    %p186 = scmp.eq.s32.totalorder %s17, 1
    %p187 = por %p185, %p186
    %p188 = scmp.ne.s32.totalorder %s177, %s178
    %p189 = scmp.eq.s32.totalorder %s17, 0
    %p190 = por %p188, %p189
    %p191 = scmp.ne.s32.totalorder %s177, %s178
    %p192 = scmp.eq.s32.totalorder %s18, 1
    %p193 = por %p191, %p192
    %p195 = scmp.ne.s32.totalorder %s178, %s194
    %p196 = scmp.eq.s32.totalorder %s18, 0
    %p197 = por %p195, %p196
    %p198 = scmp.le.s32.totalorder 1, %s12
    %p199 = scmp.lt.s32.totalorder %s12, 3
    %p200 = pnand %p198, %p199
    %p201 = pneg %p200
    // Predicated region
    $region9: #{conformer_separator_forward.12} parent=5 // pred_check
      _
    $region10: #{conformer_separator_forward.12} parent=5 // pred_check_branch
      %203 = sbr.rel (%p200) target = $region12
    $region11: #{conformer_separator_forward.12} parent=5 // pred_region
      %s204 = ssub.s32 %s12, 1
      // Predicated region
      $region13: #{conformer_separator_forward.12} parent=11 // pred_check
        %p205 = pneg %p73
      $region14: #{conformer_separator_forward.12} parent=11 // pred_check_branch
        %207 = sbr.rel (%p205) target = $region16
      $region15: #{conformer_separator_forward.12} parent=11 // pred_region
        _
      $region16: #{conformer_separator_forward.12} parent=11 // pred_fallthru
        _
      // Predicated region
      $region17: #{conformer_separator_forward.12} parent=11 // pred_check
        %p208 = pneg %p94
      $region18: #{conformer_separator_forward.12} parent=11 // pred_check_branch
        %210 = sbr.rel (%p208) target = $region20
      $region19: #{conformer_separator_forward.12} parent=11 // pred_region
        _
      $region20: #{conformer_separator_forward.12} parent=11 // pred_fallthru
        _
      // Predicated region
      $region21: #{conformer_separator_forward.12} parent=11 // pred_check
        %p211 = pneg %p115
      $region22: #{conformer_separator_forward.12} parent=11 // pred_check_branch
        %213 = sbr.rel (%p211) target = $region24
      $region23: #{conformer_separator_forward.12} parent=11 // pred_region
        _
      $region24: #{conformer_separator_forward.12} parent=11 // pred_fallthru
        _
      // Predicated region
      $region25: #{conformer_separator_forward.12} parent=11 // pred_check
        %p214 = pneg %p136
      $region26: #{conformer_separator_forward.12} parent=11 // pred_check_branch
        %216 = sbr.rel (%p214) target = $region28
      $region27: #{conformer_separator_forward.12} parent=11 // pred_region
        _
      $region28: #{conformer_separator_forward.12} parent=11 // pred_fallthru
        _
      // Predicated region
      $region29: #{conformer_separator_forward.12} parent=11 // pred_check
        %p217 = pneg %p162
      $region30: #{conformer_separator_forward.12} parent=11 // pred_check_branch
        %219 = sbr.rel (%p217) target = $region32
      $region31: #{conformer_separator_forward.12} parent=11 // pred_region
        %p220 = scmp.lt.s32.totalorder %s22, 63
        %s221 = scalar_select %p220, %s22, 63
        %s222 = smul.addr %s221, 8
        %s223 = scalar_lea.vmem %s5, %s222
      $region32: #{conformer_separator_forward.12} parent=11 // pred_fallthru
        _
    $region12: #{conformer_separator_forward.12} parent=5 // pred_fallthru
      _
    %p224 = scmp.lt.s32.totalorder %s12, 2
    // Predicated region
    $region33: #{conformer_separator_forward.12} parent=5 // pred_check
      %p225 = pneg %p224
    $region34: #{conformer_separator_forward.12} parent=5 // pred_check_branch
      %227 = sbr.rel (%p225) target = $region36
    $region35: #{conformer_separator_forward.12} parent=5 // pred_region
      // Predicated region
      $region37: #{conformer_separator_forward.12} parent=35 // pred_check
        %p228 = pneg %p46
      $region38: #{conformer_separator_forward.12} parent=35 // pred_check_branch
        %230 = sbr.rel (%p228) target = $region40
      $region39: #{conformer_separator_forward.12} parent=35 // pred_region
        %p231 = scmp.lt.s32.totalorder %s19, 1
        %s232 = scalar_select %p231, %s19, 1
        %p233 = scmp.lt.s32.totalorder %s20, 0
        %s234 = scalar_select %p233, %s20, 0
        %s235 = sadd.s32 %s234, %s232
        %s236 = smul.addr %s235, 8
        %s237 = scalar_lea.vmem %s0, %s236
      $region40: #{conformer_separator_forward.12} parent=35 // pred_fallthru
        _
    $region36: #{conformer_separator_forward.12} parent=5 // pred_fallthru
      _
    %p238 = scmp.le.s32.totalorder 1, %s12
    %p239 = scmp.lt.s32.totalorder %s12, 3
    %p240 = pnand %p238, %p239
    %p241 = pneg %p240
    // Predicated region
    $region41: #{conformer_separator_forward.12} parent=5 // pred_check
      _
    $region42: #{conformer_separator_forward.12} parent=5 // pred_check_branch
      %243 = sbr.rel (%p240) target = $region44
    $region43: #{conformer_separator_forward.12} parent=5 // pred_region
      %s244 = ssub.s32 %s12, 1
      %p245 = scmp.lt.s32.totalorder %s21, 1
      %s246 = scalar_select %p245, %s21, 1
      %p247 = scmp.lt.s32.totalorder %s22, 0
      %s248 = scalar_select %p247, %s22, 0
      %s249 = sadd.s32 %s248, %s246
      %s250 = smul.addr %s249, 8
      %s251 = scalar_lea.vmem %s0, %s250
      %p252 = pneg %p52
      %p253 = pneg %p49
      %p254 = pneg %p73
      %p255 = pneg %p70
      %p256 = pneg %p94
      %p257 = pneg %p91
      %p258 = pneg %p115
      %p259 = pneg %p112
      %p260 = pneg %p136
      %p261 = pneg %p133
      %p262 = scmp.lt.s32.totalorder %s22, 63
      %s263 = scalar_select %p262, %s22, 63
      %s264 = smul.addr %s263, 8
      %s265 = scalar_lea.vmem %s5, %s264
      %p266 = pneg %p162
      %p267 = pneg %p159
      %p268 = pneg %p190
      %p269 = pneg %p187
      %p270 = scmp.lt.s32.totalorder %s21, 1
      %s271 = scalar_select %p270, %s21, 1
      %p272 = scmp.lt.s32.totalorder %s22, 0
      %s273 = scalar_select %p272, %s22, 0
      %s274 = sadd.s32 %s273, %s271
      %s275 = smul.addr %s274, 8
      %s276 = scalar_lea.vmem %s6, %s275
      %p277 = scmp.lt.s32.totalorder %s21, 1
      %s278 = scalar_select %p277, %s21, 1
      %p279 = scmp.lt.s32.totalorder %s22, 0
      %s280 = scalar_select %p279, %s22, 0
      %s281 = sadd.s32 %s280, %s278
      %s282 = smul.addr %s281, 8
      %s283 = scalar_lea.vmem %s0, %s282
      %p284 = scmp.lt.s32.totalorder %s22, 63
      %s285 = scalar_select %p284, %s22, 63
      %s286 = smul.addr %s285, 8
      %s287 = scalar_lea.vmem %s5, %s286
      %p288 = scmp.lt.s32.totalorder %s21, 1
      %s289 = scalar_select %p288, %s21, 1
      %p290 = scmp.lt.s32.totalorder %s22, 0
      %s291 = scalar_select %p290, %s22, 0
      %s292 = sadd.s32 %s291, %s289
      %s293 = smul.addr %s292, 8
      %s294 = scalar_lea.vmem %s6, %s293
      %v296 = vld [vmem:[%s283] sm:$0xff]
      %v297 = vpack.c.bf16 %v296, %v296
      %v298 = vld [vmem:[%s1] sm:$0xf]
      %v299 = vld [vmem:[%s1 + $0x4] sm:$0xf]
      %v300 = vld [vmem:[%s2] sm:$0x1]
      %v302 = vlaneseq
      %v303 = vshrl.u32 %v302, 7
      %v304 = vsub.s32 0, %v303
      %v305 = vrot.slane %v300, %v304
      %v309 = vunpack.c.l.b16 %v298
      %v310 = vunpack.c.l.b16 %v299
      %v311 = vpack.c.b16 %v310, %v309
      %vm313 = vcmask 130048
      %v315 = vsel %vm313, %v297, 0
      %317 = vmatprep.subr.bf16.mxu0 0
      %318 = vmatpush1.bf16.msra.mxu0 0
      %319 = vmatprep.subr.bf16.mxu0 0
      %320 = vmatpush1.bf16.msra.mxu0 0
      %321 = vmatprep.subr.bf16.mxu0 0
      %322 = vmatpush1.bf16.msra.mxu0 0
      %323 = vmatprep.subr.bf16.mxu0 0
      %324 = vmatpush1.bf16.msra.mxu0 0
      %325 = vmatprep.subr.bf16.mxu0 0
      %326 = vmatpush1.bf16.msra.mxu0 0
      %327 = vmatprep.subr.bf16.mxu0 0
      %328 = vmatpush1.bf16.msra.mxu0 0
      %329 = vmatprep.subr.bf16.mxu0 0
      %330 = vmatpush1.bf16.msra.mxu0 0
      %331 = vmatprep.subr.bf16.mxu0 0
      %332 = vmatpush1.bf16.msra.mxu0 %v311
      %333 = vmatprep.subr.bf16.mxu0 0
      %334 = vmatpush2.bf16.msra.mxu0 0
      %335 = vmatprep.subr.bf16.mxu0 0
      %336 = vmatpush2.bf16.msra.mxu0 0
      %337 = vmatprep.subr.bf16.mxu0 0
      %338 = vmatpush2.bf16.msra.mxu0 0
      %339 = vmatprep.subr.bf16.mxu0 0
      %340 = vmatpush2.bf16.msra.mxu0 0
      %341 = vmatprep.subr.bf16.mxu0 0
      %342 = vmatpush2.bf16.msra.mxu0 0
      %343 = vmatprep.subr.bf16.mxu0 0
      %344 = vmatpush2.bf16.msra.mxu0 0
      %345 = vmatprep.subr.bf16.mxu0 0
      %346 = vmatpush2.bf16.msra.mxu0 0
      %347 = vmatprep.subr.bf16.mxu0 0
      %348 = vmatpush2.bf16.msra.mxu0 0
      %349 = vmatprep.mubr.bf16.mxu0 0
      %350 = vmatmul.mubr.bf16.gmra.mxu0 %v315
      %v351 = vpop.f32.mrf.mxu0
      %v352 = vadd.f32 %v305, %v351
      %v353 = vpop.f32.mrf.mxu0
      %v354 = vpop.f32.mrf.mxu0
      %v355 = vpop.f32.mrf.mxu0
      %356 = vdwg.mxu0
      %v357 = vld [vmem:[%s3] sm:$0x1]
      %v358 = vld [vmem:[%s4] sm:$0x1]
      %vm359 = vcmask 261120
      %v360 = vsel %vm359, %v352, 0.0
      %361 = vadd.xlane.f32.xlu0 %v360
      %v362 = vpop.xlane.xlu0 %361
      %v363 = vrcp.pop 32.0
      %v364 = vmul.f32 %v362, %v363
      %v365 = vsub.f32 %v352, %v364
      %v366 = vmul.f32 %v365, %v365
      %v367 = vsel %vm359, %v366, 0.0
      %368 = vadd.xlane.f32.xlu0 %v367
      %v369 = vpop.xlane.xlu0 %368
      %v370 = vmul.f32 %v369, %v363
      %v371 = vadd.f32 %v370, 1e-05
      %v372 = vrsqrt.pop %v371
      %v373 = vmul.f32 %v365, %v372
      %v375 = vlaneseq
      %v376 = vshrl.u32 %v375, 7
      %v377 = vsub.s32 0, %v376
      %v378 = vrot.slane %v357, %v377
      %v380 = vmul.f32 %v373, %v378
      %v382 = vlaneseq
      %v383 = vshrl.u32 %v382, 7
      %v384 = vsub.s32 0, %v383
      %v385 = vrot.slane %v358, %v384
      %v387 = vadd.f32 %v380, %v385
      %v388 = vmax.f32 %v387, 0.0
      %v389 = vmul.f32 %v388, 5.656854
      %v390 = vld [vmem:[%s287] sm:$0xff]
      %v391 = vadd.f32 %v389, %v390
      %392 = vst.msk [vmem:[%s294] sm:$0xff] %vm359, %v391
      %p393 = scmp.lt.s32.totalorder %s21, 1
      %s394 = scalar_select %p393, %s21, 1
      %p395 = scmp.lt.s32.totalorder %s22, 0
      %s396 = scalar_select %p395, %s22, 0
      %s397 = sadd.s32 %s396, %s394
      %s398 = smul.addr %s397, 8
      %s399 = scalar_lea.vmem %s6, %s398
      // Predicated region
      $region45: #{conformer_separator_forward.12} parent=43 // pred_check
        %p400 = pneg %p187
      $region46: #{conformer_separator_forward.12} parent=43 // pred_check_branch
        %402 = sbr.rel (%p400) target = $region48
      $region47: #{conformer_separator_forward.12} parent=43 // pred_region
        _
      $region48: #{conformer_separator_forward.12} parent=43 // pred_fallthru
        _
    $region44: #{conformer_separator_forward.12} parent=5 // pred_fallthru
      _
    %p403 = scmp.le.s32.totalorder 2, %s12
    // Predicated region
    $region49: #{conformer_separator_forward.12} parent=5 // pred_check
      %p404 = pneg %p403
    $region50: #{conformer_separator_forward.12} parent=5 // pred_check_branch
      %406 = sbr.rel (%p404) target = $region52
    $region51: #{conformer_separator_forward.12} parent=5 // pred_region
      %s407 = ssub.s32 %s12, 2
      // Predicated region
      $region53: #{conformer_separator_forward.12} parent=51 // pred_check
        %p408 = pneg %p193
      $region54: #{conformer_separator_forward.12} parent=51 // pred_check_branch
        %410 = sbr.rel (%p408) target = $region56
      $region55: #{conformer_separator_forward.12} parent=51 // pred_region
        %p411 = scmp.lt.s32.totalorder %s23, 1
        %s412 = scalar_select %p411, %s23, 1
        %p413 = scmp.lt.s32.totalorder %s24, 0
        %s414 = scalar_select %p413, %s24, 0
        %s415 = sadd.s32 %s414, %s412
        %s416 = smul.addr %s415, 8
        %s417 = scalar_lea.vmem %s6, %s416
      $region56: #{conformer_separator_forward.12} parent=51 // pred_fallthru
        _
    $region52: #{conformer_separator_forward.12} parent=5 // pred_fallthru
      _
  $region6: #{conformer_separator_forward.12} parent=0 // loop_footer
    %s16 = sadd.s32 1, %s12
  $region7: #{conformer_separator_forward.12} parent=0 // loop_footer_branch
    %11 = sbr.rel target = $region3
  $region8: #{conformer_separator_forward.12} parent=0 // loop_exit
    _

// kernel: conformer_separator_forward.14
$region0: #{conformer_separator_forward.14}
  #allocation0 [shape = 'u32[]', space=smem, size = 0x4, offset = 0x4, fixed_abs, tag = 'smem constant byte address 0x4 - core index']
  #allocation1 [shape = 'u32[144,128]{1,0:T(1,128)}', space=vmem, size = 0x12000, scoped, tag = 'internal scratch']
  %s0 = inlined_call_operand.vmem [shape: f32[2,8,32], index: 0, kind: input, shape index: {}]
  %s1 = inlined_call_operand.vmem [shape: f32[1,32], index: 1, kind: input, shape index: {}]
  %s2 = inlined_call_operand.vmem [shape: f32[1,32], index: 2, kind: input, shape index: {}]
  %s3 = inlined_call_operand.vmem [shape: bf16[32,96], index: 3, kind: input, shape index: {}]
  %s4 = inlined_call_operand.vmem [shape: f32[1,96], index: 4, kind: input, shape index: {}]
  %s5 = inlined_call_operand.vmem [shape: bf16[2,4,8,24], index: 5, kind: output, shape index: {}]
  %s6 = sld [smem:[#allocation0]]
  $region53: #{conformer_separator_forward.14} parent=0
    _
  %s8 = ssub.s32 1, %s6
  %s9 = scalar_select 0, %s8, %s6
  loop: start=0, step=1, limit=4
  $region2: #{conformer_separator_forward.14} parent=0 // loop_pre_header
    _
  $region3: #{conformer_separator_forward.14} parent=0 // loop_header
    %s11 = sphi 0, %s15
    %p12 = scmp.ge.s32.totalorder %s11, 4
    %s18 = sphi 0, %s30
    %s19 = sphi 0, %s26
    %s20 = sphi 0, %s18
    %s21 = sphi 0, %s19
    %s22 = sphi 0, %s20
    %s23 = sphi 0, %s21
    %s35 = sphi 0, %s37
    %s38 = sphi 0, %s35
    %s39 = sphi 0, %s38
    %s55 = sphi 0, %s39
    %s59 = sphi 0, %s59
    %s61 = sphi 0, %s59
    %s62 = sphi 0, %s61
    %s76 = sphi 0, %s62
    %s80 = sphi 0, %s80
    %s82 = sphi 0, %s80
    %s83 = sphi 0, %s82
    %s97 = sphi 0, %s83
    %s101 = sphi 0, %s101
    %s103 = sphi 0, %s101
    %s104 = sphi 0, %s103
    %s118 = sphi 0, %s104
    %s122 = sphi 0, %s122
    %s124 = sphi 0, %s122
    %s125 = sphi 0, %s124
    %s139 = sphi 0, %s125
    %s147 = sphi 0, %s149
    %s150 = sphi 0, %s147
    %s151 = sphi 0, %s150
    %s167 = sphi 0, %s151
  $region4: #{conformer_separator_forward.14} parent=0 // loop_header_branch
    %14 = sbr.rel (%p12) target = $region8
  $region5: #{conformer_separator_forward.14} parent=0 // loop_body
    %s16 = ssub.s32 %s11, 1
    %s17 = ssub.s32 %s11, 2
    %s24 = sadd.s32 1, %s19
    %p25 = scmp.ge.s32.totalorder %s24, 1
    %s26 = scalar_select %p25, 0, %s24
    %s27 = sadd.s32 1, %s18
    %s28 = scalar_select %p25, %s27, %s18
    %p29 = scmp.ge.s32.totalorder %s28, 2
    %s30 = scalar_select %p29, 0, %s28
    %s31 = ssub.s32 %s18, %s30
    %s32 = ssub.s32 %s19, %s26
    %s33 = sor.u32 %s31, %s32
    %p34 = scmp.eq.s32.totalorder %s33, 0
    %s36 = sadd.s32 %s35, 1
    %s37 = scalar_select %p34, %s35, %s36
    %p40 = pneg %p34
    %p41 = scmp.eq.s32.totalorder %s11, 1
    %p42 = por %p40, %p41
    %p43 = scmp.ne.s32.totalorder %s35, %s38
    %p44 = scmp.eq.s32.totalorder %s11, 0
    %p45 = por %p43, %p44
    %p46 = scmp.ne.s32.totalorder %s35, %s38
    %p47 = scmp.eq.s32.totalorder %s16, 1
    %p48 = por %p46, %p47
    %p49 = scmp.ne.s32.totalorder %s38, %s39
    %p50 = scmp.eq.s32.totalorder %s16, 0
    %p51 = por %p49, %p50
    %p52 = scmp.ne.s32.totalorder %s38, %s39
    %p53 = scmp.eq.s32.totalorder %s17, 1
    %p54 = por %p52, %p53
    %p56 = scmp.ne.s32.totalorder %s39, %s55
    %p57 = scmp.eq.s32.totalorder %s17, 0
    %p58 = por %p56, %p57
    %s60 = sadd.s32 %s59, 1
    %p63 = scmp.eq.s32.totalorder %s11, 1
    %p64 = scmp.ne.s32.totalorder %s59, %s61
    %p65 = scmp.eq.s32.totalorder %s11, 0
    %p66 = por %p64, %p65
    %p67 = scmp.ne.s32.totalorder %s59, %s61
    %p68 = scmp.eq.s32.totalorder %s16, 1
    %p69 = por %p67, %p68
    %p70 = scmp.ne.s32.totalorder %s61, %s62
    %p71 = scmp.eq.s32.totalorder %s16, 0
    %p72 = por %p70, %p71
    %p73 = scmp.ne.s32.totalorder %s61, %s62
    %p74 = scmp.eq.s32.totalorder %s17, 1
    %p75 = por %p73, %p74
    %p77 = scmp.ne.s32.totalorder %s62, %s76
    %p78 = scmp.eq.s32.totalorder %s17, 0
    %p79 = por %p77, %p78
    %s81 = sadd.s32 %s80, 1
    %p84 = scmp.eq.s32.totalorder %s11, 1
    %p85 = scmp.ne.s32.totalorder %s80, %s82
    %p86 = scmp.eq.s32.totalorder %s11, 0
    %p87 = por %p85, %p86
    %p88 = scmp.ne.s32.totalorder %s80, %s82
    %p89 = scmp.eq.s32.totalorder %s16, 1
    %p90 = por %p88, %p89
    %p91 = scmp.ne.s32.totalorder %s82, %s83
    %p92 = scmp.eq.s32.totalorder %s16, 0
    %p93 = por %p91, %p92
    %p94 = scmp.ne.s32.totalorder %s82, %s83
    %p95 = scmp.eq.s32.totalorder %s17, 1
    %p96 = por %p94, %p95
    %p98 = scmp.ne.s32.totalorder %s83, %s97
    %p99 = scmp.eq.s32.totalorder %s17, 0
    %p100 = por %p98, %p99
    %s102 = sadd.s32 %s101, 1
    %p105 = scmp.eq.s32.totalorder %s11, 1
    %p106 = scmp.ne.s32.totalorder %s101, %s103
    %p107 = scmp.eq.s32.totalorder %s11, 0
    %p108 = por %p106, %p107
    %p109 = scmp.ne.s32.totalorder %s101, %s103
    %p110 = scmp.eq.s32.totalorder %s16, 1
    %p111 = por %p109, %p110
    %p112 = scmp.ne.s32.totalorder %s103, %s104
    %p113 = scmp.eq.s32.totalorder %s16, 0
    %p114 = por %p112, %p113
    %p115 = scmp.ne.s32.totalorder %s103, %s104
    %p116 = scmp.eq.s32.totalorder %s17, 1
    %p117 = por %p115, %p116
    %p119 = scmp.ne.s32.totalorder %s104, %s118
    %p120 = scmp.eq.s32.totalorder %s17, 0
    %p121 = por %p119, %p120
    %s123 = sadd.s32 %s122, 1
    %p126 = scmp.eq.s32.totalorder %s11, 1
    %p127 = scmp.ne.s32.totalorder %s122, %s124
    %p128 = scmp.eq.s32.totalorder %s11, 0
    %p129 = por %p127, %p128
    %p130 = scmp.ne.s32.totalorder %s122, %s124
    %p131 = scmp.eq.s32.totalorder %s16, 1
    %p132 = por %p130, %p131
    %p133 = scmp.ne.s32.totalorder %s124, %s125
    %p134 = scmp.eq.s32.totalorder %s16, 0
    %p135 = por %p133, %p134
    %p136 = scmp.ne.s32.totalorder %s124, %s125
    %p137 = scmp.eq.s32.totalorder %s17, 1
    %p138 = por %p136, %p137
    %p140 = scmp.ne.s32.totalorder %s125, %s139
    %p141 = scmp.eq.s32.totalorder %s17, 0
    %p142 = por %p140, %p141
    %s143 = ssub.s32 %s18, %s30
    %s144 = ssub.s32 %s19, %s26
    %s145 = sor.u32 %s143, %s144
    %p146 = scmp.eq.s32.totalorder %s145, 0
    %s148 = sadd.s32 %s147, 1
    %s149 = scalar_select %p146, %s147, %s148
    %p152 = pneg %p146
    %p153 = scmp.eq.s32.totalorder %s11, 1
    %p154 = por %p152, %p153
    %p155 = scmp.ne.s32.totalorder %s147, %s150
    %p156 = scmp.eq.s32.totalorder %s11, 0
    %p157 = por %p155, %p156
    %p158 = scmp.ne.s32.totalorder %s147, %s150
    %p159 = scmp.eq.s32.totalorder %s16, 1
    %p160 = por %p158, %p159
    %p161 = scmp.ne.s32.totalorder %s150, %s151
    %p162 = scmp.eq.s32.totalorder %s16, 0
    %p163 = por %p161, %p162
    %p164 = scmp.ne.s32.totalorder %s150, %s151
    %p165 = scmp.eq.s32.totalorder %s17, 1
    %p166 = por %p164, %p165
    %p168 = scmp.ne.s32.totalorder %s151, %s167
    %p169 = scmp.eq.s32.totalorder %s17, 0
    %p170 = por %p168, %p169
    %p171 = scmp.le.s32.totalorder 1, %s11
    %p172 = scmp.lt.s32.totalorder %s11, 3
    %p173 = pnand %p171, %p172
    %p174 = pneg %p173
    // Predicated region
    $region9: #{conformer_separator_forward.14} parent=5 // pred_check
      _
    $region10: #{conformer_separator_forward.14} parent=5 // pred_check_branch
      %176 = sbr.rel (%p173) target = $region12
    $region11: #{conformer_separator_forward.14} parent=5 // pred_region
      %s177 = ssub.s32 %s11, 1
      // Predicated region
      $region13: #{conformer_separator_forward.14} parent=11 // pred_check
        %p178 = pneg %p72
      $region14: #{conformer_separator_forward.14} parent=11 // pred_check_branch
        %180 = sbr.rel (%p178) target = $region16
      $region15: #{conformer_separator_forward.14} parent=11 // pred_region
        _
      $region16: #{conformer_separator_forward.14} parent=11 // pred_fallthru
        _
      // Predicated region
      $region17: #{conformer_separator_forward.14} parent=11 // pred_check
        %p181 = pneg %p93
      $region18: #{conformer_separator_forward.14} parent=11 // pred_check_branch
        %183 = sbr.rel (%p181) target = $region20
      $region19: #{conformer_separator_forward.14} parent=11 // pred_region
        _
      $region20: #{conformer_separator_forward.14} parent=11 // pred_fallthru
        _
      // Predicated region
      $region21: #{conformer_separator_forward.14} parent=11 // pred_check
        %p184 = pneg %p114
      $region22: #{conformer_separator_forward.14} parent=11 // pred_check_branch
        %186 = sbr.rel (%p184) target = $region24
      $region23: #{conformer_separator_forward.14} parent=11 // pred_region
        _
      $region24: #{conformer_separator_forward.14} parent=11 // pred_fallthru
        _
      // Predicated region
      $region25: #{conformer_separator_forward.14} parent=11 // pred_check
        %p187 = pneg %p135
      $region26: #{conformer_separator_forward.14} parent=11 // pred_check_branch
        %189 = sbr.rel (%p187) target = $region28
      $region27: #{conformer_separator_forward.14} parent=11 // pred_region
        _
      $region28: #{conformer_separator_forward.14} parent=11 // pred_fallthru
        _
    $region12: #{conformer_separator_forward.14} parent=5 // pred_fallthru
      _
    %p190 = scmp.lt.s32.totalorder %s11, 2
    // Predicated region
    $region29: #{conformer_separator_forward.14} parent=5 // pred_check
      %p191 = pneg %p190
    $region30: #{conformer_separator_forward.14} parent=5 // pred_check_branch
      %193 = sbr.rel (%p191) target = $region32
    $region31: #{conformer_separator_forward.14} parent=5 // pred_region
      // Predicated region
      $region33: #{conformer_separator_forward.14} parent=31 // pred_check
        %p194 = pneg %p45
      $region34: #{conformer_separator_forward.14} parent=31 // pred_check_branch
        %196 = sbr.rel (%p194) target = $region36
      $region35: #{conformer_separator_forward.14} parent=31 // pred_region
        %p197 = scmp.lt.s32.totalorder %s18, 1
        %s198 = scalar_select %p197, %s18, 1
        %p199 = scmp.lt.s32.totalorder %s19, 0
        %s200 = scalar_select %p199, %s19, 0
        %s201 = sadd.s32 %s200, %s198
        %s202 = smul.addr %s201, 8
        %s203 = scalar_lea.vmem %s0, %s202
      $region36: #{conformer_separator_forward.14} parent=31 // pred_fallthru
        _
    $region32: #{conformer_separator_forward.14} parent=5 // pred_fallthru
      _
    %p204 = scmp.le.s32.totalorder 1, %s11
    %p205 = scmp.lt.s32.totalorder %s11, 3
    %p206 = pnand %p204, %p205
    %p207 = pneg %p206
    // Predicated region
    $region37: #{conformer_separator_forward.14} parent=5 // pred_check
      _
    $region38: #{conformer_separator_forward.14} parent=5 // pred_check_branch
      %209 = sbr.rel (%p206) target = $region40
    $region39: #{conformer_separator_forward.14} parent=5 // pred_region
      %s210 = ssub.s32 %s11, 1
      %p211 = scmp.lt.s32.totalorder %s20, 1
      %s212 = scalar_select %p211, %s20, 1
      %p213 = scmp.lt.s32.totalorder %s21, 0
      %s214 = scalar_select %p213, %s21, 0
      %s215 = sadd.s32 %s214, %s212
      %s216 = smul.addr %s215, 8
      %s217 = scalar_lea.vmem %s0, %s216
      %p218 = pneg %p51
      %p219 = pneg %p48
      %p220 = pneg %p72
      %p221 = pneg %p69
      %p222 = pneg %p93
      %p223 = pneg %p90
      %p224 = pneg %p114
      %p225 = pneg %p111
      %p226 = pneg %p135
      %p227 = pneg %p132
      %p228 = pneg %p163
      %p229 = pneg %p160
      %p230 = scmp.lt.s32.totalorder %s20, 1
      %s231 = scalar_select %p230, %s20, 1
      %p232 = scmp.lt.s32.totalorder %s21, 0
      %s233 = scalar_select %p232, %s21, 0
      %s234 = smul.addr %s231, 4
      %s235 = sadd.s32 %s233, %s234
      %s236 = smul.addr %s235, 4
      %s237 = scalar_lea.vmem %s5, %s236
      %p238 = scmp.lt.s32.totalorder %s20, 1
      %s239 = scalar_select %p238, %s20, 1
      %p240 = scmp.lt.s32.totalorder %s21, 0
      %s241 = scalar_select %p240, %s21, 0
      %s242 = sadd.s32 %s241, %s239
      %s243 = smul.addr %s242, 8
      %s244 = scalar_lea.vmem %s0, %s243
      %p245 = scmp.lt.s32.totalorder %s20, 1
      %s246 = scalar_select %p245, %s20, 1
      %p247 = scmp.lt.s32.totalorder %s21, 0
      %s248 = scalar_select %p247, %s21, 0
      %s249 = smul.addr %s246, 4
      %s250 = sadd.s32 %s248, %s249
      %s251 = smul.addr %s250, 4
      %s252 = scalar_lea.vmem %s5, %s251
      %v254 = vld [vmem:[%s244] sm:$0xff]
      %v255 = vld [vmem:[%s1] sm:$0x1]
      %v256 = vld [vmem:[%s2] sm:$0x1]
      %vm257 = vcmask 261120
      %v258 = vsel %vm257, %v254, 0.0
      %259 = vadd.xlane.f32.xlu0 %v258
      %v260 = vpop.xlane.xlu0 %259
      %v261 = vrcp.pop 32.0
      %v262 = vmul.f32 %v260, %v261
      %v263 = vsub.f32 %v254, %v262
      %v264 = vmul.f32 %v263, %v263
      %v265 = vsel %vm257, %v264, 0.0
      %266 = vadd.xlane.f32.xlu0 %v265
      %v267 = vpop.xlane.xlu0 %266
      %v268 = vmul.f32 %v267, %v261
      %v269 = vadd.f32 %v268, 1e-05
      %v270 = vrsqrt.pop %v269
      %v271 = vmul.f32 %v263, %v270
      %v273 = vlaneseq
      %v274 = vshrl.u32 %v273, 7
      %v275 = vsub.s32 0, %v274
      %v276 = vrot.slane %v255, %v275
      %v278 = vmul.f32 %v271, %v276
      %v280 = vlaneseq
      %v281 = vshrl.u32 %v280, 7
      %v282 = vsub.s32 0, %v281
      %v283 = vrot.slane %v256, %v282
      %v285 = vadd.f32 %v278, %v283
      %v286 = vpack.c.bf16 %v285, %v285
      %v287 = vld [vmem:[%s3] sm:$0xf]
      %v288 = vld [vmem:[%s3 + $0x4] sm:$0xf]
      %v289 = vld [vmem:[%s3 + $0x8] sm:$0xf]
      %v290 = vld [vmem:[%s3 + $0xc] sm:$0xf]
      %v291 = vld [vmem:[%s4] sm:$0x1]
      %v293 = vlaneseq
      %v294 = vshrl.u32 %v293, 7
      %v295 = vsub.s32 0, %v294
      %v296 = vrot.slane %v291, %v295
      %v302 = vunpack.c.l.b16 %v287
      %v303 = vunpack.c.l.b16 %v288
      %v304 = vunpack.c.l.b16 %v289
      %v305 = vunpack.c.l.b16 %v290
      %v306 = vpack.c.b16 %v303, %v302
      %v307 = vpack.c.b16 %v305, %v304
      %v311 = vsel %vm257, %v286, 0
      %313 = vmatprep.subr.bf16.mxu0 0
      %314 = vmatpush1.bf16.msra.mxu0 0
      %315 = vmatprep.subr.bf16.mxu0 0
      %316 = vmatpush1.bf16.msra.mxu0 0
      %317 = vmatprep.subr.bf16.mxu0 0
      %318 = vmatpush1.bf16.msra.mxu0 0
      %319 = vmatprep.subr.bf16.mxu0 0
      %320 = vmatpush1.bf16.msra.mxu0 0
      %321 = vmatprep.subr.bf16.mxu0 0
      %322 = vmatpush1.bf16.msra.mxu0 0
      %323 = vmatprep.subr.bf16.mxu0 0
      %324 = vmatpush1.bf16.msra.mxu0 0
      %325 = vmatprep.subr.bf16.mxu0 0
      %326 = vmatpush1.bf16.msra.mxu0 %v307
      %327 = vmatprep.subr.bf16.mxu0 0
      %328 = vmatpush1.bf16.msra.mxu0 %v306
      %329 = vmatprep.subr.bf16.mxu0 0
      %330 = vmatpush2.bf16.msra.mxu0 0
      %331 = vmatprep.subr.bf16.mxu0 0
      %332 = vmatpush2.bf16.msra.mxu0 0
      %333 = vmatprep.subr.bf16.mxu0 0
      %334 = vmatpush2.bf16.msra.mxu0 0
      %335 = vmatprep.subr.bf16.mxu0 0
      %336 = vmatpush2.bf16.msra.mxu0 0
      %337 = vmatprep.subr.bf16.mxu0 0
      %338 = vmatpush2.bf16.msra.mxu0 0
      %339 = vmatprep.subr.bf16.mxu0 0
      %340 = vmatpush2.bf16.msra.mxu0 0
      %341 = vmatprep.subr.bf16.mxu0 0
      %342 = vmatpush2.bf16.msra.mxu0 0
      %343 = vmatprep.subr.bf16.mxu0 0
      %344 = vmatpush2.bf16.msra.mxu0 0
      %345 = vmatprep.mubr.bf16.mxu0 0
      %346 = vmatmul.mubr.bf16.gmra.mxu0 %v311
      %v347 = vpop.f32.mrf.mxu0
      %v348 = vadd.f32 %v296, %v347
      %v349 = vpop.f32.mrf.mxu0
      %v350 = vpop.f32.mrf.mxu0
      %v351 = vpop.f32.mrf.mxu0
      %352 = vdwg.mxu0
      %v353 = vpack.c.bf16 %v348, %v348
      %vm354 = vcmask 191488
      %355 = vst.msk [vmem:[%s252] sm:$0xf] %vm354, %v353
      %v357 = vunpack.c.l.b16 %v353
      %v358 = vpack.c.b16 %v357, %v357
      %359 = vrot.lane.b32.xlu0 %v358, 104
      %v360 = vpop.permute.xlu0 %359
      %s362 = scalar_lea.vmem %s252, 4
      %363 = vst.msk [vmem:[%s362] sm:$0xf] %vm354, %v360
      %364 = vrot.lane.b32.xlu0 %v358, 80
      %v365 = vpop.permute.xlu0 %364
      %s367 = scalar_lea.vmem %s252, 8
      %368 = vst.msk [vmem:[%s367] sm:$0xf] %vm354, %v365
      %369 = vrot.lane.b32.xlu0 %v358, 56
      %v370 = vpop.permute.xlu0 %369
      %s372 = scalar_lea.vmem %s252, 12
      %373 = vst.msk [vmem:[%s372] sm:$0xf] %vm354, %v370
      %p374 = scmp.lt.s32.totalorder %s20, 1
      %s375 = scalar_select %p374, %s20, 1
      %p376 = scmp.lt.s32.totalorder %s21, 0
      %s377 = scalar_select %p376, %s21, 0
      %s378 = smul.addr %s375, 4
      %s379 = sadd.s32 %s377, %s378
      %s380 = smul.addr %s379, 4
      %s381 = scalar_lea.vmem %s5, %s380
      // Predicated region
      $region41: #{conformer_separator_forward.14} parent=39 // pred_check
        %p382 = pneg %p160
      $region42: #{conformer_separator_forward.14} parent=39 // pred_check_branch
        %384 = sbr.rel (%p382) target = $region44
      $region43: #{conformer_separator_forward.14} parent=39 // pred_region
        _
      $region44: #{conformer_separator_forward.14} parent=39 // pred_fallthru
        _
    $region40: #{conformer_separator_forward.14} parent=5 // pred_fallthru
      _
    %p385 = scmp.le.s32.totalorder 2, %s11
    // Predicated region
    $region45: #{conformer_separator_forward.14} parent=5 // pred_check
      %p386 = pneg %p385
    $region46: #{conformer_separator_forward.14} parent=5 // pred_check_branch
      %388 = sbr.rel (%p386) target = $region48
    $region47: #{conformer_separator_forward.14} parent=5 // pred_region
      %s389 = ssub.s32 %s11, 2
      // Predicated region
      $region49: #{conformer_separator_forward.14} parent=47 // pred_check
        %p390 = pneg %p166
      $region50: #{conformer_separator_forward.14} parent=47 // pred_check_branch
        %392 = sbr.rel (%p390) target = $region52
      $region51: #{conformer_separator_forward.14} parent=47 // pred_region
        %p393 = scmp.lt.s32.totalorder %s22, 1
        %s394 = scalar_select %p393, %s22, 1
        %p395 = scmp.lt.s32.totalorder %s23, 0
        %s396 = scalar_select %p395, %s23, 0
        %s397 = smul.addr %s394, 4
        %s398 = sadd.s32 %s396, %s397
        %s399 = smul.addr %s398, 4
        %s400 = scalar_lea.vmem %s5, %s399
      $region52: #{conformer_separator_forward.14} parent=47 // pred_fallthru
        _
    $region48: #{conformer_separator_forward.14} parent=5 // pred_fallthru
      _
  $region6: #{conformer_separator_forward.14} parent=0 // loop_footer
    %s15 = sadd.s32 1, %s11
  $region7: #{conformer_separator_forward.14} parent=0 // loop_footer_branch
    %10 = sbr.rel target = $region3
  $region8: #{conformer_separator_forward.14} parent=0 // loop_exit
    _

// kernel: conformer_separator_forward.15
$region0: #{conformer_separator_forward.15}
  #allocation0 [shape = 'u32[]', space=smem, size = 0x4, offset = 0x4, fixed_abs, tag = 'smem constant byte address 0x4 - core index']
  #allocation1 [shape = 'u32[144,128]{1,0:T(1,128)}', space=vmem, size = 0x12000, scoped, tag = 'internal scratch']
  %s0 = inlined_call_operand.vmem [shape: bf16[2,4,8,24], index: 0, kind: input, shape index: {}]
  %s1 = inlined_call_operand.vmem [shape: f32[2,8,32], index: 1, kind: input, shape index: {}, may-alias: {1,4}]
  %s2 = inlined_call_operand.vmem [shape: bf16[4,8,32], index: 2, kind: input, shape index: {}]
  %s3 = inlined_call_operand.vmem [shape: f32[1,32], index: 3, kind: input, shape index: {}]
  %s4 = inlined_call_operand.vmem [shape: f32[2,8,32], index: 4, kind: output, shape index: {}, may-alias: {1,4}]
  %s5 = sld [smem:[#allocation0]]
  $region49: #{conformer_separator_forward.15} parent=0
    _
  %s7 = ssub.s32 1, %s5
  %s8 = scalar_select 0, %s7, %s5
  loop: start=0, step=1, limit=4
  $region2: #{conformer_separator_forward.15} parent=0 // loop_pre_header
    _
  $region3: #{conformer_separator_forward.15} parent=0 // loop_header
    %s10 = sphi 0, %s14
    %p11 = scmp.ge.s32.totalorder %s10, 4
    %s20 = sphi 0, %s22
    %s23 = sphi 0, %s20
    %s24 = sphi 0, %s23
    %s40 = sphi 0, %s24
    %s46 = sphi 0, %s48
    %s49 = sphi 0, %s46
    %s50 = sphi 0, %s49
    %s66 = sphi 0, %s50
    %s70 = sphi 0, %s70
    %s72 = sphi 0, %s70
    %s73 = sphi 0, %s72
    %s87 = sphi 0, %s73
    %s91 = sphi 0, %s91
    %s93 = sphi 0, %s91
    %s94 = sphi 0, %s93
    %s108 = sphi 0, %s94
    %s114 = sphi 0, %s116
    %s117 = sphi 0, %s114
    %s118 = sphi 0, %s117
    %s134 = sphi 0, %s118
  $region4: #{conformer_separator_forward.15} parent=0 // loop_header_branch
    %13 = sbr.rel (%p11) target = $region8
  $region5: #{conformer_separator_forward.15} parent=0 // loop_body
    %s15 = ssub.s32 %s10, 1
    %s16 = ssub.s32 %s10, 2
    %s17 = sadd.s32 %s10, 1
    %s18 = ssub.s32 %s10, %s17
    %p19 = scmp.eq.s32.totalorder %s18, 0
    %s21 = sadd.s32 %s20, 1
    %s22 = scalar_select %p19, %s20, %s21
    %p25 = pneg %p19
    %p26 = scmp.eq.s32.totalorder %s10, 1
    %p27 = por %p25, %p26
    %p28 = scmp.ne.s32.totalorder %s20, %s23
    %p29 = scmp.eq.s32.totalorder %s10, 0
    %p30 = por %p28, %p29
    %p31 = scmp.ne.s32.totalorder %s20, %s23
    %p32 = scmp.eq.s32.totalorder %s15, 1
    %p33 = por %p31, %p32
    %p34 = scmp.ne.s32.totalorder %s23, %s24
    %p35 = scmp.eq.s32.totalorder %s15, 0
    %p36 = por %p34, %p35
    %p37 = scmp.ne.s32.totalorder %s23, %s24
    %p38 = scmp.eq.s32.totalorder %s16, 1
    %p39 = por %p37, %p38
    %p41 = scmp.ne.s32.totalorder %s24, %s40
    %p42 = scmp.eq.s32.totalorder %s16, 0
    %p43 = por %p41, %p42
    %s44 = ssub.s32 %s10, %s17
    %p45 = scmp.eq.s32.totalorder %s44, 0
    %s47 = sadd.s32 %s46, 1
    %s48 = scalar_select %p45, %s46, %s47
    %p51 = pneg %p45
    %p52 = scmp.eq.s32.totalorder %s10, 1
    %p53 = por %p51, %p52
    %p54 = scmp.ne.s32.totalorder %s46, %s49
    %p55 = scmp.eq.s32.totalorder %s10, 0
    %p56 = por %p54, %p55
    %p57 = scmp.ne.s32.totalorder %s46, %s49
    %p58 = scmp.eq.s32.totalorder %s15, 1
    %p59 = por %p57, %p58
    %p60 = scmp.ne.s32.totalorder %s49, %s50
    %p61 = scmp.eq.s32.totalorder %s15, 0
    %p62 = por %p60, %p61
    %p63 = scmp.ne.s32.totalorder %s49, %s50
    %p64 = scmp.eq.s32.totalorder %s16, 1
    %p65 = por %p63, %p64
    %p67 = scmp.ne.s32.totalorder %s50, %s66
    %p68 = scmp.eq.s32.totalorder %s16, 0
    %p69 = por %p67, %p68
    %s71 = sadd.s32 %s70, 1
    %p74 = scmp.eq.s32.totalorder %s10, 1
    %p75 = scmp.ne.s32.totalorder %s70, %s72
    %p76 = scmp.eq.s32.totalorder %s10, 0
    %p77 = por %p75, %p76
    %p78 = scmp.ne.s32.totalorder %s70, %s72
    %p79 = scmp.eq.s32.totalorder %s15, 1
    %p80 = por %p78, %p79
    %p81 = scmp.ne.s32.totalorder %s72, %s73
    %p82 = scmp.eq.s32.totalorder %s15, 0
    %p83 = por %p81, %p82
    %p84 = scmp.ne.s32.totalorder %s72, %s73
    %p85 = scmp.eq.s32.totalorder %s16, 1
    %p86 = por %p84, %p85
    %p88 = scmp.ne.s32.totalorder %s73, %s87
    %p89 = scmp.eq.s32.totalorder %s16, 0
    %p90 = por %p88, %p89
    %s92 = sadd.s32 %s91, 1
    %p95 = scmp.eq.s32.totalorder %s10, 1
    %p96 = scmp.ne.s32.totalorder %s91, %s93
    %p97 = scmp.eq.s32.totalorder %s10, 0
    %p98 = por %p96, %p97
    %p99 = scmp.ne.s32.totalorder %s91, %s93
    %p100 = scmp.eq.s32.totalorder %s15, 1
    %p101 = por %p99, %p100
    %p102 = scmp.ne.s32.totalorder %s93, %s94
    %p103 = scmp.eq.s32.totalorder %s15, 0
    %p104 = por %p102, %p103
    %p105 = scmp.ne.s32.totalorder %s93, %s94
    %p106 = scmp.eq.s32.totalorder %s16, 1
    %p107 = por %p105, %p106
    %p109 = scmp.ne.s32.totalorder %s94, %s108
    %p110 = scmp.eq.s32.totalorder %s16, 0
    %p111 = por %p109, %p110
    %s112 = ssub.s32 %s10, %s17
    %p113 = scmp.eq.s32.totalorder %s112, 0
    %s115 = sadd.s32 %s114, 1
    %s116 = scalar_select %p113, %s114, %s115
    %p119 = pneg %p113
    %p120 = scmp.eq.s32.totalorder %s10, 1
    %p121 = por %p119, %p120
    %p122 = scmp.ne.s32.totalorder %s114, %s117
    %p123 = scmp.eq.s32.totalorder %s10, 0
    %p124 = por %p122, %p123
    %p125 = scmp.ne.s32.totalorder %s114, %s117
    %p126 = scmp.eq.s32.totalorder %s15, 1
    %p127 = por %p125, %p126
    %p128 = scmp.ne.s32.totalorder %s117, %s118
    %p129 = scmp.eq.s32.totalorder %s15, 0
    %p130 = por %p128, %p129
    %p131 = scmp.ne.s32.totalorder %s117, %s118
    %p132 = scmp.eq.s32.totalorder %s16, 1
    %p133 = por %p131, %p132
    %p135 = scmp.ne.s32.totalorder %s118, %s134
    %p136 = scmp.eq.s32.totalorder %s16, 0
    %p137 = por %p135, %p136
    %p138 = scmp.le.s32.totalorder 1, %s10
    %p139 = scmp.lt.s32.totalorder %s10, 3
    %p140 = pnand %p138, %p139
    %p141 = pneg %p140
    // Predicated region
    $region9: #{conformer_separator_forward.15} parent=5 // pred_check
      _
    $region10: #{conformer_separator_forward.15} parent=5 // pred_check_branch
      %143 = sbr.rel (%p140) target = $region12
    $region11: #{conformer_separator_forward.15} parent=5 // pred_region
      %s144 = ssub.s32 %s10, 1
      // Predicated region
      $region13: #{conformer_separator_forward.15} parent=11 // pred_check
        %p145 = pneg %p83
      $region14: #{conformer_separator_forward.15} parent=11 // pred_check_branch
        %147 = sbr.rel (%p145) target = $region16
      $region15: #{conformer_separator_forward.15} parent=11 // pred_region
        _
      $region16: #{conformer_separator_forward.15} parent=11 // pred_fallthru
        _
      // Predicated region
      $region17: #{conformer_separator_forward.15} parent=11 // pred_check
        %p148 = pneg %p104
      $region18: #{conformer_separator_forward.15} parent=11 // pred_check_branch
        %150 = sbr.rel (%p148) target = $region20
      $region19: #{conformer_separator_forward.15} parent=11 // pred_region
        _
      $region20: #{conformer_separator_forward.15} parent=11 // pred_fallthru
        _
    $region12: #{conformer_separator_forward.15} parent=5 // pred_fallthru
      _
    %p151 = scmp.lt.s32.totalorder %s10, 2
    // Predicated region
    $region21: #{conformer_separator_forward.15} parent=5 // pred_check
      %p152 = pneg %p151
    $region22: #{conformer_separator_forward.15} parent=5 // pred_check_branch
      %154 = sbr.rel (%p152) target = $region24
    $region23: #{conformer_separator_forward.15} parent=5 // pred_region
      // Predicated region
      $region25: #{conformer_separator_forward.15} parent=23 // pred_check
        %p155 = pneg %p30
      $region26: #{conformer_separator_forward.15} parent=23 // pred_check_branch
        %157 = sbr.rel (%p155) target = $region28
      $region27: #{conformer_separator_forward.15} parent=23 // pred_region
        %p158 = scmp.lt.s32.totalorder %s10, 1
        %s159 = scalar_select %p158, %s10, 1
        %s160 = smul.addr %s159, 4
        %s161 = smul.addr %s160, 4
        %s162 = scalar_lea.vmem %s0, %s161
      $region28: #{conformer_separator_forward.15} parent=23 // pred_fallthru
        _
      // Predicated region
      $region29: #{conformer_separator_forward.15} parent=23 // pred_check
        %p163 = pneg %p56
      $region30: #{conformer_separator_forward.15} parent=23 // pred_check_branch
        %165 = sbr.rel (%p163) target = $region32
      $region31: #{conformer_separator_forward.15} parent=23 // pred_region
        %p166 = scmp.lt.s32.totalorder %s10, 1
        %s167 = scalar_select %p166, %s10, 1
        %s168 = smul.addr %s167, 8
        %s169 = scalar_lea.vmem %s1, %s168
      $region32: #{conformer_separator_forward.15} parent=23 // pred_fallthru
        _
    $region24: #{conformer_separator_forward.15} parent=5 // pred_fallthru
      _
    %p170 = scmp.le.s32.totalorder 1, %s10
    %p171 = scmp.lt.s32.totalorder %s10, 3
    %p172 = pnand %p170, %p171
    %p173 = pneg %p172
    // Predicated region
    $region33: #{conformer_separator_forward.15} parent=5 // pred_check
      _
    $region34: #{conformer_separator_forward.15} parent=5 // pred_check_branch
      %175 = sbr.rel (%p172) target = $region36
    $region35: #{conformer_separator_forward.15} parent=5 // pred_region
      %s176 = ssub.s32 %s10, 1
      %p177 = scmp.lt.s32.totalorder %s15, 1
      %s178 = scalar_select %p177, %s15, 1
      %s179 = smul.addr %s178, 4
      %s180 = smul.addr %s179, 4
      %s181 = scalar_lea.vmem %s0, %s180
      %p182 = pneg %p36
      %p183 = pneg %p33
      %p184 = scmp.lt.s32.totalorder %s15, 1
      %s185 = scalar_select %p184, %s15, 1
      %s186 = smul.addr %s185, 8
      %s187 = scalar_lea.vmem %s1, %s186
      %p188 = pneg %p62
      %p189 = pneg %p59
      %p190 = pneg %p83
      %p191 = pneg %p80
      %p192 = pneg %p104
      %p193 = pneg %p101
      %p194 = pneg %p130
      %p195 = pneg %p127
      %p196 = scmp.lt.s32.totalorder %s15, 1
      %s197 = scalar_select %p196, %s15, 1
      %s198 = smul.addr %s197, 8
      %s199 = scalar_lea.vmem %s4, %s198
      %p200 = scmp.lt.s32.totalorder %s15, 1
      %s201 = scalar_select %p200, %s15, 1
      %s202 = smul.addr %s201, 4
      %s203 = smul.addr %s202, 4
      %s204 = scalar_lea.vmem %s0, %s203
      %p205 = scmp.lt.s32.totalorder %s15, 1
      %s206 = scalar_select %p205, %s15, 1
      %s207 = smul.addr %s206, 8
      %s208 = scalar_lea.vmem %s1, %s207
      %p209 = scmp.lt.s32.totalorder %s15, 1
      %s210 = scalar_select %p209, %s15, 1
      %s211 = smul.addr %s210, 8
      %s212 = scalar_lea.vmem %s4, %s211
      %v214 = vld [vmem:[%s204] sm:$0xf]
      %v215 = vld [vmem:[%s204 + $0x4] sm:$0xf]
      %v216 = vld [vmem:[%s204 + $0x8] sm:$0xf]
      %v217 = vld [vmem:[%s204 + $0xc] sm:$0xf]
      %v219 = vunpack.c.l.b16 %v214
      %v220 = vpack.c.b16 %v219, %v219
      %221 = vrot.lane.b32.xlu0 %v220, 120
      %v222 = vpop.permute.xlu0 %221
      %vm223 = vcmask 64512
      %v225 = vsel %vm223, %v214, 0
      %v228 = vsel %vm223, %v222, 0
      %230 = vmatprep.subr.bf16.mxu0 0
      %231 = vmatpush1.bf16.xpose.msra.mxu0 0
      %232 = vmatprep.subr.bf16.mxu0 0
      %233 = vmatpush1.bf16.xpose.msra.mxu0 0
      %234 = vmatprep.subr.bf16.mxu0 0
      %235 = vmatpush1.bf16.xpose.msra.mxu0 0
      %236 = vmatprep.subr.bf16.mxu0 0
      %237 = vmatpush1.bf16.xpose.msra.mxu0 0
      %238 = vmatprep.subr.bf16.mxu0 0
      %239 = vmatpush1.bf16.xpose.msra.mxu0 0
      %240 = vmatprep.subr.bf16.mxu0 0
      %241 = vmatpush1.bf16.xpose.msra.mxu0 0
      %242 = vmatprep.subr.bf16.mxu0 0
      %243 = vmatpush1.bf16.xpose.msra.mxu0 0
      %244 = vmatprep.subr.bf16.mxu0 0
      %245 = vmatpush1.bf16.xpose.msra.mxu0 %v228
      %246 = vmatprep.subr.bf16.mxu0 0
      %247 = vmatpush2.bf16.xpose.msra.mxu0 0
      %248 = vmatprep.subr.bf16.mxu0 0
      %249 = vmatpush2.bf16.xpose.msra.mxu0 0
      %250 = vmatprep.subr.bf16.mxu0 0
      %251 = vmatpush2.bf16.xpose.msra.mxu0 0
      %252 = vmatprep.subr.bf16.mxu0 0
      %253 = vmatpush2.bf16.xpose.msra.mxu0 0
      %254 = vmatprep.subr.bf16.mxu0 0
      %255 = vmatpush2.bf16.xpose.msra.mxu0 0
      %256 = vmatprep.subr.bf16.mxu0 0
      %257 = vmatpush2.bf16.xpose.msra.mxu0 0
      %258 = vmatprep.subr.bf16.mxu0 0
      %259 = vmatpush2.bf16.xpose.msra.mxu0 0
      %260 = vmatprep.subr.bf16.mxu0 0
      %261 = vmatpush2.bf16.xpose.msra.mxu0 0
      %262 = vmatprep.mubr.bf16.mxu0 0
      %263 = vmatmul.mubr.bf16.gmra.mxu0 %v225
      %v264 = vpop.f32.mrf.mxu0
      %v265 = vadd.f32 0.0, %v264
      %v266 = vpop.f32.mrf.mxu0
      %v267 = vpop.f32.mrf.mxu0
      %v268 = vpop.f32.mrf.mxu0
      %269 = vdwg.mxu0
      %v271 = vunpack.c.l.b16 %v215
      %v272 = vpack.c.b16 %v271, %v271
      %273 = vrot.lane.b32.xlu0 %v272, 120
      %v274 = vpop.permute.xlu0 %273
      %v276 = vsel %vm223, %v215, 0
      %v279 = vsel %vm223, %v274, 0
      %281 = vmatprep.subr.bf16.mxu0 0
      %282 = vmatpush1.bf16.xpose.msra.mxu0 0
      %283 = vmatprep.subr.bf16.mxu0 0
      %284 = vmatpush1.bf16.xpose.msra.mxu0 0
      %285 = vmatprep.subr.bf16.mxu0 0
      %286 = vmatpush1.bf16.xpose.msra.mxu0 0
      %287 = vmatprep.subr.bf16.mxu0 0
      %288 = vmatpush1.bf16.xpose.msra.mxu0 0
      %289 = vmatprep.subr.bf16.mxu0 0
      %290 = vmatpush1.bf16.xpose.msra.mxu0 0
      %291 = vmatprep.subr.bf16.mxu0 0
      %292 = vmatpush1.bf16.xpose.msra.mxu0 0
      %293 = vmatprep.subr.bf16.mxu0 0
      %294 = vmatpush1.bf16.xpose.msra.mxu0 0
      %295 = vmatprep.subr.bf16.mxu0 0
      %296 = vmatpush1.bf16.xpose.msra.mxu0 %v279
      %297 = vmatprep.subr.bf16.mxu0 0
      %298 = vmatpush2.bf16.xpose.msra.mxu0 0
      %299 = vmatprep.subr.bf16.mxu0 0
      %300 = vmatpush2.bf16.xpose.msra.mxu0 0
      %301 = vmatprep.subr.bf16.mxu0 0
      %302 = vmatpush2.bf16.xpose.msra.mxu0 0
      %303 = vmatprep.subr.bf16.mxu0 0
      %304 = vmatpush2.bf16.xpose.msra.mxu0 0
      %305 = vmatprep.subr.bf16.mxu0 0
      %306 = vmatpush2.bf16.xpose.msra.mxu0 0
      %307 = vmatprep.subr.bf16.mxu0 0
      %308 = vmatpush2.bf16.xpose.msra.mxu0 0
      %309 = vmatprep.subr.bf16.mxu0 0
      %310 = vmatpush2.bf16.xpose.msra.mxu0 0
      %311 = vmatprep.subr.bf16.mxu0 0
      %312 = vmatpush2.bf16.xpose.msra.mxu0 0
      %313 = vmatprep.mubr.bf16.mxu0 0
      %314 = vmatmul.mubr.bf16.gmra.mxu0 %v276
      %v315 = vpop.f32.mrf.mxu0
      %v316 = vadd.f32 0.0, %v315
      %v317 = vpop.f32.mrf.mxu0
      %v318 = vpop.f32.mrf.mxu0
      %v319 = vpop.f32.mrf.mxu0
      %320 = vdwg.mxu0
      %v322 = vunpack.c.l.b16 %v216
      %v323 = vpack.c.b16 %v322, %v322
      %324 = vrot.lane.b32.xlu0 %v323, 120
      %v325 = vpop.permute.xlu0 %324
      %v327 = vsel %vm223, %v216, 0
      %v330 = vsel %vm223, %v325, 0
      %332 = vmatprep.subr.bf16.mxu0 0
      %333 = vmatpush1.bf16.xpose.msra.mxu0 0
      %334 = vmatprep.subr.bf16.mxu0 0
      %335 = vmatpush1.bf16.xpose.msra.mxu0 0
      %336 = vmatprep.subr.bf16.mxu0 0
      %337 = vmatpush1.bf16.xpose.msra.mxu0 0
      %338 = vmatprep.subr.bf16.mxu0 0
      %339 = vmatpush1.bf16.xpose.msra.mxu0 0
      %340 = vmatprep.subr.bf16.mxu0 0
      %341 = vmatpush1.bf16.xpose.msra.mxu0 0
      %342 = vmatprep.subr.bf16.mxu0 0
      %343 = vmatpush1.bf16.xpose.msra.mxu0 0
      %344 = vmatprep.subr.bf16.mxu0 0
      %345 = vmatpush1.bf16.xpose.msra.mxu0 0
      %346 = vmatprep.subr.bf16.mxu0 0
      %347 = vmatpush1.bf16.xpose.msra.mxu0 %v330
      %348 = vmatprep.subr.bf16.mxu0 0
      %349 = vmatpush2.bf16.xpose.msra.mxu0 0
      %350 = vmatprep.subr.bf16.mxu0 0
      %351 = vmatpush2.bf16.xpose.msra.mxu0 0
      %352 = vmatprep.subr.bf16.mxu0 0
      %353 = vmatpush2.bf16.xpose.msra.mxu0 0
      %354 = vmatprep.subr.bf16.mxu0 0
      %355 = vmatpush2.bf16.xpose.msra.mxu0 0
      %356 = vmatprep.subr.bf16.mxu0 0
      %357 = vmatpush2.bf16.xpose.msra.mxu0 0
      %358 = vmatprep.subr.bf16.mxu0 0
      %359 = vmatpush2.bf16.xpose.msra.mxu0 0
      %360 = vmatprep.subr.bf16.mxu0 0
      %361 = vmatpush2.bf16.xpose.msra.mxu0 0
      %362 = vmatprep.subr.bf16.mxu0 0
      %363 = vmatpush2.bf16.xpose.msra.mxu0 0
      %364 = vmatprep.mubr.bf16.mxu0 0
      %365 = vmatmul.mubr.bf16.gmra.mxu0 %v327
      %v366 = vpop.f32.mrf.mxu0
      %v367 = vadd.f32 0.0, %v366
      %v368 = vpop.f32.mrf.mxu0
      %v369 = vpop.f32.mrf.mxu0
      %v370 = vpop.f32.mrf.mxu0
      %371 = vdwg.mxu0
      %v373 = vunpack.c.l.b16 %v217
      %v374 = vpack.c.b16 %v373, %v373
      %375 = vrot.lane.b32.xlu0 %v374, 120
      %v376 = vpop.permute.xlu0 %375
      %v378 = vsel %vm223, %v217, 0
      %v381 = vsel %vm223, %v376, 0
      %383 = vmatprep.subr.bf16.mxu0 0
      %384 = vmatpush1.bf16.xpose.msra.mxu0 0
      %385 = vmatprep.subr.bf16.mxu0 0
      %386 = vmatpush1.bf16.xpose.msra.mxu0 0
      %387 = vmatprep.subr.bf16.mxu0 0
      %388 = vmatpush1.bf16.xpose.msra.mxu0 0
      %389 = vmatprep.subr.bf16.mxu0 0
      %390 = vmatpush1.bf16.xpose.msra.mxu0 0
      %391 = vmatprep.subr.bf16.mxu0 0
      %392 = vmatpush1.bf16.xpose.msra.mxu0 0
      %393 = vmatprep.subr.bf16.mxu0 0
      %394 = vmatpush1.bf16.xpose.msra.mxu0 0
      %395 = vmatprep.subr.bf16.mxu0 0
      %396 = vmatpush1.bf16.xpose.msra.mxu0 0
      %397 = vmatprep.subr.bf16.mxu0 0
      %398 = vmatpush1.bf16.xpose.msra.mxu0 %v381
      %399 = vmatprep.subr.bf16.mxu0 0
      %400 = vmatpush2.bf16.xpose.msra.mxu0 0
      %401 = vmatprep.subr.bf16.mxu0 0
      %402 = vmatpush2.bf16.xpose.msra.mxu0 0
      %403 = vmatprep.subr.bf16.mxu0 0
      %404 = vmatpush2.bf16.xpose.msra.mxu0 0
      %405 = vmatprep.subr.bf16.mxu0 0
      %406 = vmatpush2.bf16.xpose.msra.mxu0 0
      %407 = vmatprep.subr.bf16.mxu0 0
      %408 = vmatpush2.bf16.xpose.msra.mxu0 0
      %409 = vmatprep.subr.bf16.mxu0 0
      %410 = vmatpush2.bf16.xpose.msra.mxu0 0
      %411 = vmatprep.subr.bf16.mxu0 0
      %412 = vmatpush2.bf16.xpose.msra.mxu0 0
      %413 = vmatprep.subr.bf16.mxu0 0
      %414 = vmatpush2.bf16.xpose.msra.mxu0 0
      %415 = vmatprep.mubr.bf16.mxu0 0
      %416 = vmatmul.mubr.bf16.gmra.mxu0 %v378
      %v417 = vpop.f32.mrf.mxu0
      %v418 = vadd.f32 0.0, %v417
      %v419 = vpop.f32.mrf.mxu0
      %v420 = vpop.f32.mrf.mxu0
      %v421 = vpop.f32.mrf.mxu0
      %422 = vdwg.mxu0
      %v423 = vsel %vm223, %v265, -inf
      %424 = vmax.xlane.f32.xlu0 %v423
      %v425 = vpop.xlane.xlu0 %424
      %v426 = vsel %vm223, %v316, -inf
      %427 = vmax.xlane.f32.xlu0 %v426
      %v428 = vpop.xlane.xlu0 %427
      %v429 = vsel %vm223, %v367, -inf
      %430 = vmax.xlane.f32.xlu0 %v429
      %v431 = vpop.xlane.xlu0 %430
      %v432 = vsel %vm223, %v418, -inf
      %433 = vmax.xlane.f32.xlu0 %v432
      %v434 = vpop.xlane.xlu0 %433
      %v435 = vsub.f32 %v265, %v425
      %v436 = vsub.f32 %v316, %v428
      %v437 = vsub.f32 %v367, %v431
      %v438 = vsub.f32 %v418, %v434
      %v439 = vmul.f32 %v435, 1.442695
      %v440 = vpow.pop %v439
      %v441 = vmul.f32 %v436, 1.442695
      %v442 = vpow.pop %v441
      %v443 = vmul.f32 %v437, 1.442695
      %v444 = vpow.pop %v443
      %v445 = vmul.f32 %v438, 1.442695
      %v446 = vpow.pop %v445
      %v447 = vsel %vm223, %v440, 0.0
      %448 = vadd.xlane.f32.xlu0 %v447
      %v449 = vpop.xlane.xlu0 %448
      %v450 = vsel %vm223, %v442, 0.0
      %451 = vadd.xlane.f32.xlu0 %v450
      %v452 = vpop.xlane.xlu0 %451
      %v453 = vsel %vm223, %v444, 0.0
      %454 = vadd.xlane.f32.xlu0 %v453
      %v455 = vpop.xlane.xlu0 %454
      %v456 = vsel %vm223, %v446, 0.0
      %457 = vadd.xlane.f32.xlu0 %v456
      %v458 = vpop.xlane.xlu0 %457
      %v459 = vpack.c.bf16 %v440, %v440
      %v460 = vpack.c.bf16 %v442, %v442
      %v461 = vpack.c.bf16 %v444, %v444
      %v462 = vpack.c.bf16 %v446, %v446
      %463 = vrot.lane.b32.xlu0 %v220, 112
      %v464 = vpop.permute.xlu0 %463
      %v466 = vsel %vm223, %v459, 0
      %vm468 = vcmask 1043456
      %v470 = vsel %vm468, %v464, 0
      %472 = vmatprep.subr.bf16.mxu0 0
      %473 = vmatpush1.bf16.msra.mxu0 0
      %474 = vmatprep.subr.bf16.mxu0 0
      %475 = vmatpush1.bf16.msra.mxu0 0
      %476 = vmatprep.subr.bf16.mxu0 0
      %477 = vmatpush1.bf16.msra.mxu0 0
      %478 = vmatprep.subr.bf16.mxu0 0
      %479 = vmatpush1.bf16.msra.mxu0 0
      %480 = vmatprep.subr.bf16.mxu0 0
      %481 = vmatpush1.bf16.msra.mxu0 0
      %482 = vmatprep.subr.bf16.mxu0 0
      %483 = vmatpush1.bf16.msra.mxu0 0
      %484 = vmatprep.subr.bf16.mxu0 0
      %485 = vmatpush1.bf16.msra.mxu0 0
      %486 = vmatprep.subr.bf16.mxu0 0
      %487 = vmatpush1.bf16.msra.mxu0 %v470
      %488 = vmatprep.subr.bf16.mxu0 0
      %489 = vmatpush2.bf16.msra.mxu0 0
      %490 = vmatprep.subr.bf16.mxu0 0
      %491 = vmatpush2.bf16.msra.mxu0 0
      %492 = vmatprep.subr.bf16.mxu0 0
      %493 = vmatpush2.bf16.msra.mxu0 0
      %494 = vmatprep.subr.bf16.mxu0 0
      %495 = vmatpush2.bf16.msra.mxu0 0
      %496 = vmatprep.subr.bf16.mxu0 0
      %497 = vmatpush2.bf16.msra.mxu0 0
      %498 = vmatprep.subr.bf16.mxu0 0
      %499 = vmatpush2.bf16.msra.mxu0 0
      %500 = vmatprep.subr.bf16.mxu0 0
      %501 = vmatpush2.bf16.msra.mxu0 0
      %502 = vmatprep.subr.bf16.mxu0 0
      %503 = vmatpush2.bf16.msra.mxu0 0
      %504 = vmatprep.mubr.bf16.mxu0 0
      %505 = vmatmul.mubr.bf16.gmra.mxu0 %v466
      %v506 = vpop.f32.mrf.mxu0
      %v507 = vadd.f32 0.0, %v506
      %v508 = vpop.f32.mrf.mxu0
      %v509 = vpop.f32.mrf.mxu0
      %v510 = vpop.f32.mrf.mxu0
      %511 = vdwg.mxu0
      %512 = vrot.lane.b32.xlu0 %v272, 112
      %v513 = vpop.permute.xlu0 %512
      %v515 = vsel %vm223, %v460, 0
      %v518 = vsel %vm468, %v513, 0
      %520 = vmatprep.subr.bf16.mxu0 0
      %521 = vmatpush1.bf16.msra.mxu0 0
      %522 = vmatprep.subr.bf16.mxu0 0
      %523 = vmatpush1.bf16.msra.mxu0 0
      %524 = vmatprep.subr.bf16.mxu0 0
      %525 = vmatpush1.bf16.msra.mxu0 0
      %526 = vmatprep.subr.bf16.mxu0 0
      %527 = vmatpush1.bf16.msra.mxu0 0
      %528 = vmatprep.subr.bf16.mxu0 0
      %529 = vmatpush1.bf16.msra.mxu0 0
      %530 = vmatprep.subr.bf16.mxu0 0
      %531 = vmatpush1.bf16.msra.mxu0 0
      %532 = vmatprep.subr.bf16.mxu0 0
      %533 = vmatpush1.bf16.msra.mxu0 0
      %534 = vmatprep.subr.bf16.mxu0 0
      %535 = vmatpush1.bf16.msra.mxu0 %v518
      %536 = vmatprep.subr.bf16.mxu0 0
      %537 = vmatpush2.bf16.msra.mxu0 0
      %538 = vmatprep.subr.bf16.mxu0 0
      %539 = vmatpush2.bf16.msra.mxu0 0
      %540 = vmatprep.subr.bf16.mxu0 0
      %541 = vmatpush2.bf16.msra.mxu0 0
      %542 = vmatprep.subr.bf16.mxu0 0
      %543 = vmatpush2.bf16.msra.mxu0 0
      %544 = vmatprep.subr.bf16.mxu0 0
      %545 = vmatpush2.bf16.msra.mxu0 0
      %546 = vmatprep.subr.bf16.mxu0 0
      %547 = vmatpush2.bf16.msra.mxu0 0
      %548 = vmatprep.subr.bf16.mxu0 0
      %549 = vmatpush2.bf16.msra.mxu0 0
      %550 = vmatprep.subr.bf16.mxu0 0
      %551 = vmatpush2.bf16.msra.mxu0 0
      %552 = vmatprep.mubr.bf16.mxu0 0
      %553 = vmatmul.mubr.bf16.gmra.mxu0 %v515
      %v554 = vpop.f32.mrf.mxu0
      %v555 = vadd.f32 0.0, %v554
      %v556 = vpop.f32.mrf.mxu0
      %v557 = vpop.f32.mrf.mxu0
      %v558 = vpop.f32.mrf.mxu0
      %559 = vdwg.mxu0
      %560 = vrot.lane.b32.xlu0 %v323, 112
      %v561 = vpop.permute.xlu0 %560
      %v563 = vsel %vm223, %v461, 0
      %v566 = vsel %vm468, %v561, 0
      %568 = vmatprep.subr.bf16.mxu0 0
      %569 = vmatpush1.bf16.msra.mxu0 0
      %570 = vmatprep.subr.bf16.mxu0 0
      %571 = vmatpush1.bf16.msra.mxu0 0
      %572 = vmatprep.subr.bf16.mxu0 0
      %573 = vmatpush1.bf16.msra.mxu0 0
      %574 = vmatprep.subr.bf16.mxu0 0
      %575 = vmatpush1.bf16.msra.mxu0 0
      %576 = vmatprep.subr.bf16.mxu0 0
      %577 = vmatpush1.bf16.msra.mxu0 0
      %578 = vmatprep.subr.bf16.mxu0 0
      %579 = vmatpush1.bf16.msra.mxu0 0
      %580 = vmatprep.subr.bf16.mxu0 0
      %581 = vmatpush1.bf16.msra.mxu0 0
      %582 = vmatprep.subr.bf16.mxu0 0
      %583 = vmatpush1.bf16.msra.mxu0 %v566
      %584 = vmatprep.subr.bf16.mxu0 0
      %585 = vmatpush2.bf16.msra.mxu0 0
      %586 = vmatprep.subr.bf16.mxu0 0
      %587 = vmatpush2.bf16.msra.mxu0 0
      %588 = vmatprep.subr.bf16.mxu0 0
      %589 = vmatpush2.bf16.msra.mxu0 0
      %590 = vmatprep.subr.bf16.mxu0 0
      %591 = vmatpush2.bf16.msra.mxu0 0
      %592 = vmatprep.subr.bf16.mxu0 0
      %593 = vmatpush2.bf16.msra.mxu0 0
      %594 = vmatprep.subr.bf16.mxu0 0
      %595 = vmatpush2.bf16.msra.mxu0 0
      %596 = vmatprep.subr.bf16.mxu0 0
      %597 = vmatpush2.bf16.msra.mxu0 0
      %598 = vmatprep.subr.bf16.mxu0 0
      %599 = vmatpush2.bf16.msra.mxu0 0
      %600 = vmatprep.mubr.bf16.mxu0 0
      %601 = vmatmul.mubr.bf16.gmra.mxu0 %v563
      %v602 = vpop.f32.mrf.mxu0
      %v603 = vadd.f32 0.0, %v602
      %v604 = vpop.f32.mrf.mxu0
      %v605 = vpop.f32.mrf.mxu0
      %v606 = vpop.f32.mrf.mxu0
      %607 = vdwg.mxu0
      %608 = vrot.lane.b32.xlu0 %v374, 112
      %v609 = vpop.permute.xlu0 %608
      %v611 = vsel %vm223, %v462, 0
      %v614 = vsel %vm468, %v609, 0
      %616 = vmatprep.subr.bf16.mxu0 0
      %617 = vmatpush1.bf16.msra.mxu0 0
      %618 = vmatprep.subr.bf16.mxu0 0
      %619 = vmatpush1.bf16.msra.mxu0 0
      %620 = vmatprep.subr.bf16.mxu0 0
      %621 = vmatpush1.bf16.msra.mxu0 0
      %622 = vmatprep.subr.bf16.mxu0 0
      %623 = vmatpush1.bf16.msra.mxu0 0
      %624 = vmatprep.subr.bf16.mxu0 0
      %625 = vmatpush1.bf16.msra.mxu0 0
      %626 = vmatprep.subr.bf16.mxu0 0
      %627 = vmatpush1.bf16.msra.mxu0 0
      %628 = vmatprep.subr.bf16.mxu0 0
      %629 = vmatpush1.bf16.msra.mxu0 0
      %630 = vmatprep.subr.bf16.mxu0 0
      %631 = vmatpush1.bf16.msra.mxu0 %v614
      %632 = vmatprep.subr.bf16.mxu0 0
      %633 = vmatpush2.bf16.msra.mxu0 0
      %634 = vmatprep.subr.bf16.mxu0 0
      %635 = vmatpush2.bf16.msra.mxu0 0
      %636 = vmatprep.subr.bf16.mxu0 0
      %637 = vmatpush2.bf16.msra.mxu0 0
      %638 = vmatprep.subr.bf16.mxu0 0
      %639 = vmatpush2.bf16.msra.mxu0 0
      %640 = vmatprep.subr.bf16.mxu0 0
      %641 = vmatpush2.bf16.msra.mxu0 0
      %642 = vmatprep.subr.bf16.mxu0 0
      %643 = vmatpush2.bf16.msra.mxu0 0
      %644 = vmatprep.subr.bf16.mxu0 0
      %645 = vmatpush2.bf16.msra.mxu0 0
      %646 = vmatprep.subr.bf16.mxu0 0
      %647 = vmatpush2.bf16.msra.mxu0 0
      %648 = vmatprep.mubr.bf16.mxu0 0
      %649 = vmatmul.mubr.bf16.gmra.mxu0 %v611
      %v650 = vpop.f32.mrf.mxu0
      %v651 = vadd.f32 0.0, %v650
      %v652 = vpop.f32.mrf.mxu0
      %v653 = vpop.f32.mrf.mxu0
      %v654 = vpop.f32.mrf.mxu0
      %655 = vdwg.mxu0
      %v656 = vrcp.pop %v449
      %v657 = vrcp.pop %v452
      %v658 = vrcp.pop %v455
      %v659 = vrcp.pop %v458
      %v660 = vmul.f32 %v507, %v656
      %v661 = vmul.f32 %v555, %v657
      %v662 = vmul.f32 %v603, %v658
      %v663 = vmul.f32 %v651, %v659
      %v664 = vld [vmem:[%s208] sm:$0xff]
      %v665 = vld [vmem:[%s3] sm:$0x1]
      %v667 = vlaneseq
      %v668 = vshrl.u32 %v667, 7
      %v669 = vsub.s32 0, %v668
      %v670 = vrot.slane %v665, %v669
      %v672 = vadd.f32 %v664, %v670
      %v673 = vpack.c.bf16 %v660, %v660
      %v674 = vld [vmem:[%s2] sm:$0xf]
      %v676 = vsel %vm223, %v673, 0
      %v679 = vsel %vm468, %v674, 0
      %681 = vmatprep.subr.bf16.mxu0 0
      %682 = vmatpush1.bf16.msra.mxu0 0
      %683 = vmatprep.subr.bf16.mxu0 0
      %684 = vmatpush1.bf16.msra.mxu0 0
      %685 = vmatprep.subr.bf16.mxu0 0
      %686 = vmatpush1.bf16.msra.mxu0 0
      %687 = vmatprep.subr.bf16.mxu0 0
      %688 = vmatpush1.bf16.msra.mxu0 0
      %689 = vmatprep.subr.bf16.mxu0 0
      %690 = vmatpush1.bf16.msra.mxu0 0
      %691 = vmatprep.subr.bf16.mxu0 0
      %692 = vmatpush1.bf16.msra.mxu0 0
      %693 = vmatprep.subr.bf16.mxu0 0
      %694 = vmatpush1.bf16.msra.mxu0 0
      %695 = vmatprep.subr.bf16.mxu0 0
      %696 = vmatpush1.bf16.msra.mxu0 %v679
      %697 = vmatprep.subr.bf16.mxu0 0
      %698 = vmatpush2.bf16.msra.mxu0 0
      %699 = vmatprep.subr.bf16.mxu0 0
      %700 = vmatpush2.bf16.msra.mxu0 0
      %701 = vmatprep.subr.bf16.mxu0 0
      %702 = vmatpush2.bf16.msra.mxu0 0
      %703 = vmatprep.subr.bf16.mxu0 0
      %704 = vmatpush2.bf16.msra.mxu0 0
      %705 = vmatprep.subr.bf16.mxu0 0
      %706 = vmatpush2.bf16.msra.mxu0 0
      %707 = vmatprep.subr.bf16.mxu0 0
      %708 = vmatpush2.bf16.msra.mxu0 0
      %709 = vmatprep.subr.bf16.mxu0 0
      %710 = vmatpush2.bf16.msra.mxu0 0
      %711 = vmatprep.subr.bf16.mxu0 0
      %712 = vmatpush2.bf16.msra.mxu0 0
      %713 = vmatprep.mubr.bf16.mxu0 0
      %714 = vmatmul.mubr.bf16.gmra.mxu0 %v676
      %v715 = vpop.f32.mrf.mxu0
      %v716 = vadd.f32 0.0, %v715
      %v717 = vpop.f32.mrf.mxu0
      %v718 = vpop.f32.mrf.mxu0
      %v719 = vpop.f32.mrf.mxu0
      %720 = vdwg.mxu0
      %v721 = vadd.f32 %v672, %v716
      %v722 = vpack.c.bf16 %v661, %v661
      %s723 = scalar_lea.vmem %s2, 4
      %v724 = vld [vmem:[%s723] sm:$0xf]
      %v726 = vsel %vm223, %v722, 0
      %v729 = vsel %vm468, %v724, 0
      %731 = vmatprep.subr.bf16.mxu0 0
      %732 = vmatpush1.bf16.msra.mxu0 0
      %733 = vmatprep.subr.bf16.mxu0 0
      %734 = vmatpush1.bf16.msra.mxu0 0
      %735 = vmatprep.subr.bf16.mxu0 0
      %736 = vmatpush1.bf16.msra.mxu0 0
      %737 = vmatprep.subr.bf16.mxu0 0
      %738 = vmatpush1.bf16.msra.mxu0 0
      %739 = vmatprep.subr.bf16.mxu0 0
      %740 = vmatpush1.bf16.msra.mxu0 0
      %741 = vmatprep.subr.bf16.mxu0 0
      %742 = vmatpush1.bf16.msra.mxu0 0
      %743 = vmatprep.subr.bf16.mxu0 0
      %744 = vmatpush1.bf16.msra.mxu0 0
      %745 = vmatprep.subr.bf16.mxu0 0
      %746 = vmatpush1.bf16.msra.mxu0 %v729
      %747 = vmatprep.subr.bf16.mxu0 0
      %748 = vmatpush2.bf16.msra.mxu0 0
      %749 = vmatprep.subr.bf16.mxu0 0
      %750 = vmatpush2.bf16.msra.mxu0 0
      %751 = vmatprep.subr.bf16.mxu0 0
      %752 = vmatpush2.bf16.msra.mxu0 0
      %753 = vmatprep.subr.bf16.mxu0 0
      %754 = vmatpush2.bf16.msra.mxu0 0
      %755 = vmatprep.subr.bf16.mxu0 0
      %756 = vmatpush2.bf16.msra.mxu0 0
      %757 = vmatprep.subr.bf16.mxu0 0
      %758 = vmatpush2.bf16.msra.mxu0 0
      %759 = vmatprep.subr.bf16.mxu0 0
      %760 = vmatpush2.bf16.msra.mxu0 0
      %761 = vmatprep.subr.bf16.mxu0 0
      %762 = vmatpush2.bf16.msra.mxu0 0
      %763 = vmatprep.mubr.bf16.mxu0 0
      %764 = vmatmul.mubr.bf16.gmra.mxu0 %v726
      %v765 = vpop.f32.mrf.mxu0
      %v766 = vadd.f32 0.0, %v765
      %v767 = vpop.f32.mrf.mxu0
      %v768 = vpop.f32.mrf.mxu0
      %v769 = vpop.f32.mrf.mxu0
      %770 = vdwg.mxu0
      %v771 = vadd.f32 %v721, %v766
      %v772 = vpack.c.bf16 %v662, %v662
      %s773 = scalar_lea.vmem %s2, 8
      %v774 = vld [vmem:[%s773] sm:$0xf]
      %v776 = vsel %vm223, %v772, 0
      %v779 = vsel %vm468, %v774, 0
      %781 = vmatprep.subr.bf16.mxu0 0
      %782 = vmatpush1.bf16.msra.mxu0 0
      %783 = vmatprep.subr.bf16.mxu0 0
      %784 = vmatpush1.bf16.msra.mxu0 0
      %785 = vmatprep.subr.bf16.mxu0 0
      %786 = vmatpush1.bf16.msra.mxu0 0
      %787 = vmatprep.subr.bf16.mxu0 0
      %788 = vmatpush1.bf16.msra.mxu0 0
      %789 = vmatprep.subr.bf16.mxu0 0
      %790 = vmatpush1.bf16.msra.mxu0 0
      %791 = vmatprep.subr.bf16.mxu0 0
      %792 = vmatpush1.bf16.msra.mxu0 0
      %793 = vmatprep.subr.bf16.mxu0 0
      %794 = vmatpush1.bf16.msra.mxu0 0
      %795 = vmatprep.subr.bf16.mxu0 0
      %796 = vmatpush1.bf16.msra.mxu0 %v779
      %797 = vmatprep.subr.bf16.mxu0 0
      %798 = vmatpush2.bf16.msra.mxu0 0
      %799 = vmatprep.subr.bf16.mxu0 0
      %800 = vmatpush2.bf16.msra.mxu0 0
      %801 = vmatprep.subr.bf16.mxu0 0
      %802 = vmatpush2.bf16.msra.mxu0 0
      %803 = vmatprep.subr.bf16.mxu0 0
      %804 = vmatpush2.bf16.msra.mxu0 0
      %805 = vmatprep.subr.bf16.mxu0 0
      %806 = vmatpush2.bf16.msra.mxu0 0
      %807 = vmatprep.subr.bf16.mxu0 0
      %808 = vmatpush2.bf16.msra.mxu0 0
      %809 = vmatprep.subr.bf16.mxu0 0
      %810 = vmatpush2.bf16.msra.mxu0 0
      %811 = vmatprep.subr.bf16.mxu0 0
      %812 = vmatpush2.bf16.msra.mxu0 0
      %813 = vmatprep.mubr.bf16.mxu0 0
      %814 = vmatmul.mubr.bf16.gmra.mxu0 %v776
      %v815 = vpop.f32.mrf.mxu0
      %v816 = vadd.f32 0.0, %v815
      %v817 = vpop.f32.mrf.mxu0
      %v818 = vpop.f32.mrf.mxu0
      %v819 = vpop.f32.mrf.mxu0
      %820 = vdwg.mxu0
      %v821 = vadd.f32 %v771, %v816
      %v822 = vpack.c.bf16 %v663, %v663
      %s823 = scalar_lea.vmem %s2, 12
      %v824 = vld [vmem:[%s823] sm:$0xf]
      %v826 = vsel %vm223, %v822, 0
      %v829 = vsel %vm468, %v824, 0
      %831 = vmatprep.subr.bf16.mxu0 0
      %832 = vmatpush1.bf16.msra.mxu0 0
      %833 = vmatprep.subr.bf16.mxu0 0
      %834 = vmatpush1.bf16.msra.mxu0 0
      %835 = vmatprep.subr.bf16.mxu0 0
      %836 = vmatpush1.bf16.msra.mxu0 0
      %837 = vmatprep.subr.bf16.mxu0 0
      %838 = vmatpush1.bf16.msra.mxu0 0
      %839 = vmatprep.subr.bf16.mxu0 0
      %840 = vmatpush1.bf16.msra.mxu0 0
      %841 = vmatprep.subr.bf16.mxu0 0
      %842 = vmatpush1.bf16.msra.mxu0 0
      %843 = vmatprep.subr.bf16.mxu0 0
      %844 = vmatpush1.bf16.msra.mxu0 0
      %845 = vmatprep.subr.bf16.mxu0 0
      %846 = vmatpush1.bf16.msra.mxu0 %v829
      %847 = vmatprep.subr.bf16.mxu0 0
      %848 = vmatpush2.bf16.msra.mxu0 0
      %849 = vmatprep.subr.bf16.mxu0 0
      %850 = vmatpush2.bf16.msra.mxu0 0
      %851 = vmatprep.subr.bf16.mxu0 0
      %852 = vmatpush2.bf16.msra.mxu0 0
      %853 = vmatprep.subr.bf16.mxu0 0
      %854 = vmatpush2.bf16.msra.mxu0 0
      %855 = vmatprep.subr.bf16.mxu0 0
      %856 = vmatpush2.bf16.msra.mxu0 0
      %857 = vmatprep.subr.bf16.mxu0 0
      %858 = vmatpush2.bf16.msra.mxu0 0
      %859 = vmatprep.subr.bf16.mxu0 0
      %860 = vmatpush2.bf16.msra.mxu0 0
      %861 = vmatprep.subr.bf16.mxu0 0
      %862 = vmatpush2.bf16.msra.mxu0 0
      %863 = vmatprep.mubr.bf16.mxu0 0
      %864 = vmatmul.mubr.bf16.gmra.mxu0 %v826
      %v865 = vpop.f32.mrf.mxu0
      %v866 = vadd.f32 0.0, %v865
      %v867 = vpop.f32.mrf.mxu0
      %v868 = vpop.f32.mrf.mxu0
      %v869 = vpop.f32.mrf.mxu0
      %870 = vdwg.mxu0
      %v871 = vadd.f32 %v821, %v866
      %vm872 = vcmask 261120
      %873 = vst.msk [vmem:[%s212] sm:$0xff] %vm872, %v871
      %p874 = scmp.lt.s32.totalorder %s15, 1
      %s875 = scalar_select %p874, %s15, 1
      %s876 = smul.addr %s875, 8
      %s877 = scalar_lea.vmem %s4, %s876
      // Predicated region
      $region37: #{conformer_separator_forward.15} parent=35 // pred_check
        %p878 = pneg %p127
      $region38: #{conformer_separator_forward.15} parent=35 // pred_check_branch
        %880 = sbr.rel (%p878) target = $region40
      $region39: #{conformer_separator_forward.15} parent=35 // pred_region
        _
      $region40: #{conformer_separator_forward.15} parent=35 // pred_fallthru
        _
    $region36: #{conformer_separator_forward.15} parent=5 // pred_fallthru
      _
    %p881 = scmp.le.s32.totalorder 2, %s10
    // Predicated region
    $region41: #{conformer_separator_forward.15} parent=5 // pred_check
      %p882 = pneg %p881
    $region42: #{conformer_separator_forward.15} parent=5 // pred_check_branch
      %884 = sbr.rel (%p882) target = $region44
    $region43: #{conformer_separator_forward.15} parent=5 // pred_region
      %s885 = ssub.s32 %s10, 2
      // Predicated region
      $region45: #{conformer_separator_forward.15} parent=43 // pred_check
        %p886 = pneg %p133
      $region46: #{conformer_separator_forward.15} parent=43 // pred_check_branch
        %888 = sbr.rel (%p886) target = $region48
      $region47: #{conformer_separator_forward.15} parent=43 // pred_region
        %p889 = scmp.lt.s32.totalorder %s16, 1
        %s890 = scalar_select %p889, %s16, 1
        %s891 = smul.addr %s890, 8
        %s892 = scalar_lea.vmem %s4, %s891
      $region48: #{conformer_separator_forward.15} parent=43 // pred_fallthru
        _
    $region44: #{conformer_separator_forward.15} parent=5 // pred_fallthru
      _
  $region6: #{conformer_separator_forward.15} parent=0 // loop_footer
    %s14 = sadd.s32 1, %s10
  $region7: #{conformer_separator_forward.15} parent=0 // loop_footer_branch
    %9 = sbr.rel target = $region3
  $region8: #{conformer_separator_forward.15} parent=0 // loop_exit
    _

// kernel: conformer_separator_forward.17
$region0: #{conformer_separator_forward.17}
  #allocation0 [shape = 'u32[]', space=smem, size = 0x4, offset = 0x4, fixed_abs, tag = 'smem constant byte address 0x4 - core index']
  #allocation1 [shape = 'u32[144,128]{1,0:T(1,128)}', space=vmem, size = 0x12000, scoped, tag = 'internal scratch']
  %s0 = inlined_call_operand.vmem [shape: f32[16,32], index: 0, kind: input, shape index: {}, may-alias: {0,9}]
  %s1 = inlined_call_operand.vmem [shape: f32[1,32], index: 1, kind: input, shape index: {}]
  %s2 = inlined_call_operand.vmem [shape: f32[1,32], index: 2, kind: input, shape index: {}]
  %s3 = inlined_call_operand.vmem [shape: bf16[32,64], index: 3, kind: input, shape index: {}]
  %s4 = inlined_call_operand.vmem [shape: f32[1,64], index: 4, kind: input, shape index: {}]
  %s5 = inlined_call_operand.vmem [shape: bf16[64,32], index: 5, kind: input, shape index: {}]
  %s6 = inlined_call_operand.vmem [shape: f32[1,32], index: 6, kind: input, shape index: {}]
  %s7 = inlined_call_operand.vmem [shape: f32[1,32], index: 7, kind: input, shape index: {}]
  %s8 = inlined_call_operand.vmem [shape: f32[1,32], index: 8, kind: input, shape index: {}]
  %s9 = inlined_call_operand.vmem [shape: f32[16,32], index: 9, kind: output, shape index: {}, may-alias: {0,9}]
  %s10 = sld [smem:[#allocation0]]
  $region46: #{conformer_separator_forward.17} parent=0
    _
  %s12 = ssub.s32 1, %s10
  %s13 = scalar_select 0, %s12, %s10
  // Predicated region
  $region2: #{conformer_separator_forward.17} parent=0 // pred_check
    _
  $region3: #{conformer_separator_forward.17} parent=0 // pred_check_branch
    %15 = sbr.rel (0) target = $region5
  $region4: #{conformer_separator_forward.17} parent=0 // pred_region
    _
  $region5: #{conformer_separator_forward.17} parent=0 // pred_fallthru
    _
  // Predicated region
  $region6: #{conformer_separator_forward.17} parent=0 // pred_check
    _
  $region7: #{conformer_separator_forward.17} parent=0 // pred_check_branch
    %17 = sbr.rel (0) target = $region9
  $region8: #{conformer_separator_forward.17} parent=0 // pred_region
    _
  $region9: #{conformer_separator_forward.17} parent=0 // pred_fallthru
    _
  // Predicated region
  $region10: #{conformer_separator_forward.17} parent=0 // pred_check
    _
  $region11: #{conformer_separator_forward.17} parent=0 // pred_check_branch
    %19 = sbr.rel (0) target = $region13
  $region12: #{conformer_separator_forward.17} parent=0 // pred_region
    _
  $region13: #{conformer_separator_forward.17} parent=0 // pred_fallthru
    _
  // Predicated region
  $region14: #{conformer_separator_forward.17} parent=0 // pred_check
    _
  $region15: #{conformer_separator_forward.17} parent=0 // pred_check_branch
    %21 = sbr.rel (0) target = $region17
  $region16: #{conformer_separator_forward.17} parent=0 // pred_region
    _
  $region17: #{conformer_separator_forward.17} parent=0 // pred_fallthru
    _
  // Predicated region
  $region18: #{conformer_separator_forward.17} parent=0 // pred_check
    _
  $region19: #{conformer_separator_forward.17} parent=0 // pred_check_branch
    %23 = sbr.rel (0) target = $region21
  $region20: #{conformer_separator_forward.17} parent=0 // pred_region
    _
  $region21: #{conformer_separator_forward.17} parent=0 // pred_fallthru
    _
  // Predicated region
  $region22: #{conformer_separator_forward.17} parent=0 // pred_check
    _
  $region23: #{conformer_separator_forward.17} parent=0 // pred_check_branch
    %25 = sbr.rel (0) target = $region25
  $region24: #{conformer_separator_forward.17} parent=0 // pred_region
    _
  $region25: #{conformer_separator_forward.17} parent=0 // pred_fallthru
    _
  // Predicated region
  $region26: #{conformer_separator_forward.17} parent=0 // pred_check
    _
  $region27: #{conformer_separator_forward.17} parent=0 // pred_check_branch
    %27 = sbr.rel (0) target = $region29
  $region28: #{conformer_separator_forward.17} parent=0 // pred_region
    _
  $region29: #{conformer_separator_forward.17} parent=0 // pred_fallthru
    _
  // Predicated region
  $region30: #{conformer_separator_forward.17} parent=0 // pred_check
    _
  $region31: #{conformer_separator_forward.17} parent=0 // pred_check_branch
    %29 = sbr.rel (0) target = $region33
  $region32: #{conformer_separator_forward.17} parent=0 // pred_region
    _
  $region33: #{conformer_separator_forward.17} parent=0 // pred_fallthru
    _
  // Predicated region
  $region34: #{conformer_separator_forward.17} parent=0 // pred_check
    _
  $region35: #{conformer_separator_forward.17} parent=0 // pred_check_branch
    %31 = sbr.rel (0) target = $region37
  $region36: #{conformer_separator_forward.17} parent=0 // pred_region
    _
  $region37: #{conformer_separator_forward.17} parent=0 // pred_fallthru
    _
  %v33 = vld [vmem:[%s0] sm:$0xff]
  %v34 = vld [vmem:[%s0 + $0x8] sm:$0xff]
  %v35 = vld [vmem:[%s1] sm:$0x1]
  %v36 = vld [vmem:[%s2] sm:$0x1]
  %vm37 = vcmask 261120
  %v38 = vsel %vm37, %v33, 0.0
  %39 = vadd.xlane.f32.xlu0 %v38
  %v40 = vpop.xlane.xlu0 %39
  %v41 = vsel %vm37, %v34, 0.0
  %42 = vadd.xlane.f32.xlu0 %v41
  %v43 = vpop.xlane.xlu0 %42
  %v44 = vrcp.pop 32.0
  %v45 = vmul.f32 %v40, %v44
  %v46 = vmul.f32 %v43, %v44
  %v47 = vsub.f32 %v33, %v45
  %v48 = vsub.f32 %v34, %v46
  %v49 = vmul.f32 %v47, %v47
  %v50 = vmul.f32 %v48, %v48
  %v51 = vsel %vm37, %v49, 0.0
  %52 = vadd.xlane.f32.xlu0 %v51
  %v53 = vpop.xlane.xlu0 %52
  %v54 = vsel %vm37, %v50, 0.0
  %55 = vadd.xlane.f32.xlu0 %v54
  %v56 = vpop.xlane.xlu0 %55
  %v57 = vmul.f32 %v53, %v44
  %v58 = vmul.f32 %v56, %v44
  %v59 = vadd.f32 %v57, 1e-05
  %v60 = vadd.f32 %v58, 1e-05
  %v61 = vrsqrt.pop %v59
  %v62 = vrsqrt.pop %v60
  %v63 = vmul.f32 %v47, %v61
  %v64 = vmul.f32 %v48, %v62
  %v66 = vlaneseq
  %v67 = vshrl.u32 %v66, 7
  %v68 = vsub.s32 0, %v67
  %v69 = vrot.slane %v35, %v68
  %v71 = vmul.f32 %v63, %v69
  %v72 = vmul.f32 %v64, %v69
  %v74 = vlaneseq
  %v75 = vshrl.u32 %v74, 7
  %v76 = vsub.s32 0, %v75
  %v77 = vrot.slane %v36, %v76
  %v79 = vadd.f32 %v71, %v77
  %v80 = vadd.f32 %v72, %v77
  %v81 = vpack.c.bf16 %v80, %v79
  %v82 = vld [vmem:[%s3] sm:$0xf]
  %v83 = vld [vmem:[%s3 + $0x4] sm:$0xf]
  %v84 = vld [vmem:[%s3 + $0x8] sm:$0xf]
  %v85 = vld [vmem:[%s3 + $0xc] sm:$0xf]
  %v86 = vld [vmem:[%s4] sm:$0x1]
  %v88 = vlaneseq
  %v89 = vshrl.u32 %v88, 7
  %v90 = vsub.s32 0, %v89
  %v91 = vrot.slane %v86, %v90
  %v97 = vunpack.c.l.b16 %v82
  %v98 = vunpack.c.l.b16 %v83
  %v99 = vunpack.c.l.b16 %v84
  %v100 = vunpack.c.l.b16 %v85
  %v101 = vpack.c.b16 %v98, %v97
  %v102 = vpack.c.b16 %v100, %v99
  %v106 = vsel %vm37, %v81, 0
  %108 = vmatprep.subr.bf16.mxu0 0
  %109 = vmatpush1.bf16.msra.mxu0 0
  %110 = vmatprep.subr.bf16.mxu0 0
  %111 = vmatpush1.bf16.msra.mxu0 0
  %112 = vmatprep.subr.bf16.mxu0 0
  %113 = vmatpush1.bf16.msra.mxu0 0
  %114 = vmatprep.subr.bf16.mxu0 0
  %115 = vmatpush1.bf16.msra.mxu0 0
  %116 = vmatprep.subr.bf16.mxu0 0
  %117 = vmatpush1.bf16.msra.mxu0 0
  %118 = vmatprep.subr.bf16.mxu0 0
  %119 = vmatpush1.bf16.msra.mxu0 0
  %120 = vmatprep.subr.bf16.mxu0 0
  %121 = vmatpush1.bf16.msra.mxu0 %v102
  %122 = vmatprep.subr.bf16.mxu0 0
  %123 = vmatpush1.bf16.msra.mxu0 %v101
  %124 = vmatprep.subr.bf16.mxu0 0
  %125 = vmatpush2.bf16.msra.mxu0 0
  %126 = vmatprep.subr.bf16.mxu0 0
  %127 = vmatpush2.bf16.msra.mxu0 0
  %128 = vmatprep.subr.bf16.mxu0 0
  %129 = vmatpush2.bf16.msra.mxu0 0
  %130 = vmatprep.subr.bf16.mxu0 0
  %131 = vmatpush2.bf16.msra.mxu0 0
  %132 = vmatprep.subr.bf16.mxu0 0
  %133 = vmatpush2.bf16.msra.mxu0 0
  %134 = vmatprep.subr.bf16.mxu0 0
  %135 = vmatpush2.bf16.msra.mxu0 0
  %136 = vmatprep.subr.bf16.mxu0 0
  %137 = vmatpush2.bf16.msra.mxu0 0
  %138 = vmatprep.subr.bf16.mxu0 0
  %139 = vmatpush2.bf16.msra.mxu0 0
  %140 = vmatprep.mubr.bf16.mxu0 0
  %141 = vmatmul.mubr.bf16.gmra.mxu0 %v106
  %v142 = vpop.f32.mrf.mxu0
  %v143 = vadd.f32 %v91, %v142
  %v144 = vpop.f32.mrf.mxu0
  %v145 = vpop.f32.mrf.mxu0
  %v146 = vadd.f32 %v91, %v145
  %v147 = vpop.f32.mrf.mxu0
  %148 = vdwg.mxu0
  %v149 = vxor.u32 %v143, 2147483648
  %v150 = vxor.u32 %v146, 2147483648
  %v151 = vmul.f32 %v149, 1.442695
  %v152 = vpow.pop %v151
  %v153 = vmul.f32 %v150, 1.442695
  %v154 = vpow.pop %v153
  %v155 = vadd.f32 %v152, 1.0
  %v156 = vadd.f32 %v154, 1.0
  %v157 = vrcp.pop %v155
  %v158 = vmul.f32 1.0, %v157
  %v159 = vrcp.pop %v156
  %v160 = vmul.f32 1.0, %v159
  %v161 = vmul.f32 %v143, %v158
  %v162 = vmul.f32 %v146, %v160
  %v163 = vpack.c.bf16 %v162, %v161
  %v164 = vld [vmem:[%s5] sm:$0xf]
  %v165 = vld [vmem:[%s5 + $0x4] sm:$0xf]
  %v166 = vld [vmem:[%s5 + $0x8] sm:$0xf]
  %v167 = vld [vmem:[%s5 + $0xc] sm:$0xf]
  %v168 = vld [vmem:[%s5 + $0x10] sm:$0xf]
  %v169 = vld [vmem:[%s5 + $0x14] sm:$0xf]
  %v170 = vld [vmem:[%s5 + $0x18] sm:$0xf]
  %v171 = vld [vmem:[%s5 + $0x1c] sm:$0xf]
  %v172 = vld [vmem:[%s6] sm:$0x1]
  %v174 = vlaneseq
  %v175 = vshrl.u32 %v174, 7
  %v176 = vsub.s32 0, %v175
  %v177 = vrot.slane %v172, %v176
  %v187 = vunpack.c.l.b16 %v164
  %v188 = vunpack.c.l.b16 %v165
  %v189 = vunpack.c.l.b16 %v166
  %v190 = vunpack.c.l.b16 %v167
  %v191 = vunpack.c.l.b16 %v168
  %v192 = vunpack.c.l.b16 %v169
  %v193 = vunpack.c.l.b16 %v170
  %v194 = vunpack.c.l.b16 %v171
  %v195 = vpack.c.b16 %v188, %v187
  %v196 = vpack.c.b16 %v190, %v189
  %v197 = vpack.c.b16 %v192, %v191
  %v198 = vpack.c.b16 %v194, %v193
  %vm203 = vcmask 523264
  %v205 = vsel %vm203, %v163, 0
  %207 = vmatprep.subr.bf16.mxu0 0
  %208 = vmatpush1.bf16.msra.mxu0 0
  %209 = vmatprep.subr.bf16.mxu0 0
  %210 = vmatpush1.bf16.msra.mxu0 0
  %211 = vmatprep.subr.bf16.mxu0 0
  %212 = vmatpush1.bf16.msra.mxu0 0
  %213 = vmatprep.subr.bf16.mxu0 0
  %214 = vmatpush1.bf16.msra.mxu0 0
  %215 = vmatprep.subr.bf16.mxu0 0
  %216 = vmatpush1.bf16.msra.mxu0 %v198
  %217 = vmatprep.subr.bf16.mxu0 0
  %218 = vmatpush1.bf16.msra.mxu0 %v197
  %219 = vmatprep.subr.bf16.mxu0 0
  %220 = vmatpush1.bf16.msra.mxu0 %v196
  %221 = vmatprep.subr.bf16.mxu0 0
  %222 = vmatpush1.bf16.msra.mxu0 %v195
  %223 = vmatprep.subr.bf16.mxu0 0
  %224 = vmatpush2.bf16.msra.mxu0 0
  %225 = vmatprep.subr.bf16.mxu0 0
  %226 = vmatpush2.bf16.msra.mxu0 0
  %227 = vmatprep.subr.bf16.mxu0 0
  %228 = vmatpush2.bf16.msra.mxu0 0
  %229 = vmatprep.subr.bf16.mxu0 0
  %230 = vmatpush2.bf16.msra.mxu0 0
  %231 = vmatprep.subr.bf16.mxu0 0
  %232 = vmatpush2.bf16.msra.mxu0 0
  %233 = vmatprep.subr.bf16.mxu0 0
  %234 = vmatpush2.bf16.msra.mxu0 0
  %235 = vmatprep.subr.bf16.mxu0 0
  %236 = vmatpush2.bf16.msra.mxu0 0
  %237 = vmatprep.subr.bf16.mxu0 0
  %238 = vmatpush2.bf16.msra.mxu0 0
  %239 = vmatprep.mubr.bf16.mxu0 0
  %240 = vmatmul.mubr.bf16.gmra.mxu0 %v205
  %v241 = vpop.f32.mrf.mxu0
  %v242 = vadd.f32 %v177, %v241
  %v243 = vpop.f32.mrf.mxu0
  %v244 = vpop.f32.mrf.mxu0
  %v245 = vadd.f32 %v177, %v244
  %v246 = vpop.f32.mrf.mxu0
  %247 = vdwg.mxu0
  %v248 = vmul.f32 %v242, 0.5
  %v249 = vmul.f32 %v245, 0.5
  %v250 = vadd.f32 %v33, %v248
  %v251 = vadd.f32 %v34, %v249
  %v252 = vld [vmem:[%s7] sm:$0x1]
  %v253 = vld [vmem:[%s8] sm:$0x1]
  %v254 = vsel %vm37, %v250, 0.0
  %255 = vadd.xlane.f32.xlu0 %v254
  %v256 = vpop.xlane.xlu0 %255
  %v257 = vsel %vm37, %v251, 0.0
  %258 = vadd.xlane.f32.xlu0 %v257
  %v259 = vpop.xlane.xlu0 %258
  %v260 = vmul.f32 %v256, %v44
  %v261 = vmul.f32 %v259, %v44
  %v262 = vsub.f32 %v250, %v260
  %v263 = vsub.f32 %v251, %v261
  %v264 = vmul.f32 %v262, %v262
  %v265 = vmul.f32 %v263, %v263
  %v266 = vsel %vm37, %v264, 0.0
  %267 = vadd.xlane.f32.xlu0 %v266
  %v268 = vpop.xlane.xlu0 %267
  %v269 = vsel %vm37, %v265, 0.0
  %270 = vadd.xlane.f32.xlu0 %v269
  %v271 = vpop.xlane.xlu0 %270
  %v272 = vmul.f32 %v268, %v44
  %v273 = vmul.f32 %v271, %v44
  %v274 = vadd.f32 %v272, 1e-05
  %v275 = vadd.f32 %v273, 1e-05
  %v276 = vrsqrt.pop %v274
  %v277 = vrsqrt.pop %v275
  %v278 = vmul.f32 %v262, %v276
  %v279 = vmul.f32 %v263, %v277
  %v281 = vlaneseq
  %v282 = vshrl.u32 %v281, 7
  %v283 = vsub.s32 0, %v282
  %v284 = vrot.slane %v252, %v283
  %v286 = vmul.f32 %v278, %v284
  %v287 = vmul.f32 %v279, %v284
  %v289 = vlaneseq
  %v290 = vshrl.u32 %v289, 7
  %v291 = vsub.s32 0, %v290
  %v292 = vrot.slane %v253, %v291
  %v294 = vadd.f32 %v286, %v292
  %v295 = vadd.f32 %v287, %v292
  %296 = vst.msk [vmem:[%s9] sm:$0xff] %vm37, %v294
  %297 = vst.msk [vmem:[%s9 + $0x8] sm:$0xff] %vm37, %v295
  // Predicated region
  $region38: #{conformer_separator_forward.17} parent=0 // pred_check
    _
  $region39: #{conformer_separator_forward.17} parent=0 // pred_check_branch
    %299 = sbr.rel (0) target = $region41
  $region40: #{conformer_separator_forward.17} parent=0 // pred_region
    _
  $region41: #{conformer_separator_forward.17} parent=0 // pred_fallthru
    _
  // Predicated region
  $region42: #{conformer_separator_forward.17} parent=0 // pred_check
    _
  $region43: #{conformer_separator_forward.17} parent=0 // pred_check_branch
    %301 = sbr.rel (0) target = $region45
  $region44: #{conformer_separator_forward.17} parent=0 // pred_region
    _
  $region45: #{conformer_separator_forward.17} parent=0 // pred_fallthru
    _

// kernel: conformer_separator_forward.23
$region0: #{conformer_separator_forward.23}
  #allocation0 [shape = 'u32[]', space=smem, size = 0x4, offset = 0x4, fixed_abs, tag = 'smem constant byte address 0x4 - core index']
  #allocation1 [shape = 'u32[144,128]{1,0:T(1,128)}', space=vmem, size = 0x12000, scoped, tag = 'internal scratch']
  %s0 = inlined_call_operand.vmem [shape: f32[2,8,32], index: 0, kind: input, shape index: {}]
  %s1 = inlined_call_operand.vmem [shape: bf16[32,96], index: 1, kind: input, shape index: {}]
  %s2 = inlined_call_operand.vmem [shape: bf16[32,96], index: 2, kind: input, shape index: {}]
  %s3 = inlined_call_operand.vmem [shape: f32[1,96], index: 3, kind: input, shape index: {}]
  %s4 = inlined_call_operand.vmem [shape: f32[1,96], index: 4, kind: input, shape index: {}]
  %s5 = inlined_call_operand.vmem [shape: f32[1,96], index: 5, kind: input, shape index: {}]
  %s6 = inlined_call_operand.vmem [shape: f32[2,9,96], index: 6, kind: output, shape index: {}]
  %s7 = sld [smem:[#allocation0]]
  $region57: #{conformer_separator_forward.23} parent=0
    _
  %s9 = ssub.s32 1, %s7
  %s10 = scalar_select 0, %s9, %s7
  loop: start=0, step=1, limit=4
  $region2: #{conformer_separator_forward.23} parent=0 // loop_pre_header
    _
  $region3: #{conformer_separator_forward.23} parent=0 // loop_header
    %s12 = sphi 0, %s16
    %p13 = scmp.ge.s32.totalorder %s12, 4
    %s22 = sphi 0, %s24
    %s25 = sphi 0, %s22
    %s26 = sphi 0, %s25
    %s42 = sphi 0, %s26
    %s46 = sphi 0, %s46
    %s48 = sphi 0, %s46
    %s49 = sphi 0, %s48
    %s63 = sphi 0, %s49
    %s67 = sphi 0, %s67
    %s69 = sphi 0, %s67
    %s70 = sphi 0, %s69
    %s84 = sphi 0, %s70
    %s88 = sphi 0, %s88
    %s90 = sphi 0, %s88
    %s91 = sphi 0, %s90
    %s105 = sphi 0, %s91
    %s109 = sphi 0, %s109
    %s111 = sphi 0, %s109
    %s112 = sphi 0, %s111
    %s126 = sphi 0, %s112
    %s130 = sphi 0, %s130
    %s132 = sphi 0, %s130
    %s133 = sphi 0, %s132
    %s147 = sphi 0, %s133
    %s153 = sphi 0, %s155
    %s156 = sphi 0, %s153
    %s157 = sphi 0, %s156
    %s173 = sphi 0, %s157
  $region4: #{conformer_separator_forward.23} parent=0 // loop_header_branch
    %15 = sbr.rel (%p13) target = $region8
  $region5: #{conformer_separator_forward.23} parent=0 // loop_body
    %s17 = ssub.s32 %s12, 1
    %s18 = ssub.s32 %s12, 2
    %s19 = sadd.s32 %s12, 1
    %s20 = ssub.s32 %s12, %s19
    %p21 = scmp.eq.s32.totalorder %s20, 0
    %s23 = sadd.s32 %s22, 1
    %s24 = scalar_select %p21, %s22, %s23
    %p27 = pneg %p21
    %p28 = scmp.eq.s32.totalorder %s12, 1
    %p29 = por %p27, %p28
    %p30 = scmp.ne.s32.totalorder %s22, %s25
    %p31 = scmp.eq.s32.totalorder %s12, 0
    %p32 = por %p30, %p31
    %p33 = scmp.ne.s32.totalorder %s22, %s25
    %p34 = scmp.eq.s32.totalorder %s17, 1
    %p35 = por %p33, %p34
    %p36 = scmp.ne.s32.totalorder %s25, %s26
    %p37 = scmp.eq.s32.totalorder %s17, 0
    %p38 = por %p36, %p37
    %p39 = scmp.ne.s32.totalorder %s25, %s26
    %p40 = scmp.eq.s32.totalorder %s18, 1
    %p41 = por %p39, %p40
    %p43 = scmp.ne.s32.totalorder %s26, %s42
    %p44 = scmp.eq.s32.totalorder %s18, 0
    %p45 = por %p43, %p44
    %s47 = sadd.s32 %s46, 1
    %p50 = scmp.eq.s32.totalorder %s12, 1
    %p51 = scmp.ne.s32.totalorder %s46, %s48
    %p52 = scmp.eq.s32.totalorder %s12, 0
    %p53 = por %p51, %p52
    %p54 = scmp.ne.s32.totalorder %s46, %s48
    %p55 = scmp.eq.s32.totalorder %s17, 1
    %p56 = por %p54, %p55
    %p57 = scmp.ne.s32.totalorder %s48, %s49
    %p58 = scmp.eq.s32.totalorder %s17, 0
    %p59 = por %p57, %p58
    %p60 = scmp.ne.s32.totalorder %s48, %s49
    %p61 = scmp.eq.s32.totalorder %s18, 1
    %p62 = por %p60, %p61
    %p64 = scmp.ne.s32.totalorder %s49, %s63
    %p65 = scmp.eq.s32.totalorder %s18, 0
    %p66 = por %p64, %p65
    %s68 = sadd.s32 %s67, 1
    %p71 = scmp.eq.s32.totalorder %s12, 1
    %p72 = scmp.ne.s32.totalorder %s67, %s69
    %p73 = scmp.eq.s32.totalorder %s12, 0
    %p74 = por %p72, %p73
    %p75 = scmp.ne.s32.totalorder %s67, %s69
    %p76 = scmp.eq.s32.totalorder %s17, 1
    %p77 = por %p75, %p76
    %p78 = scmp.ne.s32.totalorder %s69, %s70
    %p79 = scmp.eq.s32.totalorder %s17, 0
    %p80 = por %p78, %p79
    %p81 = scmp.ne.s32.totalorder %s69, %s70
    %p82 = scmp.eq.s32.totalorder %s18, 1
    %p83 = por %p81, %p82
    %p85 = scmp.ne.s32.totalorder %s70, %s84
    %p86 = scmp.eq.s32.totalorder %s18, 0
    %p87 = por %p85, %p86
    %s89 = sadd.s32 %s88, 1
    %p92 = scmp.eq.s32.totalorder %s12, 1
    %p93 = scmp.ne.s32.totalorder %s88, %s90
    %p94 = scmp.eq.s32.totalorder %s12, 0
    %p95 = por %p93, %p94
    %p96 = scmp.ne.s32.totalorder %s88, %s90
    %p97 = scmp.eq.s32.totalorder %s17, 1
    %p98 = por %p96, %p97
    %p99 = scmp.ne.s32.totalorder %s90, %s91
    %p100 = scmp.eq.s32.totalorder %s17, 0
    %p101 = por %p99, %p100
    %p102 = scmp.ne.s32.totalorder %s90, %s91
    %p103 = scmp.eq.s32.totalorder %s18, 1
    %p104 = por %p102, %p103
    %p106 = scmp.ne.s32.totalorder %s91, %s105
    %p107 = scmp.eq.s32.totalorder %s18, 0
    %p108 = por %p106, %p107
    %s110 = sadd.s32 %s109, 1
    %p113 = scmp.eq.s32.totalorder %s12, 1
    %p114 = scmp.ne.s32.totalorder %s109, %s111
    %p115 = scmp.eq.s32.totalorder %s12, 0
    %p116 = por %p114, %p115
    %p117 = scmp.ne.s32.totalorder %s109, %s111
    %p118 = scmp.eq.s32.totalorder %s17, 1
    %p119 = por %p117, %p118
    %p120 = scmp.ne.s32.totalorder %s111, %s112
    %p121 = scmp.eq.s32.totalorder %s17, 0
    %p122 = por %p120, %p121
    %p123 = scmp.ne.s32.totalorder %s111, %s112
    %p124 = scmp.eq.s32.totalorder %s18, 1
    %p125 = por %p123, %p124
    %p127 = scmp.ne.s32.totalorder %s112, %s126
    %p128 = scmp.eq.s32.totalorder %s18, 0
    %p129 = por %p127, %p128
    %s131 = sadd.s32 %s130, 1
    %p134 = scmp.eq.s32.totalorder %s12, 1
    %p135 = scmp.ne.s32.totalorder %s130, %s132
    %p136 = scmp.eq.s32.totalorder %s12, 0
    %p137 = por %p135, %p136
    %p138 = scmp.ne.s32.totalorder %s130, %s132
    %p139 = scmp.eq.s32.totalorder %s17, 1
    %p140 = por %p138, %p139
    %p141 = scmp.ne.s32.totalorder %s132, %s133
    %p142 = scmp.eq.s32.totalorder %s17, 0
    %p143 = por %p141, %p142
    %p144 = scmp.ne.s32.totalorder %s132, %s133
    %p145 = scmp.eq.s32.totalorder %s18, 1
    %p146 = por %p144, %p145
    %p148 = scmp.ne.s32.totalorder %s133, %s147
    %p149 = scmp.eq.s32.totalorder %s18, 0
    %p150 = por %p148, %p149
    %s151 = ssub.s32 %s12, %s19
    %p152 = scmp.eq.s32.totalorder %s151, 0
    %s154 = sadd.s32 %s153, 1
    %s155 = scalar_select %p152, %s153, %s154
    %p158 = pneg %p152
    %p159 = scmp.eq.s32.totalorder %s12, 1
    %p160 = por %p158, %p159
    %p161 = scmp.ne.s32.totalorder %s153, %s156
    %p162 = scmp.eq.s32.totalorder %s12, 0
    %p163 = por %p161, %p162
    %p164 = scmp.ne.s32.totalorder %s153, %s156
    %p165 = scmp.eq.s32.totalorder %s17, 1
    %p166 = por %p164, %p165
    %p167 = scmp.ne.s32.totalorder %s156, %s157
    %p168 = scmp.eq.s32.totalorder %s17, 0
    %p169 = por %p167, %p168
    %p170 = scmp.ne.s32.totalorder %s156, %s157
    %p171 = scmp.eq.s32.totalorder %s18, 1
    %p172 = por %p170, %p171
    %p174 = scmp.ne.s32.totalorder %s157, %s173
    %p175 = scmp.eq.s32.totalorder %s18, 0
    %p176 = por %p174, %p175
    %p177 = scmp.le.s32.totalorder 1, %s12
    %p178 = scmp.lt.s32.totalorder %s12, 3
    %p179 = pnand %p177, %p178
    %p180 = pneg %p179
    // Predicated region
    $region9: #{conformer_separator_forward.23} parent=5 // pred_check
      _
    $region10: #{conformer_separator_forward.23} parent=5 // pred_check_branch
      %182 = sbr.rel (%p179) target = $region12
    $region11: #{conformer_separator_forward.23} parent=5 // pred_region
      %s183 = ssub.s32 %s12, 1
      // Predicated region
      $region13: #{conformer_separator_forward.23} parent=11 // pred_check
        %p184 = pneg %p59
      $region14: #{conformer_separator_forward.23} parent=11 // pred_check_branch
        %186 = sbr.rel (%p184) target = $region16
      $region15: #{conformer_separator_forward.23} parent=11 // pred_region
        _
      $region16: #{conformer_separator_forward.23} parent=11 // pred_fallthru
        _
      // Predicated region
      $region17: #{conformer_separator_forward.23} parent=11 // pred_check
        %p187 = pneg %p80
      $region18: #{conformer_separator_forward.23} parent=11 // pred_check_branch
        %189 = sbr.rel (%p187) target = $region20
      $region19: #{conformer_separator_forward.23} parent=11 // pred_region
        _
      $region20: #{conformer_separator_forward.23} parent=11 // pred_fallthru
        _
      // Predicated region
      $region21: #{conformer_separator_forward.23} parent=11 // pred_check
        %p190 = pneg %p101
      $region22: #{conformer_separator_forward.23} parent=11 // pred_check_branch
        %192 = sbr.rel (%p190) target = $region24
      $region23: #{conformer_separator_forward.23} parent=11 // pred_region
        _
      $region24: #{conformer_separator_forward.23} parent=11 // pred_fallthru
        _
      // Predicated region
      $region25: #{conformer_separator_forward.23} parent=11 // pred_check
        %p193 = pneg %p122
      $region26: #{conformer_separator_forward.23} parent=11 // pred_check_branch
        %195 = sbr.rel (%p193) target = $region28
      $region27: #{conformer_separator_forward.23} parent=11 // pred_region
        _
      $region28: #{conformer_separator_forward.23} parent=11 // pred_fallthru
        _
      // Predicated region
      $region29: #{conformer_separator_forward.23} parent=11 // pred_check
        %p196 = pneg %p143
      $region30: #{conformer_separator_forward.23} parent=11 // pred_check_branch
        %198 = sbr.rel (%p196) target = $region32
      $region31: #{conformer_separator_forward.23} parent=11 // pred_region
        _
      $region32: #{conformer_separator_forward.23} parent=11 // pred_fallthru
        _
    $region12: #{conformer_separator_forward.23} parent=5 // pred_fallthru
      _
    %p199 = scmp.lt.s32.totalorder %s12, 2
    // Predicated region
    $region33: #{conformer_separator_forward.23} parent=5 // pred_check
      %p200 = pneg %p199
    $region34: #{conformer_separator_forward.23} parent=5 // pred_check_branch
      %202 = sbr.rel (%p200) target = $region36
    $region35: #{conformer_separator_forward.23} parent=5 // pred_region
      // Predicated region
      $region37: #{conformer_separator_forward.23} parent=35 // pred_check
        %p203 = pneg %p32
      $region38: #{conformer_separator_forward.23} parent=35 // pred_check_branch
        %205 = sbr.rel (%p203) target = $region40
      $region39: #{conformer_separator_forward.23} parent=35 // pred_region
        %p206 = scmp.lt.s32.totalorder %s12, 1
        %s207 = scalar_select %p206, %s12, 1
        %s208 = smul.addr %s207, 8
        %s209 = scalar_lea.vmem %s0, %s208
      $region40: #{conformer_separator_forward.23} parent=35 // pred_fallthru
        _
    $region36: #{conformer_separator_forward.23} parent=5 // pred_fallthru
      _
    %p210 = scmp.le.s32.totalorder 1, %s12
    %p211 = scmp.lt.s32.totalorder %s12, 3
    %p212 = pnand %p210, %p211
    %p213 = pneg %p212
    // Predicated region
    $region41: #{conformer_separator_forward.23} parent=5 // pred_check
      _
    $region42: #{conformer_separator_forward.23} parent=5 // pred_check_branch
      %215 = sbr.rel (%p212) target = $region44
    $region43: #{conformer_separator_forward.23} parent=5 // pred_region
      %s216 = ssub.s32 %s12, 1
      %p217 = scmp.lt.s32.totalorder %s17, 1
      %s218 = scalar_select %p217, %s17, 1
      %s219 = smul.addr %s218, 8
      %s220 = scalar_lea.vmem %s0, %s219
      %p221 = pneg %p38
      %p222 = pneg %p35
      %p223 = pneg %p59
      %p224 = pneg %p56
      %p225 = pneg %p80
      %p226 = pneg %p77
      %p227 = pneg %p101
      %p228 = pneg %p98
      %p229 = pneg %p122
      %p230 = pneg %p119
      %p231 = pneg %p143
      %p232 = pneg %p140
      %p233 = pneg %p169
      %p234 = pneg %p166
      %p235 = scmp.lt.s32.totalorder %s17, 1
      %s236 = scalar_select %p235, %s17, 1
      %s237 = smul.addr %s236, 2
      %s238 = smul.addr %s237, 8
      %s239 = scalar_lea.vmem %s6, %s238
      %p240 = scmp.lt.s32.totalorder %s17, 1
      %s241 = scalar_select %p240, %s17, 1
      %s242 = smul.addr %s241, 8
      %s243 = scalar_lea.vmem %s0, %s242
      %p244 = scmp.lt.s32.totalorder %s17, 1
      %s245 = scalar_select %p244, %s17, 1
      %s246 = smul.addr %s245, 2
      %s247 = smul.addr %s246, 8
      %s248 = scalar_lea.vmem %s6, %s247
      %v250 = vld [vmem:[%s243] sm:$0xff]
      %v251 = vpack.c.bf16 %v250, %v250
      %v252 = vld [vmem:[%s1] sm:$0xf]
      %v253 = vld [vmem:[%s1 + $0x4] sm:$0xf]
      %v254 = vld [vmem:[%s1 + $0x8] sm:$0xf]
      %v255 = vld [vmem:[%s1 + $0xc] sm:$0xf]
      %v260 = vunpack.c.l.b16 %v252
      %v261 = vunpack.c.l.b16 %v253
      %v262 = vunpack.c.l.b16 %v254
      %v263 = vunpack.c.l.b16 %v255
      %v264 = vpack.c.b16 %v261, %v260
      %v265 = vpack.c.b16 %v263, %v262
      %vm268 = vcmask 261120
      %v270 = vsel %vm268, %v251, 0
      %272 = vmatprep.subr.bf16.mxu0 0
      %273 = vmatpush1.bf16.msra.mxu0 0
      %274 = vmatprep.subr.bf16.mxu0 0
      %275 = vmatpush1.bf16.msra.mxu0 0
      %276 = vmatprep.subr.bf16.mxu0 0
      %277 = vmatpush1.bf16.msra.mxu0 0
      %278 = vmatprep.subr.bf16.mxu0 0
      %279 = vmatpush1.bf16.msra.mxu0 0
      %280 = vmatprep.subr.bf16.mxu0 0
      %281 = vmatpush1.bf16.msra.mxu0 0
      %282 = vmatprep.subr.bf16.mxu0 0
      %283 = vmatpush1.bf16.msra.mxu0 0
      %284 = vmatprep.subr.bf16.mxu0 0
      %285 = vmatpush1.bf16.msra.mxu0 %v265
      %286 = vmatprep.subr.bf16.mxu0 0
      %287 = vmatpush1.bf16.msra.mxu0 %v264
      %288 = vmatprep.subr.bf16.mxu0 0
      %289 = vmatpush2.bf16.msra.mxu0 0
      %290 = vmatprep.subr.bf16.mxu0 0
      %291 = vmatpush2.bf16.msra.mxu0 0
      %292 = vmatprep.subr.bf16.mxu0 0
      %293 = vmatpush2.bf16.msra.mxu0 0
      %294 = vmatprep.subr.bf16.mxu0 0
      %295 = vmatpush2.bf16.msra.mxu0 0
      %296 = vmatprep.subr.bf16.mxu0 0
      %297 = vmatpush2.bf16.msra.mxu0 0
      %298 = vmatprep.subr.bf16.mxu0 0
      %299 = vmatpush2.bf16.msra.mxu0 0
      %300 = vmatprep.subr.bf16.mxu0 0
      %301 = vmatpush2.bf16.msra.mxu0 0
      %302 = vmatprep.subr.bf16.mxu0 0
      %303 = vmatpush2.bf16.msra.mxu0 0
      %304 = vmatprep.mubr.bf16.mxu0 0
      %305 = vmatmul.mubr.bf16.gmra.mxu0 %v270
      %v306 = vpop.f32.mrf.mxu0
      %v307 = vadd.f32 0.0, %v306
      %v308 = vpop.f32.mrf.mxu0
      %v309 = vpop.f32.mrf.mxu0
      %v310 = vpop.f32.mrf.mxu0
      %311 = vdwg.mxu0
      %v312 = vld [vmem:[%s2] sm:$0xf]
      %v313 = vld [vmem:[%s2 + $0x4] sm:$0xf]
      %v314 = vld [vmem:[%s2 + $0x8] sm:$0xf]
      %v315 = vld [vmem:[%s2 + $0xc] sm:$0xf]
      %v320 = vunpack.c.l.b16 %v312
      %v321 = vunpack.c.l.b16 %v313
      %v322 = vunpack.c.l.b16 %v314
      %v323 = vunpack.c.l.b16 %v315
      %v324 = vpack.c.b16 %v321, %v320
      %v325 = vpack.c.b16 %v323, %v322
      %328 = vmatprep.subr.bf16.mxu0 0
      %329 = vmatpush1.bf16.msra.mxu0 0
      %330 = vmatprep.subr.bf16.mxu0 0
      %331 = vmatpush1.bf16.msra.mxu0 0
      %332 = vmatprep.subr.bf16.mxu0 0
      %333 = vmatpush1.bf16.msra.mxu0 0
      %334 = vmatprep.subr.bf16.mxu0 0
      %335 = vmatpush1.bf16.msra.mxu0 0
      %336 = vmatprep.subr.bf16.mxu0 0
      %337 = vmatpush1.bf16.msra.mxu0 0
      %338 = vmatprep.subr.bf16.mxu0 0
      %339 = vmatpush1.bf16.msra.mxu0 0
      %340 = vmatprep.subr.bf16.mxu0 0
      %341 = vmatpush1.bf16.msra.mxu0 %v325
      %342 = vmatprep.subr.bf16.mxu0 0
      %343 = vmatpush1.bf16.msra.mxu0 %v324
      %344 = vmatprep.subr.bf16.mxu0 0
      %345 = vmatpush2.bf16.msra.mxu0 0
      %346 = vmatprep.subr.bf16.mxu0 0
      %347 = vmatpush2.bf16.msra.mxu0 0
      %348 = vmatprep.subr.bf16.mxu0 0
      %349 = vmatpush2.bf16.msra.mxu0 0
      %350 = vmatprep.subr.bf16.mxu0 0
      %351 = vmatpush2.bf16.msra.mxu0 0
      %352 = vmatprep.subr.bf16.mxu0 0
      %353 = vmatpush2.bf16.msra.mxu0 0
      %354 = vmatprep.subr.bf16.mxu0 0
      %355 = vmatpush2.bf16.msra.mxu0 0
      %356 = vmatprep.subr.bf16.mxu0 0
      %357 = vmatpush2.bf16.msra.mxu0 0
      %358 = vmatprep.subr.bf16.mxu0 0
      %359 = vmatpush2.bf16.msra.mxu0 0
      %360 = vmatprep.mubr.bf16.mxu0 0
      %361 = vmatmul.mubr.bf16.gmra.mxu0 %v270
      %v362 = vpop.f32.mrf.mxu0
      %v363 = vadd.f32 0.0, %v362
      %v364 = vpop.f32.mrf.mxu0
      %v365 = vpop.f32.mrf.mxu0
      %v366 = vpop.f32.mrf.mxu0
      %367 = vdwg.mxu0
      %v369 = vrot.slane %v307, 7
      %vm371 = vcmask 1040384
      %v372 = vsel %vm371, 0.0, %v369
      %v373 = vadd.f32 %v363, %v372
      %v374 = vadd.f32 %v369, 0.0
      %v375 = vld [vmem:[%s3] sm:$0x1]
      %v377 = vlaneseq
      %v378 = vshrl.u32 %v377, 7
      %v379 = vsub.s32 0, %v378
      %v380 = vrot.slane %v375, %v379
      %v382 = vadd.f32 %v373, %v380
      %v383 = vadd.f32 %v374, %v380
      %v384 = vld [vmem:[%s4] sm:$0x1]
      %v385 = vld [vmem:[%s5] sm:$0x1]
      %vm386 = vcmask 785408
      %v387 = vsel %vm386, %v382, 0.0
      %388 = vadd.xlane.f32.xlu0 %v387
      %v389 = vpop.xlane.xlu0 %388
      %vm390 = vcmask 778240
      %v391 = vsel %vm390, %v383, 0.0
      %392 = vadd.xlane.f32.xlu0 %v391
      %v393 = vpop.xlane.xlu0 %392
      %v394 = vrcp.pop 96.0
      %v395 = vmul.f32 %v389, %v394
      %v396 = vmul.f32 %v393, %v394
      %v397 = vsub.f32 %v382, %v395
      %v398 = vsub.f32 %v383, %v396
      %v399 = vmul.f32 %v397, %v397
      %v400 = vmul.f32 %v398, %v398
      %v401 = vsel %vm386, %v399, 0.0
      %402 = vadd.xlane.f32.xlu0 %v401
      %v403 = vpop.xlane.xlu0 %402
      %v404 = vsel %vm390, %v400, 0.0
      %405 = vadd.xlane.f32.xlu0 %v404
      %v406 = vpop.xlane.xlu0 %405
      %v407 = vmul.f32 %v403, %v394
      %v408 = vmul.f32 %v406, %v394
      %v409 = vadd.f32 %v407, 1e-05
      %v410 = vadd.f32 %v408, 1e-05
      %v411 = vrsqrt.pop %v409
      %v412 = vrsqrt.pop %v410
      %v413 = vmul.f32 %v397, %v411
      %v414 = vmul.f32 %v398, %v412
      %v416 = vlaneseq
      %v417 = vshrl.u32 %v416, 7
      %v418 = vsub.s32 0, %v417
      %v419 = vrot.slane %v384, %v418
      %v421 = vmul.f32 %v413, %v419
      %v422 = vmul.f32 %v414, %v419
      %v424 = vlaneseq
      %v425 = vshrl.u32 %v424, 7
      %v426 = vsub.s32 0, %v425
      %v427 = vrot.slane %v385, %v426
      %v429 = vadd.f32 %v421, %v427
      %v430 = vadd.f32 %v422, %v427
      %v431 = vmax.f32 %v429, 0.0
      %v432 = vmax.f32 %v430, 0.0
      %433 = vst.msk [vmem:[%s248] sm:$0xff] %vm386, %v431
      %434 = vst.msk [vmem:[%s248 + $0x8] sm:$0x1] %vm390, %v432
      %p435 = scmp.lt.s32.totalorder %s17, 1
      %s436 = scalar_select %p435, %s17, 1
      %s437 = smul.addr %s436, 2
      %s438 = smul.addr %s437, 8
      %s439 = scalar_lea.vmem %s6, %s438
      // Predicated region
      $region45: #{conformer_separator_forward.23} parent=43 // pred_check
        %p440 = pneg %p166
      $region46: #{conformer_separator_forward.23} parent=43 // pred_check_branch
        %442 = sbr.rel (%p440) target = $region48
      $region47: #{conformer_separator_forward.23} parent=43 // pred_region
        _
      $region48: #{conformer_separator_forward.23} parent=43 // pred_fallthru
        _
    $region44: #{conformer_separator_forward.23} parent=5 // pred_fallthru
      _
    %p443 = scmp.le.s32.totalorder 2, %s12
    // Predicated region
    $region49: #{conformer_separator_forward.23} parent=5 // pred_check
      %p444 = pneg %p443
    $region50: #{conformer_separator_forward.23} parent=5 // pred_check_branch
      %446 = sbr.rel (%p444) target = $region52
    $region51: #{conformer_separator_forward.23} parent=5 // pred_region
      %s447 = ssub.s32 %s12, 2
      // Predicated region
      $region53: #{conformer_separator_forward.23} parent=51 // pred_check
        %p448 = pneg %p172
      $region54: #{conformer_separator_forward.23} parent=51 // pred_check_branch
        %450 = sbr.rel (%p448) target = $region56
      $region55: #{conformer_separator_forward.23} parent=51 // pred_region
        %p451 = scmp.lt.s32.totalorder %s18, 1
        %s452 = scalar_select %p451, %s18, 1
        %s453 = smul.addr %s452, 2
        %s454 = smul.addr %s453, 8
        %s455 = scalar_lea.vmem %s6, %s454
      $region56: #{conformer_separator_forward.23} parent=51 // pred_fallthru
        _
    $region52: #{conformer_separator_forward.23} parent=5 // pred_fallthru
      _
  $region6: #{conformer_separator_forward.23} parent=0 // loop_footer
    %s16 = sadd.s32 1, %s12
  $region7: #{conformer_separator_forward.23} parent=0 // loop_footer_branch
    %11 = sbr.rel target = $region3
  $region8: #{conformer_separator_forward.23} parent=0 // loop_exit
    _

// kernel: conformer_separator_forward.16
$region0: #{conformer_separator_forward.16}
  #allocation0 [shape = 'u32[]', space=smem, size = 0x4, offset = 0x4, fixed_abs, tag = 'smem constant byte address 0x4 - core index']
  #allocation1 [shape = 'u32[144,128]{1,0:T(1,128)}', space=vmem, size = 0x12000, scoped, tag = 'internal scratch']
  #allocation2 [shape = 'f32[14,32]{1,0:T(8,128)}', space=vmem, size = 0x2000, scoped, tag = 'scratch operand']
  %s0 = inlined_call_operand.vmem [shape: f32[2,8,32], index: 0, kind: input, shape index: {}, may-alias: {0,13}]
  %s1 = inlined_call_operand.vmem [shape: f32[1,32], index: 1, kind: input, shape index: {}]
  %s2 = inlined_call_operand.vmem [shape: f32[1,32], index: 2, kind: input, shape index: {}]
  %s3 = inlined_call_operand.vmem [shape: bf16[32,64], index: 3, kind: input, shape index: {}]
  %s4 = inlined_call_operand.vmem [shape: f32[1,64], index: 4, kind: input, shape index: {}]
  %s5 = inlined_call_operand.vmem [shape: f32[7,32], index: 5, kind: input, shape index: {}]
  %s6 = inlined_call_operand.vmem [shape: f32[1,32], index: 6, kind: input, shape index: {}]
  %s7 = inlined_call_operand.vmem [shape: f32[1,32], index: 7, kind: input, shape index: {}]
  %s8 = inlined_call_operand.vmem [shape: f32[1,32], index: 8, kind: input, shape index: {}]
  %s9 = inlined_call_operand.vmem [shape: f32[1,32], index: 9, kind: input, shape index: {}]
  %s10 = inlined_call_operand.vmem [shape: f32[1,32], index: 10, kind: input, shape index: {}]
  %s11 = inlined_call_operand.vmem [shape: bf16[32,32], index: 11, kind: input, shape index: {}]
  %s12 = inlined_call_operand.vmem [shape: f32[1,32], index: 12, kind: input, shape index: {}]
  %s13 = inlined_call_operand.vmem [shape: f32[2,8,32], index: 13, kind: output, shape index: {}, may-alias: {0,13}]
  %s14 = sld [smem:[#allocation0]]
  $region85: #{conformer_separator_forward.16} parent=0
    _
  %s16 = ssub.s32 1, %s14
  %s17 = scalar_select 0, %s16, %s14
  loop: start=0, step=1, limit=4
  $region2: #{conformer_separator_forward.16} parent=0 // loop_pre_header
    _
  $region3: #{conformer_separator_forward.16} parent=0 // loop_header
    %s19 = sphi 0, %s23
    %p20 = scmp.ge.s32.totalorder %s19, 4
    %s29 = sphi 0, %s31
    %s32 = sphi 0, %s29
    %s33 = sphi 0, %s32
    %s49 = sphi 0, %s33
    %s53 = sphi 0, %s53
    %s55 = sphi 0, %s53
    %s56 = sphi 0, %s55
    %s70 = sphi 0, %s56
    %s74 = sphi 0, %s74
    %s76 = sphi 0, %s74
    %s77 = sphi 0, %s76
    %s91 = sphi 0, %s77
    %s95 = sphi 0, %s95
    %s97 = sphi 0, %s95
    %s98 = sphi 0, %s97
    %s112 = sphi 0, %s98
    %s116 = sphi 0, %s116
    %s118 = sphi 0, %s116
    %s119 = sphi 0, %s118
    %s133 = sphi 0, %s119
    %s137 = sphi 0, %s137
    %s139 = sphi 0, %s137
    %s140 = sphi 0, %s139
    %s154 = sphi 0, %s140
    %s158 = sphi 0, %s158
    %s160 = sphi 0, %s158
    %s161 = sphi 0, %s160
    %s175 = sphi 0, %s161
    %s179 = sphi 0, %s179
    %s181 = sphi 0, %s179
    %s182 = sphi 0, %s181
    %s196 = sphi 0, %s182
    %s200 = sphi 0, %s200
    %s202 = sphi 0, %s200
    %s203 = sphi 0, %s202
    %s217 = sphi 0, %s203
    %s221 = sphi 0, %s221
    %s223 = sphi 0, %s221
    %s224 = sphi 0, %s223
    %s238 = sphi 0, %s224
    %s242 = sphi 0, %s242
    %s244 = sphi 0, %s242
    %s245 = sphi 0, %s244
    %s259 = sphi 0, %s245
    %s263 = sphi 0, %s263
    %s265 = sphi 0, %s263
    %s266 = sphi 0, %s265
    %s280 = sphi 0, %s266
    %s284 = sphi 0, %s284
    %s286 = sphi 0, %s284
    %s287 = sphi 0, %s286
    %s301 = sphi 0, %s287
    %s307 = sphi 0, %s309
    %s310 = sphi 0, %s307
    %s311 = sphi 0, %s310
    %s327 = sphi 0, %s311
  $region4: #{conformer_separator_forward.16} parent=0 // loop_header_branch
    %22 = sbr.rel (%p20) target = $region8
  $region5: #{conformer_separator_forward.16} parent=0 // loop_body
    %s24 = ssub.s32 %s19, 1
    %s25 = ssub.s32 %s19, 2
    %s26 = sadd.s32 %s19, 1
    %s27 = ssub.s32 %s19, %s26
    %p28 = scmp.eq.s32.totalorder %s27, 0
    %s30 = sadd.s32 %s29, 1
    %s31 = scalar_select %p28, %s29, %s30
    %p34 = pneg %p28
    %p35 = scmp.eq.s32.totalorder %s19, 1
    %p36 = por %p34, %p35
    %p37 = scmp.ne.s32.totalorder %s29, %s32
    %p38 = scmp.eq.s32.totalorder %s19, 0
    %p39 = por %p37, %p38
    %p40 = scmp.ne.s32.totalorder %s29, %s32
    %p41 = scmp.eq.s32.totalorder %s24, 1
    %p42 = por %p40, %p41
    %p43 = scmp.ne.s32.totalorder %s32, %s33
    %p44 = scmp.eq.s32.totalorder %s24, 0
    %p45 = por %p43, %p44
    %p46 = scmp.ne.s32.totalorder %s32, %s33
    %p47 = scmp.eq.s32.totalorder %s25, 1
    %p48 = por %p46, %p47
    %p50 = scmp.ne.s32.totalorder %s33, %s49
    %p51 = scmp.eq.s32.totalorder %s25, 0
    %p52 = por %p50, %p51
    %s54 = sadd.s32 %s53, 1
    %p57 = scmp.eq.s32.totalorder %s19, 1
    %p58 = scmp.ne.s32.totalorder %s53, %s55
    %p59 = scmp.eq.s32.totalorder %s19, 0
    %p60 = por %p58, %p59
    %p61 = scmp.ne.s32.totalorder %s53, %s55
    %p62 = scmp.eq.s32.totalorder %s24, 1
    %p63 = por %p61, %p62
    %p64 = scmp.ne.s32.totalorder %s55, %s56
    %p65 = scmp.eq.s32.totalorder %s24, 0
    %p66 = por %p64, %p65
    %p67 = scmp.ne.s32.totalorder %s55, %s56
    %p68 = scmp.eq.s32.totalorder %s25, 1
    %p69 = por %p67, %p68
    %p71 = scmp.ne.s32.totalorder %s56, %s70
    %p72 = scmp.eq.s32.totalorder %s25, 0
    %p73 = por %p71, %p72
    %s75 = sadd.s32 %s74, 1
    %p78 = scmp.eq.s32.totalorder %s19, 1
    %p79 = scmp.ne.s32.totalorder %s74, %s76
    %p80 = scmp.eq.s32.totalorder %s19, 0
    %p81 = por %p79, %p80
    %p82 = scmp.ne.s32.totalorder %s74, %s76
    %p83 = scmp.eq.s32.totalorder %s24, 1
    %p84 = por %p82, %p83
    %p85 = scmp.ne.s32.totalorder %s76, %s77
    %p86 = scmp.eq.s32.totalorder %s24, 0
    %p87 = por %p85, %p86
    %p88 = scmp.ne.s32.totalorder %s76, %s77
    %p89 = scmp.eq.s32.totalorder %s25, 1
    %p90 = por %p88, %p89
    %p92 = scmp.ne.s32.totalorder %s77, %s91
    %p93 = scmp.eq.s32.totalorder %s25, 0
    %p94 = por %p92, %p93
    %s96 = sadd.s32 %s95, 1
    %p99 = scmp.eq.s32.totalorder %s19, 1
    %p100 = scmp.ne.s32.totalorder %s95, %s97
    %p101 = scmp.eq.s32.totalorder %s19, 0
    %p102 = por %p100, %p101
    %p103 = scmp.ne.s32.totalorder %s95, %s97
    %p104 = scmp.eq.s32.totalorder %s24, 1
    %p105 = por %p103, %p104
    %p106 = scmp.ne.s32.totalorder %s97, %s98
    %p107 = scmp.eq.s32.totalorder %s24, 0
    %p108 = por %p106, %p107
    %p109 = scmp.ne.s32.totalorder %s97, %s98
    %p110 = scmp.eq.s32.totalorder %s25, 1
    %p111 = por %p109, %p110
    %p113 = scmp.ne.s32.totalorder %s98, %s112
    %p114 = scmp.eq.s32.totalorder %s25, 0
    %p115 = por %p113, %p114
    %s117 = sadd.s32 %s116, 1
    %p120 = scmp.eq.s32.totalorder %s19, 1
    %p121 = scmp.ne.s32.totalorder %s116, %s118
    %p122 = scmp.eq.s32.totalorder %s19, 0
    %p123 = por %p121, %p122
    %p124 = scmp.ne.s32.totalorder %s116, %s118
    %p125 = scmp.eq.s32.totalorder %s24, 1
    %p126 = por %p124, %p125
    %p127 = scmp.ne.s32.totalorder %s118, %s119
    %p128 = scmp.eq.s32.totalorder %s24, 0
    %p129 = por %p127, %p128
    %p130 = scmp.ne.s32.totalorder %s118, %s119
    %p131 = scmp.eq.s32.totalorder %s25, 1
    %p132 = por %p130, %p131
    %p134 = scmp.ne.s32.totalorder %s119, %s133
    %p135 = scmp.eq.s32.totalorder %s25, 0
    %p136 = por %p134, %p135
    %s138 = sadd.s32 %s137, 1
    %p141 = scmp.eq.s32.totalorder %s19, 1
    %p142 = scmp.ne.s32.totalorder %s137, %s139
    %p143 = scmp.eq.s32.totalorder %s19, 0
    %p144 = por %p142, %p143
    %p145 = scmp.ne.s32.totalorder %s137, %s139
    %p146 = scmp.eq.s32.totalorder %s24, 1
    %p147 = por %p145, %p146
    %p148 = scmp.ne.s32.totalorder %s139, %s140
    %p149 = scmp.eq.s32.totalorder %s24, 0
    %p150 = por %p148, %p149
    %p151 = scmp.ne.s32.totalorder %s139, %s140
    %p152 = scmp.eq.s32.totalorder %s25, 1
    %p153 = por %p151, %p152
    %p155 = scmp.ne.s32.totalorder %s140, %s154
    %p156 = scmp.eq.s32.totalorder %s25, 0
    %p157 = por %p155, %p156
    %s159 = sadd.s32 %s158, 1
    %p162 = scmp.eq.s32.totalorder %s19, 1
    %p163 = scmp.ne.s32.totalorder %s158, %s160
    %p164 = scmp.eq.s32.totalorder %s19, 0
    %p165 = por %p163, %p164
    %p166 = scmp.ne.s32.totalorder %s158, %s160
    %p167 = scmp.eq.s32.totalorder %s24, 1
    %p168 = por %p166, %p167
    %p169 = scmp.ne.s32.totalorder %s160, %s161
    %p170 = scmp.eq.s32.totalorder %s24, 0
    %p171 = por %p169, %p170
    %p172 = scmp.ne.s32.totalorder %s160, %s161
    %p173 = scmp.eq.s32.totalorder %s25, 1
    %p174 = por %p172, %p173
    %p176 = scmp.ne.s32.totalorder %s161, %s175
    %p177 = scmp.eq.s32.totalorder %s25, 0
    %p178 = por %p176, %p177
    %s180 = sadd.s32 %s179, 1
    %p183 = scmp.eq.s32.totalorder %s19, 1
    %p184 = scmp.ne.s32.totalorder %s179, %s181
    %p185 = scmp.eq.s32.totalorder %s19, 0
    %p186 = por %p184, %p185
    %p187 = scmp.ne.s32.totalorder %s179, %s181
    %p188 = scmp.eq.s32.totalorder %s24, 1
    %p189 = por %p187, %p188
    %p190 = scmp.ne.s32.totalorder %s181, %s182
    %p191 = scmp.eq.s32.totalorder %s24, 0
    %p192 = por %p190, %p191
    %p193 = scmp.ne.s32.totalorder %s181, %s182
    %p194 = scmp.eq.s32.totalorder %s25, 1
    %p195 = por %p193, %p194
    %p197 = scmp.ne.s32.totalorder %s182, %s196
    %p198 = scmp.eq.s32.totalorder %s25, 0
    %p199 = por %p197, %p198
    %s201 = sadd.s32 %s200, 1
    %p204 = scmp.eq.s32.totalorder %s19, 1
    %p205 = scmp.ne.s32.totalorder %s200, %s202
    %p206 = scmp.eq.s32.totalorder %s19, 0
    %p207 = por %p205, %p206
    %p208 = scmp.ne.s32.totalorder %s200, %s202
    %p209 = scmp.eq.s32.totalorder %s24, 1
    %p210 = por %p208, %p209
    %p211 = scmp.ne.s32.totalorder %s202, %s203
    %p212 = scmp.eq.s32.totalorder %s24, 0
    %p213 = por %p211, %p212
    %p214 = scmp.ne.s32.totalorder %s202, %s203
    %p215 = scmp.eq.s32.totalorder %s25, 1
    %p216 = por %p214, %p215
    %p218 = scmp.ne.s32.totalorder %s203, %s217
    %p219 = scmp.eq.s32.totalorder %s25, 0
    %p220 = por %p218, %p219
    %s222 = sadd.s32 %s221, 1
    %p225 = scmp.eq.s32.totalorder %s19, 1
    %p226 = scmp.ne.s32.totalorder %s221, %s223
    %p227 = scmp.eq.s32.totalorder %s19, 0
    %p228 = por %p226, %p227
    %p229 = scmp.ne.s32.totalorder %s221, %s223
    %p230 = scmp.eq.s32.totalorder %s24, 1
    %p231 = por %p229, %p230
    %p232 = scmp.ne.s32.totalorder %s223, %s224
    %p233 = scmp.eq.s32.totalorder %s24, 0
    %p234 = por %p232, %p233
    %p235 = scmp.ne.s32.totalorder %s223, %s224
    %p236 = scmp.eq.s32.totalorder %s25, 1
    %p237 = por %p235, %p236
    %p239 = scmp.ne.s32.totalorder %s224, %s238
    %p240 = scmp.eq.s32.totalorder %s25, 0
    %p241 = por %p239, %p240
    %s243 = sadd.s32 %s242, 1
    %p246 = scmp.eq.s32.totalorder %s19, 1
    %p247 = scmp.ne.s32.totalorder %s242, %s244
    %p248 = scmp.eq.s32.totalorder %s19, 0
    %p249 = por %p247, %p248
    %p250 = scmp.ne.s32.totalorder %s242, %s244
    %p251 = scmp.eq.s32.totalorder %s24, 1
    %p252 = por %p250, %p251
    %p253 = scmp.ne.s32.totalorder %s244, %s245
    %p254 = scmp.eq.s32.totalorder %s24, 0
    %p255 = por %p253, %p254
    %p256 = scmp.ne.s32.totalorder %s244, %s245
    %p257 = scmp.eq.s32.totalorder %s25, 1
    %p258 = por %p256, %p257
    %p260 = scmp.ne.s32.totalorder %s245, %s259
    %p261 = scmp.eq.s32.totalorder %s25, 0
    %p262 = por %p260, %p261
    %s264 = sadd.s32 %s263, 1
    %p267 = scmp.eq.s32.totalorder %s19, 1
    %p268 = scmp.ne.s32.totalorder %s263, %s265
    %p269 = scmp.eq.s32.totalorder %s19, 0
    %p270 = por %p268, %p269
    %p271 = scmp.ne.s32.totalorder %s263, %s265
    %p272 = scmp.eq.s32.totalorder %s24, 1
    %p273 = por %p271, %p272
    %p274 = scmp.ne.s32.totalorder %s265, %s266
    %p275 = scmp.eq.s32.totalorder %s24, 0
    %p276 = por %p274, %p275
    %p277 = scmp.ne.s32.totalorder %s265, %s266
    %p278 = scmp.eq.s32.totalorder %s25, 1
    %p279 = por %p277, %p278
    %p281 = scmp.ne.s32.totalorder %s266, %s280
    %p282 = scmp.eq.s32.totalorder %s25, 0
    %p283 = por %p281, %p282
    %s285 = sadd.s32 %s284, 1
    %p288 = scmp.eq.s32.totalorder %s19, 1
    %p289 = scmp.ne.s32.totalorder %s284, %s286
    %p290 = scmp.eq.s32.totalorder %s19, 0
    %p291 = por %p289, %p290
    %p292 = scmp.ne.s32.totalorder %s284, %s286
    %p293 = scmp.eq.s32.totalorder %s24, 1
    %p294 = por %p292, %p293
    %p295 = scmp.ne.s32.totalorder %s286, %s287
    %p296 = scmp.eq.s32.totalorder %s24, 0
    %p297 = por %p295, %p296
    %p298 = scmp.ne.s32.totalorder %s286, %s287
    %p299 = scmp.eq.s32.totalorder %s25, 1
    %p300 = por %p298, %p299
    %p302 = scmp.ne.s32.totalorder %s287, %s301
    %p303 = scmp.eq.s32.totalorder %s25, 0
    %p304 = por %p302, %p303
    %s305 = ssub.s32 %s19, %s26
    %p306 = scmp.eq.s32.totalorder %s305, 0
    %s308 = sadd.s32 %s307, 1
    %s309 = scalar_select %p306, %s307, %s308
    %p312 = pneg %p306
    %p313 = scmp.eq.s32.totalorder %s19, 1
    %p314 = por %p312, %p313
    %p315 = scmp.ne.s32.totalorder %s307, %s310
    %p316 = scmp.eq.s32.totalorder %s19, 0
    %p317 = por %p315, %p316
    %p318 = scmp.ne.s32.totalorder %s307, %s310
    %p319 = scmp.eq.s32.totalorder %s24, 1
    %p320 = por %p318, %p319
    %p321 = scmp.ne.s32.totalorder %s310, %s311
    %p322 = scmp.eq.s32.totalorder %s24, 0
    %p323 = por %p321, %p322
    %p324 = scmp.ne.s32.totalorder %s310, %s311
    %p325 = scmp.eq.s32.totalorder %s25, 1
    %p326 = por %p324, %p325
    %p328 = scmp.ne.s32.totalorder %s311, %s327
    %p329 = scmp.eq.s32.totalorder %s25, 0
    %p330 = por %p328, %p329
    %p331 = scmp.le.s32.totalorder 1, %s19
    %p332 = scmp.lt.s32.totalorder %s19, 3
    %p333 = pnand %p331, %p332
    %p334 = pneg %p333
    // Predicated region
    $region9: #{conformer_separator_forward.16} parent=5 // pred_check
      _
    $region10: #{conformer_separator_forward.16} parent=5 // pred_check_branch
      %336 = sbr.rel (%p333) target = $region12
    $region11: #{conformer_separator_forward.16} parent=5 // pred_region
      %s337 = ssub.s32 %s19, 1
      // Predicated region
      $region13: #{conformer_separator_forward.16} parent=11 // pred_check
        %p338 = pneg %p66
      $region14: #{conformer_separator_forward.16} parent=11 // pred_check_branch
        %340 = sbr.rel (%p338) target = $region16
      $region15: #{conformer_separator_forward.16} parent=11 // pred_region
        _
      $region16: #{conformer_separator_forward.16} parent=11 // pred_fallthru
        _
      // Predicated region
      $region17: #{conformer_separator_forward.16} parent=11 // pred_check
        %p341 = pneg %p87
      $region18: #{conformer_separator_forward.16} parent=11 // pred_check_branch
        %343 = sbr.rel (%p341) target = $region20
      $region19: #{conformer_separator_forward.16} parent=11 // pred_region
        _
      $region20: #{conformer_separator_forward.16} parent=11 // pred_fallthru
        _
      // Predicated region
      $region21: #{conformer_separator_forward.16} parent=11 // pred_check
        %p344 = pneg %p108
      $region22: #{conformer_separator_forward.16} parent=11 // pred_check_branch
        %346 = sbr.rel (%p344) target = $region24
      $region23: #{conformer_separator_forward.16} parent=11 // pred_region
        _
      $region24: #{conformer_separator_forward.16} parent=11 // pred_fallthru
        _
      // Predicated region
      $region25: #{conformer_separator_forward.16} parent=11 // pred_check
        %p347 = pneg %p129
      $region26: #{conformer_separator_forward.16} parent=11 // pred_check_branch
        %349 = sbr.rel (%p347) target = $region28
      $region27: #{conformer_separator_forward.16} parent=11 // pred_region
        _
      $region28: #{conformer_separator_forward.16} parent=11 // pred_fallthru
        _
      // Predicated region
      $region29: #{conformer_separator_forward.16} parent=11 // pred_check
        %p350 = pneg %p150
      $region30: #{conformer_separator_forward.16} parent=11 // pred_check_branch
        %352 = sbr.rel (%p350) target = $region32
      $region31: #{conformer_separator_forward.16} parent=11 // pred_region
        _
      $region32: #{conformer_separator_forward.16} parent=11 // pred_fallthru
        _
      // Predicated region
      $region33: #{conformer_separator_forward.16} parent=11 // pred_check
        %p353 = pneg %p171
      $region34: #{conformer_separator_forward.16} parent=11 // pred_check_branch
        %355 = sbr.rel (%p353) target = $region36
      $region35: #{conformer_separator_forward.16} parent=11 // pred_region
        _
      $region36: #{conformer_separator_forward.16} parent=11 // pred_fallthru
        _
      // Predicated region
      $region37: #{conformer_separator_forward.16} parent=11 // pred_check
        %p356 = pneg %p192
      $region38: #{conformer_separator_forward.16} parent=11 // pred_check_branch
        %358 = sbr.rel (%p356) target = $region40
      $region39: #{conformer_separator_forward.16} parent=11 // pred_region
        _
      $region40: #{conformer_separator_forward.16} parent=11 // pred_fallthru
        _
      // Predicated region
      $region41: #{conformer_separator_forward.16} parent=11 // pred_check
        %p359 = pneg %p213
      $region42: #{conformer_separator_forward.16} parent=11 // pred_check_branch
        %361 = sbr.rel (%p359) target = $region44
      $region43: #{conformer_separator_forward.16} parent=11 // pred_region
        _
      $region44: #{conformer_separator_forward.16} parent=11 // pred_fallthru
        _
      // Predicated region
      $region45: #{conformer_separator_forward.16} parent=11 // pred_check
        %p362 = pneg %p234
      $region46: #{conformer_separator_forward.16} parent=11 // pred_check_branch
        %364 = sbr.rel (%p362) target = $region48
      $region47: #{conformer_separator_forward.16} parent=11 // pred_region
        _
      $region48: #{conformer_separator_forward.16} parent=11 // pred_fallthru
        _
      // Predicated region
      $region49: #{conformer_separator_forward.16} parent=11 // pred_check
        %p365 = pneg %p255
      $region50: #{conformer_separator_forward.16} parent=11 // pred_check_branch
        %367 = sbr.rel (%p365) target = $region52
      $region51: #{conformer_separator_forward.16} parent=11 // pred_region
        _
      $region52: #{conformer_separator_forward.16} parent=11 // pred_fallthru
        _
      // Predicated region
      $region53: #{conformer_separator_forward.16} parent=11 // pred_check
        %p368 = pneg %p276
      $region54: #{conformer_separator_forward.16} parent=11 // pred_check_branch
        %370 = sbr.rel (%p368) target = $region56
      $region55: #{conformer_separator_forward.16} parent=11 // pred_region
        _
      $region56: #{conformer_separator_forward.16} parent=11 // pred_fallthru
        _
      // Predicated region
      $region57: #{conformer_separator_forward.16} parent=11 // pred_check
        %p371 = pneg %p297
      $region58: #{conformer_separator_forward.16} parent=11 // pred_check_branch
        %373 = sbr.rel (%p371) target = $region60
      $region59: #{conformer_separator_forward.16} parent=11 // pred_region
        _
      $region60: #{conformer_separator_forward.16} parent=11 // pred_fallthru
        _
    $region12: #{conformer_separator_forward.16} parent=5 // pred_fallthru
      _
    %p374 = scmp.lt.s32.totalorder %s19, 2
    // Predicated region
    $region61: #{conformer_separator_forward.16} parent=5 // pred_check
      %p375 = pneg %p374
    $region62: #{conformer_separator_forward.16} parent=5 // pred_check_branch
      %377 = sbr.rel (%p375) target = $region64
    $region63: #{conformer_separator_forward.16} parent=5 // pred_region
      // Predicated region
      $region65: #{conformer_separator_forward.16} parent=63 // pred_check
        %p378 = pneg %p39
      $region66: #{conformer_separator_forward.16} parent=63 // pred_check_branch
        %380 = sbr.rel (%p378) target = $region68
      $region67: #{conformer_separator_forward.16} parent=63 // pred_region
        %p381 = scmp.lt.s32.totalorder %s19, 1
        %s382 = scalar_select %p381, %s19, 1
        %s383 = smul.addr %s382, 8
        %s384 = scalar_lea.vmem %s0, %s383
      $region68: #{conformer_separator_forward.16} parent=63 // pred_fallthru
        _
    $region64: #{conformer_separator_forward.16} parent=5 // pred_fallthru
      _
    %p385 = scmp.le.s32.totalorder 1, %s19
    %p386 = scmp.lt.s32.totalorder %s19, 3
    %p387 = pnand %p385, %p386
    %p388 = pneg %p387
    // Predicated region
    $region69: #{conformer_separator_forward.16} parent=5 // pred_check
      _
    $region70: #{conformer_separator_forward.16} parent=5 // pred_check_branch
      %390 = sbr.rel (%p387) target = $region72
    $region71: #{conformer_separator_forward.16} parent=5 // pred_region
      %s391 = ssub.s32 %s19, 1
      %p392 = scmp.lt.s32.totalorder %s24, 1
      %s393 = scalar_select %p392, %s24, 1
      %s394 = smul.addr %s393, 8
      %s395 = scalar_lea.vmem %s0, %s394
      %p396 = pneg %p45
      %p397 = pneg %p42
      %p398 = pneg %p66
      %p399 = pneg %p63
      %p400 = pneg %p87
      %p401 = pneg %p84
      %p402 = pneg %p108
      %p403 = pneg %p105
      %p404 = pneg %p129
      %p405 = pneg %p126
      %p406 = pneg %p150
      %p407 = pneg %p147
      %p408 = pneg %p171
      %p409 = pneg %p168
      %p410 = pneg %p192
      %p411 = pneg %p189
      %p412 = pneg %p213
      %p413 = pneg %p210
      %p414 = pneg %p234
      %p415 = pneg %p231
      %p416 = pneg %p255
      %p417 = pneg %p252
      %p418 = pneg %p276
      %p419 = pneg %p273
      %p420 = pneg %p297
      %p421 = pneg %p294
      %p422 = pneg %p323
      %p423 = pneg %p320
      %p424 = scmp.lt.s32.totalorder %s24, 1
      %s425 = scalar_select %p424, %s24, 1
      %s426 = smul.addr %s425, 8
      %s427 = scalar_lea.vmem %s13, %s426
      %p428 = scmp.lt.s32.totalorder %s24, 1
      %s429 = scalar_select %p428, %s24, 1
      %s430 = smul.addr %s429, 8
      %s431 = scalar_lea.vmem %s0, %s430
      %p432 = scmp.lt.s32.totalorder %s24, 1
      %s433 = scalar_select %p432, %s24, 1
      %s434 = smul.addr %s433, 8
      %s435 = scalar_lea.vmem %s13, %s434
      %v437 = vld [vmem:[%s431] sm:$0xff]
      %v438 = vld [vmem:[%s1] sm:$0x1]
      %v439 = vld [vmem:[%s2] sm:$0x1]
      %vm440 = vcmask 261120
      %v441 = vsel %vm440, %v437, 0.0
      %442 = vadd.xlane.f32.xlu0 %v441
      %v443 = vpop.xlane.xlu0 %442
      %v444 = vrcp.pop 32.0
      %v445 = vmul.f32 %v443, %v444
      %v446 = vsub.f32 %v437, %v445
      %v447 = vmul.f32 %v446, %v446
      %v448 = vsel %vm440, %v447, 0.0
      %449 = vadd.xlane.f32.xlu0 %v448
      %v450 = vpop.xlane.xlu0 %449
      %v451 = vmul.f32 %v450, %v444
      %v452 = vadd.f32 %v451, 1e-05
      %v453 = vrsqrt.pop %v452
      %v454 = vmul.f32 %v446, %v453
      %v456 = vlaneseq
      %v457 = vshrl.u32 %v456, 7
      %v458 = vsub.s32 0, %v457
      %v459 = vrot.slane %v438, %v458
      %v461 = vmul.f32 %v454, %v459
      %v463 = vlaneseq
      %v464 = vshrl.u32 %v463, 7
      %v465 = vsub.s32 0, %v464
      %v466 = vrot.slane %v439, %v465
      %v468 = vadd.f32 %v461, %v466
      %v469 = vpack.c.bf16 %v468, %v468
      %v470 = vld [vmem:[%s3] sm:$0xf]
      %v471 = vld [vmem:[%s3 + $0x4] sm:$0xf]
      %v472 = vld [vmem:[%s3 + $0x8] sm:$0xf]
      %v473 = vld [vmem:[%s3 + $0xc] sm:$0xf]
      %v474 = vld [vmem:[%s4] sm:$0x1]
      %v476 = vlaneseq
      %v477 = vshrl.u32 %v476, 7
      %v478 = vsub.s32 0, %v477
      %v479 = vrot.slane %v474, %v478
      %v485 = vunpack.c.l.b16 %v470
      %v486 = vunpack.c.l.b16 %v471
      %v487 = vunpack.c.l.b16 %v472
      %v488 = vunpack.c.l.b16 %v473
      %v489 = vpack.c.b16 %v486, %v485
      %v490 = vpack.c.b16 %v488, %v487
      %v494 = vsel %vm440, %v469, 0
      %496 = vmatprep.subr.bf16.mxu0 0
      %497 = vmatpush1.bf16.msra.mxu0 0
      %498 = vmatprep.subr.bf16.mxu0 0
      %499 = vmatpush1.bf16.msra.mxu0 0
      %500 = vmatprep.subr.bf16.mxu0 0
      %501 = vmatpush1.bf16.msra.mxu0 0
      %502 = vmatprep.subr.bf16.mxu0 0
      %503 = vmatpush1.bf16.msra.mxu0 0
      %504 = vmatprep.subr.bf16.mxu0 0
      %505 = vmatpush1.bf16.msra.mxu0 0
      %506 = vmatprep.subr.bf16.mxu0 0
      %507 = vmatpush1.bf16.msra.mxu0 0
      %508 = vmatprep.subr.bf16.mxu0 0
      %509 = vmatpush1.bf16.msra.mxu0 %v490
      %510 = vmatprep.subr.bf16.mxu0 0
      %511 = vmatpush1.bf16.msra.mxu0 %v489
      %512 = vmatprep.subr.bf16.mxu0 0
      %513 = vmatpush2.bf16.msra.mxu0 0
      %514 = vmatprep.subr.bf16.mxu0 0
      %515 = vmatpush2.bf16.msra.mxu0 0
      %516 = vmatprep.subr.bf16.mxu0 0
      %517 = vmatpush2.bf16.msra.mxu0 0
      %518 = vmatprep.subr.bf16.mxu0 0
      %519 = vmatpush2.bf16.msra.mxu0 0
      %520 = vmatprep.subr.bf16.mxu0 0
      %521 = vmatpush2.bf16.msra.mxu0 0
      %522 = vmatprep.subr.bf16.mxu0 0
      %523 = vmatpush2.bf16.msra.mxu0 0
      %524 = vmatprep.subr.bf16.mxu0 0
      %525 = vmatpush2.bf16.msra.mxu0 0
      %526 = vmatprep.subr.bf16.mxu0 0
      %527 = vmatpush2.bf16.msra.mxu0 0
      %528 = vmatprep.mubr.bf16.mxu0 0
      %529 = vmatmul.mubr.bf16.gmra.mxu0 %v494
      %v530 = vpop.f32.mrf.mxu0
      %v531 = vadd.f32 %v479, %v530
      %v532 = vpop.f32.mrf.mxu0
      %v533 = vpop.f32.mrf.mxu0
      %v534 = vpop.f32.mrf.mxu0
      %535 = vdwg.mxu0
      %v536 = vxor.u32 %v531, 2147483648
      %v537 = vmul.f32 %v536, 1.442695
      %v538 = vpow.pop %v537
      %v539 = vadd.f32 %v538, 1.0
      %v540 = vrcp.pop %v539
      %v541 = vmul.f32 1.0, %v540
      %543 = vrot.lane.b32.xlu0 %v541, 96
      %v544 = vpop.permute.xlu0 %543
      %v546 = vmul.f32 %v531, %v544
      %vm547 = vcmask 256000
      %548 = vst.msk [vmem:[#allocation2] sm:$0x7] %vm547, 0.0
      %549 = vst.msk [vmem:[#allocation2 + $0xb] sm:$0x7] %vm547, 0.0
      %550 = vst.msk [vmem:[#allocation2 + $0x3] sm:$0xff] %vm440, %v546
      %v551 = vld [vmem:[#allocation2] sm:$0xff]
      %v552 = vld [vmem:[%s5] sm:$0x1]
      %v553 = vlaneseq
      %v554 = vshrl.u32 %v553, 7
      %v555 = vsub.s32 0, %v554
      %v556 = vrot.slane %v552, %v555
      %v557 = vmul.f32 %v551, %v556
      %v558 = vld [vmem:[#allocation2 + $0x1] sm:$0xff]
      %v559 = vld [vmem:[%s5 + $0x1] sm:$0x1]
      %v560 = vlaneseq
      %v561 = vshrl.u32 %v560, 7
      %v562 = vsub.s32 0, %v561
      %v563 = vrot.slane %v559, %v562
      %v564 = vmul.f32 %v558, %v563
      %v565 = vadd.f32 %v557, %v564
      %v566 = vld [vmem:[#allocation2 + $0x2] sm:$0xff]
      %v567 = vld [vmem:[%s5 + $0x2] sm:$0x1]
      %v568 = vlaneseq
      %v569 = vshrl.u32 %v568, 7
      %v570 = vsub.s32 0, %v569
      %v571 = vrot.slane %v567, %v570
      %v572 = vmul.f32 %v566, %v571
      %v573 = vadd.f32 %v565, %v572
      %v574 = vld [vmem:[#allocation2 + $0x3] sm:$0xff]
      %v575 = vld [vmem:[%s5 + $0x3] sm:$0x1]
      %v576 = vlaneseq
      %v577 = vshrl.u32 %v576, 7
      %v578 = vsub.s32 0, %v577
      %v579 = vrot.slane %v575, %v578
      %v580 = vmul.f32 %v574, %v579
      %v581 = vadd.f32 %v573, %v580
      %v582 = vld [vmem:[#allocation2 + $0x4] sm:$0xff]
      %v583 = vld [vmem:[%s5 + $0x4] sm:$0x1]
      %v584 = vlaneseq
      %v585 = vshrl.u32 %v584, 7
      %v586 = vsub.s32 0, %v585
      %v587 = vrot.slane %v583, %v586
      %v588 = vmul.f32 %v582, %v587
      %v589 = vadd.f32 %v581, %v588
      %v590 = vld [vmem:[#allocation2 + $0x5] sm:$0xff]
      %v591 = vld [vmem:[%s5 + $0x5] sm:$0x1]
      %v592 = vlaneseq
      %v593 = vshrl.u32 %v592, 7
      %v594 = vsub.s32 0, %v593
      %v595 = vrot.slane %v591, %v594
      %v596 = vmul.f32 %v590, %v595
      %v597 = vadd.f32 %v589, %v596
      %v598 = vld [vmem:[#allocation2 + $0x6] sm:$0xff]
      %v599 = vld [vmem:[%s5 + $0x6] sm:$0x1]
      %v600 = vlaneseq
      %v601 = vshrl.u32 %v600, 7
      %v602 = vsub.s32 0, %v601
      %v603 = vrot.slane %v599, %v602
      %v604 = vmul.f32 %v598, %v603
      %v605 = vadd.f32 %v597, %v604
      %v606 = vld [vmem:[%s6] sm:$0x1]
      %v608 = vlaneseq
      %v609 = vshrl.u32 %v608, 7
      %v610 = vsub.s32 0, %v609
      %v611 = vrot.slane %v606, %v610
      %v613 = vadd.f32 %v605, %v611
      %v614 = vld [vmem:[%s9] sm:$0x1]
      %v616 = vlaneseq
      %v617 = vshrl.u32 %v616, 7
      %v618 = vsub.s32 0, %v617
      %v619 = vrot.slane %v614, %v618
      %v621 = vsub.f32 %v613, %v619
      %v622 = vld [vmem:[%s10] sm:$0x1]
      %v623 = vadd.f32 %v622, 1e-05
      %v624 = vrsqrt.pop %v623
      %v626 = vlaneseq
      %v627 = vshrl.u32 %v626, 7
      %v628 = vsub.s32 0, %v627
      %v629 = vrot.slane %v624, %v628
      %v631 = vmul.f32 %v621, %v629
      %v632 = vld [vmem:[%s7] sm:$0x1]
      %v634 = vlaneseq
      %v635 = vshrl.u32 %v634, 7
      %v636 = vsub.s32 0, %v635
      %v637 = vrot.slane %v632, %v636
      %v639 = vmul.f32 %v631, %v637
      %v640 = vld [vmem:[%s8] sm:$0x1]
      %v642 = vlaneseq
      %v643 = vshrl.u32 %v642, 7
      %v644 = vsub.s32 0, %v643
      %v645 = vrot.slane %v640, %v644
      %v647 = vadd.f32 %v639, %v645
      %v648 = vxor.u32 %v647, 2147483648
      %v649 = vmul.f32 %v648, 1.442695
      %v650 = vpow.pop %v649
      %v651 = vadd.f32 %v650, 1.0
      %v652 = vrcp.pop %v651
      %v653 = vmul.f32 1.0, %v652
      %v654 = vmul.f32 %v647, %v653
      %v655 = vpack.c.bf16 %v654, %v654
      %v656 = vld [vmem:[%s11] sm:$0xf]
      %v657 = vld [vmem:[%s11 + $0x4] sm:$0xf]
      %v658 = vld [vmem:[%s11 + $0x8] sm:$0xf]
      %v659 = vld [vmem:[%s11 + $0xc] sm:$0xf]
      %v660 = vld [vmem:[%s12] sm:$0x1]
      %v662 = vlaneseq
      %v663 = vshrl.u32 %v662, 7
      %v664 = vsub.s32 0, %v663
      %v665 = vrot.slane %v660, %v664
      %v671 = vunpack.c.l.b16 %v656
      %v672 = vunpack.c.l.b16 %v657
      %v673 = vunpack.c.l.b16 %v658
      %v674 = vunpack.c.l.b16 %v659
      %v675 = vpack.c.b16 %v672, %v671
      %v676 = vpack.c.b16 %v674, %v673
      %v680 = vsel %vm440, %v655, 0
      %682 = vmatprep.subr.bf16.mxu0 0
      %683 = vmatpush1.bf16.msra.mxu0 0
      %684 = vmatprep.subr.bf16.mxu0 0
      %685 = vmatpush1.bf16.msra.mxu0 0
      %686 = vmatprep.subr.bf16.mxu0 0
      %687 = vmatpush1.bf16.msra.mxu0 0
      %688 = vmatprep.subr.bf16.mxu0 0
      %689 = vmatpush1.bf16.msra.mxu0 0
      %690 = vmatprep.subr.bf16.mxu0 0
      %691 = vmatpush1.bf16.msra.mxu0 0
      %692 = vmatprep.subr.bf16.mxu0 0
      %693 = vmatpush1.bf16.msra.mxu0 0
      %694 = vmatprep.subr.bf16.mxu0 0
      %695 = vmatpush1.bf16.msra.mxu0 %v676
      %696 = vmatprep.subr.bf16.mxu0 0
      %697 = vmatpush1.bf16.msra.mxu0 %v675
      %698 = vmatprep.subr.bf16.mxu0 0
      %699 = vmatpush2.bf16.msra.mxu0 0
      %700 = vmatprep.subr.bf16.mxu0 0
      %701 = vmatpush2.bf16.msra.mxu0 0
      %702 = vmatprep.subr.bf16.mxu0 0
      %703 = vmatpush2.bf16.msra.mxu0 0
      %704 = vmatprep.subr.bf16.mxu0 0
      %705 = vmatpush2.bf16.msra.mxu0 0
      %706 = vmatprep.subr.bf16.mxu0 0
      %707 = vmatpush2.bf16.msra.mxu0 0
      %708 = vmatprep.subr.bf16.mxu0 0
      %709 = vmatpush2.bf16.msra.mxu0 0
      %710 = vmatprep.subr.bf16.mxu0 0
      %711 = vmatpush2.bf16.msra.mxu0 0
      %712 = vmatprep.subr.bf16.mxu0 0
      %713 = vmatpush2.bf16.msra.mxu0 0
      %714 = vmatprep.mubr.bf16.mxu0 0
      %715 = vmatmul.mubr.bf16.gmra.mxu0 %v680
      %v716 = vpop.f32.mrf.mxu0
      %v717 = vadd.f32 %v665, %v716
      %v718 = vpop.f32.mrf.mxu0
      %v719 = vpop.f32.mrf.mxu0
      %v720 = vpop.f32.mrf.mxu0
      %721 = vdwg.mxu0
      %v722 = vadd.f32 %v437, %v717
      %723 = vst.msk [vmem:[%s435] sm:$0xff] %vm440, %v722
      %p724 = scmp.lt.s32.totalorder %s24, 1
      %s725 = scalar_select %p724, %s24, 1
      %s726 = smul.addr %s725, 8
      %s727 = scalar_lea.vmem %s13, %s726
      // Predicated region
      $region73: #{conformer_separator_forward.16} parent=71 // pred_check
        %p728 = pneg %p320
      $region74: #{conformer_separator_forward.16} parent=71 // pred_check_branch
        %730 = sbr.rel (%p728) target = $region76
      $region75: #{conformer_separator_forward.16} parent=71 // pred_region
        _
      $region76: #{conformer_separator_forward.16} parent=71 // pred_fallthru
        _
    $region72: #{conformer_separator_forward.16} parent=5 // pred_fallthru
      _
    %p731 = scmp.le.s32.totalorder 2, %s19
    // Predicated region
    $region77: #{conformer_separator_forward.16} parent=5 // pred_check
      %p732 = pneg %p731
    $region78: #{conformer_separator_forward.16} parent=5 // pred_check_branch
      %734 = sbr.rel (%p732) target = $region80
    $region79: #{conformer_separator_forward.16} parent=5 // pred_region
      %s735 = ssub.s32 %s19, 2
      // Predicated region
      $region81: #{conformer_separator_forward.16} parent=79 // pred_check
        %p736 = pneg %p326
      $region82: #{conformer_separator_forward.16} parent=79 // pred_check_branch
        %738 = sbr.rel (%p736) target = $region84
      $region83: #{conformer_separator_forward.16} parent=79 // pred_region
        %p739 = scmp.lt.s32.totalorder %s25, 1
        %s740 = scalar_select %p739, %s25, 1
        %s741 = smul.addr %s740, 8
        %s742 = scalar_lea.vmem %s13, %s741
      $region84: #{conformer_separator_forward.16} parent=79 // pred_fallthru
        _
    $region80: #{conformer_separator_forward.16} parent=5 // pred_fallthru
      _
  $region6: #{conformer_separator_forward.16} parent=0 // loop_footer
    %s23 = sadd.s32 1, %s19
  $region7: #{conformer_separator_forward.16} parent=0 // loop_footer_branch
    %18 = sbr.rel target = $region3
  $region8: #{conformer_separator_forward.16} parent=0 // loop_exit
    _

</llo_original>
